<compile_context>
chip_gen: v5e
topology: v5e:2x2
jax: 0.10.0
libtpu: 0.0.40
codegen_flags: <defaults>
</compile_context>

<pallas_src>
import jax
import jax.numpy as jnp
from jax.experimental import pallas as pl
from jax.experimental.pallas import tpu as pltpu


D_IN = 28 * 28        # 784
D_IN_PAD = 896        # 7 * 128: lane-aligned contraction for the first matmul
HIDDEN = 512
D_OUT = 10
D_OUT_PAD = 128       # lane-dense output block -> unmasked vst


def mlp_kernel(x_ref, w1_ref, b1_ref, w2_ref, b2_ref, w3_ref, b3_ref, o_ref):
    # Fused 3-layer MLP for one batch tile.  All three matmuls hit the MXU
    # with f32 accumulation; bias add + ReLU run in f32 on the VPU.
    x = x_ref[...]
    h1 = jnp.dot(x, w1_ref[...], preferred_element_type=jnp.float32) + b1_ref[...]
    h1 = jnp.maximum(h1, 0.0)
    h2 = jnp.dot(h1.astype(w2_ref.dtype), w2_ref[...],
                 preferred_element_type=jnp.float32) + b2_ref[...]
    h2 = jnp.maximum(h2, 0.0)
    logits = jnp.dot(h2.astype(w3_ref.dtype), w3_ref[...],
                     preferred_element_type=jnp.float32) + b3_ref[...]
    o_ref[...] = logits.astype(o_ref.dtype)


def init_params(key):
    """nn.Linear-style init; weights stored transposed as (in, out)."""
    def linear(key, fan_in, fan_out):
        kw, kb = jax.random.split(key)
        bound = 1.0 / jnp.sqrt(fan_in)
        w = jax.random.uniform(kw, (fan_in, fan_out), jnp.float32, -bound, bound)
        b = jax.random.uniform(kb, (1, fan_out), jnp.float32, -bound, bound)
        return w, b

    k1, k2, k3 = jax.random.split(key, 3)
    w1, b1 = linear(k1, D_IN, HIDDEN)
    w2, b2 = linear(k2, HIDDEN, HIDDEN)
    w3, b3 = linear(k3, HIDDEN, D_OUT)
    return (w1, b1, w2, b2, w3, b3)


def prepare_params(params, *, dtype=jnp.float32):
    """One-time TPU prep: pad K 784->896 and output 10->128 with zeros
    (exact), and cast matmul operands to `dtype` (e.g. bf16 on v6e/v7x).
    Biases stay f32 so the bias-add/ReLU stays on the f32 VPU path."""
    w1, b1, w2, b2, w3, b3 = params
    w1p = jnp.pad(w1, ((0, D_IN_PAD - w1.shape[0]), (0, 0)))
    w3p = jnp.pad(w3, ((0, 0), (0, D_OUT_PAD - w3.shape[1])))
    b3p = jnp.pad(b3, ((0, 0), (0, D_OUT_PAD - b3.shape[1])))
    return (w1p.astype(dtype), b1.astype(jnp.float32),
            w2.astype(dtype), b2.astype(jnp.float32),
            w3p.astype(dtype), b3p.astype(jnp.float32))


def neural_network_forward(x_nchw, prepared_params, *, tile_b=None):
    """x_nchw: (B, 1, 28, 28) float32.  `prepared_params` from prepare_params().
    Returns logits (B, 10) float32."""
    w1, b1, w2, b2, w3, b3 = prepared_params
    B = x_nchw.shape[0]

    # Flatten (nn.Flatten) and zero-pad K to the lane-aligned width; cast the
    # activation operand to the weight dtype (no-op for f32 params).
    x = x_nchw.reshape(B, -1)
    x = jnp.pad(x, ((0, 0), (0, D_IN_PAD - x.shape[1]))).astype(w1.dtype)

    if tile_b is None:
        # Big M tile for MXU utilization; capped so the double-buffered x tile
        # + f32 temps + resident weights fit v5e's 16 MiB default scoped VMEM.
        tile_b = B if B <= 512 else 512

    grid = (pl.cdiv(B, tile_b),)

    flops = 2 * B * (D_IN_PAD * HIDDEN + HIDDEN * HIDDEN + HIDDEN * D_OUT_PAD)
    bytes_accessed = int(
        x.size * x.dtype.itemsize
        + sum(int(p.size) * p.dtype.itemsize for p in prepared_params)
        + B * D_OUT_PAD * 4)
    cost = pl.CostEstimate(flops=flops, transcendentals=0,
                           bytes_accessed=bytes_accessed)

    def call(single_buffer_weights):
        # Weights/biases have a constant index_map; single-buffer them to
        # avoid allocating (and never using) a second VMEM copy.
        wkw = ({"pipeline_mode": pl.Buffered(1)}
               if single_buffer_weights else {})
        const = lambda i: (0, 0)
        in_specs = [
            pl.BlockSpec((tile_b, D_IN_PAD), lambda i: (i, 0)),        # x tile
            pl.BlockSpec((D_IN_PAD, HIDDEN), const, **wkw),            # W1
            pl.BlockSpec((1, HIDDEN), const, **wkw),                   # b1
            pl.BlockSpec((HIDDEN, HIDDEN), const, **wkw),              # W2
            pl.BlockSpec((1, HIDDEN), const, **wkw),                   # b2
            pl.BlockSpec((HIDDEN, D_OUT_PAD), const, **wkw),           # W3 (padded)
            pl.BlockSpec((1, D_OUT_PAD), const, **wkw),                # b3 (padded)
        ]
        return pl.pallas_call(
            mlp_kernel,
            out_shape=jax.ShapeDtypeStruct((B, D_OUT_PAD), jnp.float32),
            grid_spec=pltpu.PrefetchScalarGridSpec(
                num_scalar_prefetch=0,
                grid=grid,
                in_specs=in_specs,
                out_specs=pl.BlockSpec((tile_b, D_OUT_PAD), lambda i: (i, 0)),
            ),
            compiler_params=pltpu.CompilerParams(
                dimension_semantics=("parallel",),
            ),
            cost_estimate=cost,
        )(x, w1, b1, w2, b2, w3, b3)

    try:
        out = call(single_buffer_weights=True)
    except Exception:
        # Fallback if this JAX version rejects Buffered(1) on the outer
        # pipeline; correctness is identical, only VMEM footprint differs.
        out = call(single_buffer_weights=False)

    # Drop the lane-padding columns -> (B, 10), matching the PyTorch module.
    return out[:, :D_OUT]


def reference_forward(x_nchw, raw_params):
    """Pure-JAX f32 reference for correctness checking."""
    w1, b1, w2, b2, w3, b3 = raw_params
    x = x_nchw.reshape(x_nchw.shape[0], -1)
    h1 = jnp.maximum(x @ w1 + b1, 0.0)
    h2 = jnp.maximum(h1 @ w2 + b2, 0.0)
    return h2 @ w3 + b3


if __name__ == "__main__":
    key = jax.random.PRNGKey(0)
    kp, kx = jax.random.split(key)

    raw_params = init_params(kp)
    # Small batch; input shape implied by Linear(28*28, ...): (B, 1, 28, 28)
    x = jax.random.normal(kx, (8, 1, 28, 28), dtype=jnp.float32)
    ref = reference_forward(x, raw_params)

    # f32 matmul operands: tight tolerance against the reference.
    params_f32 = prepare_params(raw_params, dtype=jnp.float32)
    logits = jax.block_until_ready(neural_network_forward(x, params_f32))
    assert logits.shape == (8, 10)
    assert jnp.allclose(logits, ref, atol=1e-4, rtol=1e-4), "f32 mismatch vs reference"

    # bf16 matmul operands (v6e/v7x fast path), f32 accumulate: loose tolerance.
    params_bf16 = prepare_params(raw_params, dtype=jnp.bfloat16)
    logits_bf16 = jax.block_until_ready(neural_network_forward(x, params_bf16))
    assert logits_bf16.shape == (8, 10)
    assert jnp.allclose(logits_bf16, ref, atol=1e-1, rtol=1e-1), "bf16 mismatch vs reference"

    print("KERNEL_OK")
</pallas_src>

<mosaic_0001>
module attributes {stable_mosaic.version = 11 : i64} {
  func.func @mlp_kernel(%arg0: i32, %arg1: memref<8x896xf32, #tpu.memory_space<vmem>>, %arg2: memref<896x512xf32, #tpu.memory_space<vmem>>, %arg3: memref<1x512xf32, #tpu.memory_space<vmem>>, %arg4: memref<512x512xf32, #tpu.memory_space<vmem>>, %arg5: memref<1x512xf32, #tpu.memory_space<vmem>>, %arg6: memref<512x128xf32, #tpu.memory_space<vmem>>, %arg7: memref<1x128xf32, #tpu.memory_space<vmem>>, %arg8: memref<8x128xf32, #tpu.memory_space<vmem>>) attributes {dimension_semantics = [#tpu.dimension_semantics<parallel>], iteration_bounds = array<i64: 1>, scalar_prefetch = 0 : i64, scratch_operands = 0 : i64, tpu.core_type = #tpu.core_type<tc>, window_params = [{transform_indices = @transform_0, window_bounds = array<i64: 8, 896>}, {pipeline_mode = #tpu.pipeline_mode<synchronous>, transform_indices = @transform_1, window_bounds = array<i64: 896, 512>}, {pipeline_mode = #tpu.pipeline_mode<synchronous>, transform_indices = @transform_2, window_bounds = array<i64: 1, 512>}, {pipeline_mode = #tpu.pipeline_mode<synchronous>, transform_indices = @transform_3, window_bounds = array<i64: 512, 512>}, {pipeline_mode = #tpu.pipeline_mode<synchronous>, transform_indices = @transform_4, window_bounds = array<i64: 1, 512>}, {pipeline_mode = #tpu.pipeline_mode<synchronous>, transform_indices = @transform_5, window_bounds = array<i64: 512, 128>}, {pipeline_mode = #tpu.pipeline_mode<synchronous>, transform_indices = @transform_6, window_bounds = array<i64: 1, 128>}, {transform_indices = @transform_7, window_bounds = array<i64: 8, 128>}]} {
    %c0 = arith.constant 0 : index
    %c0_0 = arith.constant 0 : index
    %0 = vector.load %arg1[%c0, %c0_0] : memref<8x896xf32, #tpu.memory_space<vmem>>, vector<8x896xf32>
    %c0_1 = arith.constant 0 : index
    %c0_2 = arith.constant 0 : index
    %1 = vector.load %arg2[%c0_1, %c0_2] : memref<896x512xf32, #tpu.memory_space<vmem>>, vector<896x512xf32>
    %cst = arith.constant dense<0.000000e+00> : vector<8x512xf32>
    %2 = tpu.matmul %0, %1, %cst {dimension_numbers = #tpu.dot_dimension_numbers<[1], [0], [0], [1], [0, 0, 1, 1], [], []>} : vector<8x896xf32>, vector<896x512xf32>, vector<8x512xf32> -> vector<8x512xf32>
    %c0_3 = arith.constant 0 : index
    %c0_4 = arith.constant 0 : index
    %3 = vector.load %arg3[%c0_3, %c0_4] : memref<1x512xf32, #tpu.memory_space<vmem>>, vector<1x512xf32>
    %4 = vector.broadcast %3 : vector<1x512xf32> to vector<8x512xf32>
    %5 = arith.addf %2, %4 : vector<8x512xf32>
    %cst_5 = arith.constant 0.000000e+00 : f32
    %6 = vector.broadcast %cst_5 : f32 to vector<8x512xf32>
    %7 = arith.maximumf %5, %6 : vector<8x512xf32>
    %c0_6 = arith.constant 0 : index
    %c0_7 = arith.constant 0 : index
    %8 = vector.load %arg4[%c0_6, %c0_7] : memref<512x512xf32, #tpu.memory_space<vmem>>, vector<512x512xf32>
    %cst_8 = arith.constant dense<0.000000e+00> : vector<8x512xf32>
    %9 = tpu.matmul %7, %8, %cst_8 {dimension_numbers = #tpu.dot_dimension_numbers<[1], [0], [0], [1], [0, 0, 1, 1], [], []>} : vector<8x512xf32>, vector<512x512xf32>, vector<8x512xf32> -> vector<8x512xf32>
    %c0_9 = arith.constant 0 : index
    %c0_10 = arith.constant 0 : index
    %10 = vector.load %arg5[%c0_9, %c0_10] : memref<1x512xf32, #tpu.memory_space<vmem>>, vector<1x512xf32>
    %11 = vector.broadcast %10 : vector<1x512xf32> to vector<8x512xf32>
    %12 = arith.addf %9, %11 : vector<8x512xf32>
    %cst_11 = arith.constant 0.000000e+00 : f32
    %13 = vector.broadcast %cst_11 : f32 to vector<8x512xf32>
    %14 = arith.maximumf %12, %13 : vector<8x512xf32>
    %c0_12 = arith.constant 0 : index
    %c0_13 = arith.constant 0 : index
    %15 = vector.load %arg6[%c0_12, %c0_13] : memref<512x128xf32, #tpu.memory_space<vmem>>, vector<512x128xf32>
    %cst_14 = arith.constant dense<0.000000e+00> : vector<8x128xf32>
    %16 = tpu.matmul %14, %15, %cst_14 {dimension_numbers = #tpu.dot_dimension_numbers<[1], [0], [0], [1], [0, 0, 1, 1], [], []>} : vector<8x512xf32>, vector<512x128xf32>, vector<8x128xf32> -> vector<8x128xf32>
    %c0_15 = arith.constant 0 : index
    %c0_16 = arith.constant 0 : index
    %17 = vector.load %arg7[%c0_15, %c0_16] : memref<1x128xf32, #tpu.memory_space<vmem>>, vector<1x128xf32>
    %18 = vector.broadcast %17 : vector<1x128xf32> to vector<8x128xf32>
    %19 = arith.addf %16, %18 : vector<8x128xf32>
    %c0_17 = arith.constant 0 : index
    %c0_18 = arith.constant 0 : index
    %20 = vector.load %arg8[%c0_17, %c0_18] : memref<8x128xf32, #tpu.memory_space<vmem>>, vector<8x128xf32>
    tpu.vector_store %arg8[%c0_17, %c0_18], %19 {strides = array<i32>} : memref<8x128xf32, #tpu.memory_space<vmem>>, vector<8x128xf32>,
    return
  }
  func.func @transform_0(%arg0: i32) -> (i32, i32) {
    %c0_i32 = arith.constant 0 : i32
    %c0_i32_0 = arith.constant 0 : i32
    return %arg0, %c0_i32 : i32, i32
  }
  func.func @transform_1(%arg0: i32) -> (i32, i32) {
    %c0_i32 = arith.constant 0 : i32
    %c0_i32_0 = arith.constant 0 : i32
    %c0_i32_1 = arith.constant 0 : i32
    return %c0_i32, %c0_i32_0 : i32, i32
  }
  func.func @transform_2(%arg0: i32) -> (i32, i32) {
    %c0_i32 = arith.constant 0 : i32
    %c0_i32_0 = arith.constant 0 : i32
    %c0_i32_1 = arith.constant 0 : i32
    return %c0_i32, %c0_i32_0 : i32, i32
  }
  func.func @transform_3(%arg0: i32) -> (i32, i32) {
    %c0_i32 = arith.constant 0 : i32
    %c0_i32_0 = arith.constant 0 : i32
    %c0_i32_1 = arith.constant 0 : i32
    return %c0_i32, %c0_i32_0 : i32, i32
  }
  func.func @transform_4(%arg0: i32) -> (i32, i32) {
    %c0_i32 = arith.constant 0 : i32
    %c0_i32_0 = arith.constant 0 : i32
    %c0_i32_1 = arith.constant 0 : i32
    return %c0_i32, %c0_i32_0 : i32, i32
  }
  func.func @transform_5(%arg0: i32) -> (i32, i32) {
    %c0_i32 = arith.constant 0 : i32
    %c0_i32_0 = arith.constant 0 : i32
    %c0_i32_1 = arith.constant 0 : i32
    return %c0_i32, %c0_i32_0 : i32, i32
  }
  func.func @transform_6(%arg0: i32) -> (i32, i32) {
    %c0_i32 = arith.constant 0 : i32
    %c0_i32_0 = arith.constant 0 : i32
    %c0_i32_1 = arith.constant 0 : i32
    return %c0_i32, %c0_i32_0 : i32, i32
  }
  func.func @transform_7(%arg0: i32) -> (i32, i32) {
    %c0_i32 = arith.constant 0 : i32
    %c0_i32_0 = arith.constant 0 : i32
    return %arg0, %c0_i32 : i32, i32
  }
}

module attributes {stable_mosaic.version = 11 : i64} {
  func.func @mlp_kernel(%arg0: i32, %arg1: memref<8x896xf32, #tpu.memory_space<vmem>>, %arg2: memref<896x512xf32, #tpu.memory_space<vmem>>, %arg3: memref<1x512xf32, #tpu.memory_space<vmem>>, %arg4: memref<512x512xf32, #tpu.memory_space<vmem>>, %arg5: memref<1x512xf32, #tpu.memory_space<vmem>>, %arg6: memref<512x128xf32, #tpu.memory_space<vmem>>, %arg7: memref<1x128xf32, #tpu.memory_space<vmem>>, %arg8: memref<8x128xf32, #tpu.memory_space<vmem>>) attributes {dimension_semantics = [#tpu.dimension_semantics<parallel>], iteration_bounds = array<i64: 1>, scalar_prefetch = 0 : i64, scratch_operands = 0 : i64, tpu.core_type = #tpu.core_type<tc>, window_params = [{transform_indices = @transform_0, window_bounds = array<i64: 8, 896>}, {pipeline_mode = #tpu.pipeline_mode<synchronous>, transform_indices = @transform_1, window_bounds = array<i64: 896, 512>}, {pipeline_mode = #tpu.pipeline_mode<synchronous>, transform_indices = @transform_2, window_bounds = array<i64: 1, 512>}, {pipeline_mode = #tpu.pipeline_mode<synchronous>, transform_indices = @transform_3, window_bounds = array<i64: 512, 512>}, {pipeline_mode = #tpu.pipeline_mode<synchronous>, transform_indices = @transform_4, window_bounds = array<i64: 1, 512>}, {pipeline_mode = #tpu.pipeline_mode<synchronous>, transform_indices = @transform_5, window_bounds = array<i64: 512, 128>}, {pipeline_mode = #tpu.pipeline_mode<synchronous>, transform_indices = @transform_6, window_bounds = array<i64: 1, 128>}, {transform_indices = @transform_7, window_bounds = array<i64: 8, 128>}]} {
    %c0 = arith.constant 0 : index
    %c0_0 = arith.constant 0 : index
    %0 = vector.load %arg1[%c0, %c0_0] : memref<8x896xf32, #tpu.memory_space<vmem>>, vector<8x896xf32>
    %c0_1 = arith.constant 0 : index
    %c0_2 = arith.constant 0 : index
    %1 = vector.load %arg2[%c0_1, %c0_2] : memref<896x512xf32, #tpu.memory_space<vmem>>, vector<896x512xf32>
    %cst = arith.constant dense<0.000000e+00> : vector<8x512xf32>
    %2 = tpu.matmul %0, %1, %cst {dimension_numbers = #tpu.dot_dimension_numbers<[1], [0], [0], [1], [0, 0, 1, 1], [], []>} : vector<8x896xf32>, vector<896x512xf32>, vector<8x512xf32> -> vector<8x512xf32>
    %c0_3 = arith.constant 0 : index
    %c0_4 = arith.constant 0 : index
    %3 = vector.load %arg3[%c0_3, %c0_4] : memref<1x512xf32, #tpu.memory_space<vmem>>, vector<1x512xf32>
    %4 = vector.broadcast %3 : vector<1x512xf32> to vector<8x512xf32>
    %5 = arith.addf %2, %4 : vector<8x512xf32>
    %cst_5 = arith.constant 0.000000e+00 : f32
    %6 = vector.broadcast %cst_5 : f32 to vector<8x512xf32>
    %7 = arith.maximumf %5, %6 : vector<8x512xf32>
    %c0_6 = arith.constant 0 : index
    %c0_7 = arith.constant 0 : index
    %8 = vector.load %arg4[%c0_6, %c0_7] : memref<512x512xf32, #tpu.memory_space<vmem>>, vector<512x512xf32>
    %cst_8 = arith.constant dense<0.000000e+00> : vector<8x512xf32>
    %9 = tpu.matmul %7, %8, %cst_8 {dimension_numbers = #tpu.dot_dimension_numbers<[1], [0], [0], [1], [0, 0, 1, 1], [], []>} : vector<8x512xf32>, vector<512x512xf32>, vector<8x512xf32> -> vector<8x512xf32>
    %c0_9 = arith.constant 0 : index
    %c0_10 = arith.constant 0 : index
    %10 = vector.load %arg5[%c0_9, %c0_10] : memref<1x512xf32, #tpu.memory_space<vmem>>, vector<1x512xf32>
    %11 = vector.broadcast %10 : vector<1x512xf32> to vector<8x512xf32>
    %12 = arith.addf %9, %11 : vector<8x512xf32>
    %cst_11 = arith.constant 0.000000e+00 : f32
    %13 = vector.broadcast %cst_11 : f32 to vector<8x512xf32>
    %14 = arith.maximumf %12, %13 : vector<8x512xf32>
    %c0_12 = arith.constant 0 : index
    %c0_13 = arith.constant 0 : index
    %15 = vector.load %arg6[%c0_12, %c0_13] : memref<512x128xf32, #tpu.memory_space<vmem>>, vector<512x128xf32>
    %cst_14 = arith.constant dense<0.000000e+00> : vector<8x128xf32>
    %16 = tpu.matmul %14, %15, %cst_14 {dimension_numbers = #tpu.dot_dimension_numbers<[1], [0], [0], [1], [0, 0, 1, 1], [], []>} : vector<8x512xf32>, vector<512x128xf32>, vector<8x128xf32> -> vector<8x128xf32>
    %c0_15 = arith.constant 0 : index
    %c0_16 = arith.constant 0 : index
    %17 = vector.load %arg7[%c0_15, %c0_16] : memref<1x128xf32, #tpu.memory_space<vmem>>, vector<1x128xf32>
    %18 = vector.broadcast %17 : vector<1x128xf32> to vector<8x128xf32>
    %19 = arith.addf %16, %18 : vector<8x128xf32>
    %c0_17 = arith.constant 0 : index
    %c0_18 = arith.constant 0 : index
    %20 = vector.load %arg8[%c0_17, %c0_18] : memref<8x128xf32, #tpu.memory_space<vmem>>, vector<8x128xf32>
    tpu.vector_store %arg8[%c0_17, %c0_18], %19 {strides = array<i32>} : memref<8x128xf32, #tpu.memory_space<vmem>>, vector<8x128xf32>,
    return
  }
  func.func @transform_0(%arg0: i32) -> (i32, i32) {
    %c0_i32 = arith.constant 0 : i32
    %c0_i32_0 = arith.constant 0 : i32
    return %arg0, %c0_i32 : i32, i32
  }
  func.func @transform_1(%arg0: i32) -> (i32, i32) {
    %c0_i32 = arith.constant 0 : i32
    %c0_i32_0 = arith.constant 0 : i32
    %c0_i32_1 = arith.constant 0 : i32
    return %c0_i32, %c0_i32_0 : i32, i32
  }
  func.func @transform_2(%arg0: i32) -> (i32, i32) {
    %c0_i32 = arith.constant 0 : i32
    %c0_i32_0 = arith.constant 0 : i32
    %c0_i32_1 = arith.constant 0 : i32
    return %c0_i32, %c0_i32_0 : i32, i32
  }
  func.func @transform_3(%arg0: i32) -> (i32, i32) {
    %c0_i32 = arith.constant 0 : i32
    %c0_i32_0 = arith.constant 0 : i32
    %c0_i32_1 = arith.constant 0 : i32
    return %c0_i32, %c0_i32_0 : i32, i32
  }
  func.func @transform_4(%arg0: i32) -> (i32, i32) {
    %c0_i32 = arith.constant 0 : i32
    %c0_i32_0 = arith.constant 0 : i32
    %c0_i32_1 = arith.constant 0 : i32
    return %c0_i32, %c0_i32_0 : i32, i32
  }
  func.func @transform_5(%arg0: i32) -> (i32, i32) {
    %c0_i32 = arith.constant 0 : i32
    %c0_i32_0 = arith.constant 0 : i32
    %c0_i32_1 = arith.constant 0 : i32
    return %c0_i32, %c0_i32_0 : i32, i32
  }
  func.func @transform_6(%arg0: i32) -> (i32, i32) {
    %c0_i32 = arith.constant 0 : i32
    %c0_i32_0 = arith.constant 0 : i32
    %c0_i32_1 = arith.constant 0 : i32
    return %c0_i32, %c0_i32_0 : i32, i32
  }
  func.func @transform_7(%arg0: i32) -> (i32, i32) {
    %c0_i32 = arith.constant 0 : i32
    %c0_i32_0 = arith.constant 0 : i32
    return %arg0, %c0_i32 : i32, i32
  }
}

</mosaic_0001>

<llo_original>
// kernel: tpu_custom_call.1
$region0: #{tpu_custom_call.1}
  #allocation0 [shape = 'u32[]', space=smem, size = 0x4, offset = 0x4, fixed_abs, tag = 'smem constant byte address 0x4 - core index']
  #allocation1 [shape = 'u32[72,128]{1,0:T(1,128)}', space=vmem, size = 0x9000, scoped, tag = 'internal scratch']
  %s0 = inlined_call_operand.hbm [shape: f32[8,896], index: 0, kind: input, shape index: {}]
  %s1 = inlined_call_operand.hbm [shape: f32[896,512], index: 1, kind: input, shape index: {}]
  %s2 = inlined_call_operand.hbm [shape: f32[1,512], index: 2, kind: input, shape index: {}]
  %s3 = inlined_call_operand.hbm [shape: f32[512,512], index: 3, kind: input, shape index: {}]
  %s4 = inlined_call_operand.hbm [shape: f32[1,512], index: 4, kind: input, shape index: {}]
  %s5 = inlined_call_operand.hbm [shape: f32[512,128], index: 5, kind: input, shape index: {}]
  %s6 = inlined_call_operand.hbm [shape: f32[1,128], index: 6, kind: input, shape index: {}]
  %s7 = inlined_call_operand.hbm [shape: f32[8,128], index: 7, kind: output, shape index: {}]
  %s8 = sld [smem:[#allocation0]]
  $region66: #{tpu_custom_call.1} parent=0
    _
  %s10 = ssub.s32 1, %s8
  %s11 = scalar_select 0, %s10, %s8
  $region1: #{tpu_custom_call.1} parent=0
    #allocation2 [shape = 'u8[28672]{0}', space=vmem, size = 0x7000, scoped, tag = 'input window, operand 0, single buffered']
    #allocation3 [shape = 's32[1]{0}', space=sflag, size = 0x4, scoped, tag = 'scoped memory for tpu_custom_call.1']
    #allocation4 [shape = 's32[1]{0}', space=sflag, size = 0x4, scoped, tag = 'scoped memory for tpu_custom_call.1']
    #allocation5 [shape = 'u8[1835008]{0}', space=vmem, size = 0x1c0000, scoped, tag = 'input window, operand 1, single buffered']
    #allocation6 [shape = 's32[1]{0}', space=sflag, size = 0x4, scoped, tag = 'scoped memory for tpu_custom_call.1']
    #allocation7 [shape = 'u8[2048]{0}', space=vmem, size = 0x800, scoped, tag = 'input window, operand 2, single buffered']
    #allocation8 [shape = 'u8[1048576]{0}', space=vmem, size = 0x100000, scoped, tag = 'input window, operand 3, single buffered']
    #allocation9 [shape = 's32[1]{0}', space=sflag, size = 0x4, scoped, tag = 'scoped memory for tpu_custom_call.1']
    #allocation10 [shape = 'u8[2048]{0}', space=vmem, size = 0x800, scoped, tag = 'input window, operand 4, single buffered']
    #allocation11 [shape = 'u8[262144]{0}', space=vmem, size = 0x40000, scoped, tag = 'input window, operand 5, single buffered']
    #allocation12 [shape = 's32[1]{0}', space=sflag, size = 0x4, scoped, tag = 'scoped memory for tpu_custom_call.1']
    #allocation13 [shape = 'u8[512]{0}', space=vmem, size = 0x400, scoped, tag = 'input window, operand 6, single buffered']
    #allocation14 [shape = 'u8[4096]{0}', space=vmem, size = 0x1000, scoped, tag = 'output window, operand 0, single buffered']
    %12 = vsyncpa [#allocation3], 0
    %13 = vsyncpa [#allocation6], 0
    %14 = vsyncpa [#allocation9], 0
    %15 = vsyncpa [#allocation12], 0
    %16 = vsyncpa [#allocation4], 0
    // Predicated region
    $region2: #{tpu_custom_call.1} parent=1 // pred_check
      _
    $region3: #{tpu_custom_call.1} parent=1 // pred_check_branch
      %18 = sbr.rel (0) target = $region5
    $region4: #{tpu_custom_call.1} parent=1 // pred_region
      %20 = vsyncadd [#allocation3], 0
      %s22 = sshll.u32 %s0, 4
      %s23 = int_to_ptr.hbm [resolvable:$true] %s22
      %s24 = sshll.u32 [#allocation2], 4
      %s25 = int_to_ptr.vmem [resolvable:$true] %s24
      %27 = dma.hbm_to_vmem [thread:$0]  %s23, 896, %s25, [#allocation3]
    $region5: #{tpu_custom_call.1} parent=1 // pred_fallthru
      _
    // Predicated region
    $region6: #{tpu_custom_call.1} parent=1 // pred_check
      _
    $region7: #{tpu_custom_call.1} parent=1 // pred_check_branch
      %29 = sbr.rel (0) target = $region9
    $region8: #{tpu_custom_call.1} parent=1 // pred_region
      %31 = vsyncadd [#allocation6], 0
      %s32 = sshll.u32 %s1, 4
      %s33 = int_to_ptr.hbm [resolvable:$true] %s32
      %s34 = sshll.u32 [#allocation5], 4
      %s35 = int_to_ptr.vmem [resolvable:$true] %s34
      %40 = dma.hbm_to_vmem [thread:$0]  %s33, 57344, %s35, [#allocation6], 512, 512, 32
    $region9: #{tpu_custom_call.1} parent=1 // pred_fallthru
      _
    // Predicated region
    $region10: #{tpu_custom_call.1} parent=1 // pred_check
      _
    $region11: #{tpu_custom_call.1} parent=1 // pred_check_branch
      %42 = sbr.rel (0) target = $region13
    $region12: #{tpu_custom_call.1} parent=1 // pred_region
      %44 = vsyncadd [#allocation6], 0
      %s46 = sshll.u32 %s2, 4
      %s47 = int_to_ptr.hbm [resolvable:$true] %s46
      %s48 = sshll.u32 [#allocation7], 4
      %s49 = int_to_ptr.vmem [resolvable:$true] %s48
      %51 = dma.hbm_to_vmem [thread:$0]  %s47, 64, %s49, [#allocation6]
    $region13: #{tpu_custom_call.1} parent=1 // pred_fallthru
      _
    // Predicated region
    $region14: #{tpu_custom_call.1} parent=1 // pred_check
      _
    $region15: #{tpu_custom_call.1} parent=1 // pred_check_branch
      %53 = sbr.rel (0) target = $region17
    $region16: #{tpu_custom_call.1} parent=1 // pred_region
      %55 = vsyncadd [#allocation9], 0
      %s56 = sshll.u32 %s3, 4
      %s57 = int_to_ptr.hbm [resolvable:$true] %s56
      %s58 = sshll.u32 [#allocation8], 4
      %s59 = int_to_ptr.vmem [resolvable:$true] %s58
      %64 = dma.hbm_to_vmem [thread:$0]  %s57, 32768, %s59, [#allocation9], 512, 512, 32
    $region17: #{tpu_custom_call.1} parent=1 // pred_fallthru
      _
    // Predicated region
    $region18: #{tpu_custom_call.1} parent=1 // pred_check
      _
    $region19: #{tpu_custom_call.1} parent=1 // pred_check_branch
      %66 = sbr.rel (0) target = $region21
    $region20: #{tpu_custom_call.1} parent=1 // pred_region
      %68 = vsyncadd [#allocation9], 0
      %s70 = sshll.u32 %s4, 4
      %s71 = int_to_ptr.hbm [resolvable:$true] %s70
      %s72 = sshll.u32 [#allocation10], 4
      %s73 = int_to_ptr.vmem [resolvable:$true] %s72
      %75 = dma.hbm_to_vmem [thread:$0]  %s71, 64, %s73, [#allocation9]
    $region21: #{tpu_custom_call.1} parent=1 // pred_fallthru
      _
    // Predicated region
    $region22: #{tpu_custom_call.1} parent=1 // pred_check
      _
    $region23: #{tpu_custom_call.1} parent=1 // pred_check_branch
      %77 = sbr.rel (0) target = $region25
    $region24: #{tpu_custom_call.1} parent=1 // pred_region
      %79 = vsyncadd [#allocation12], 0
      %s80 = sshll.u32 %s5, 4
      %s81 = int_to_ptr.hbm [resolvable:$true] %s80
      %s82 = sshll.u32 [#allocation11], 4
      %s83 = int_to_ptr.vmem [resolvable:$true] %s82
      %88 = dma.hbm_to_vmem [thread:$0]  %s81, 8192, %s83, [#allocation12], 128, 128, 8
    $region25: #{tpu_custom_call.1} parent=1 // pred_fallthru
      _
    // Predicated region
    $region26: #{tpu_custom_call.1} parent=1 // pred_check
      _
    $region27: #{tpu_custom_call.1} parent=1 // pred_check_branch
      %90 = sbr.rel (0) target = $region29
    $region28: #{tpu_custom_call.1} parent=1 // pred_region
      %92 = vsyncadd [#allocation12], 0
      %s94 = sshll.u32 %s6, 4
      %s95 = int_to_ptr.hbm [resolvable:$true] %s94
      %s96 = sshll.u32 [#allocation13], 4
      %s97 = int_to_ptr.vmem [resolvable:$true] %s96
      %99 = dma.hbm_to_vmem [thread:$0]  %s95, 16, %s97, [#allocation12]
    $region29: #{tpu_custom_call.1} parent=1 // pred_fallthru
      _
    // Predicated region
    $region30: #{tpu_custom_call.1} parent=1 // pred_check
      _
    $region31: #{tpu_custom_call.1} parent=1 // pred_check_branch
      %101 = sbr.rel (0) target = $region33
    $region32: #{tpu_custom_call.1} parent=1 // pred_region
      %103 = dma.done [#allocation3], 896
    $region33: #{tpu_custom_call.1} parent=1 // pred_fallthru
      _
    // Predicated region
    $region34: #{tpu_custom_call.1} parent=1 // pred_check
      _
    $region35: #{tpu_custom_call.1} parent=1 // pred_check_branch
      %105 = sbr.rel (0) target = $region37
    $region36: #{tpu_custom_call.1} parent=1 // pred_region
      %107 = dma.done [#allocation6], 57344
    $region37: #{tpu_custom_call.1} parent=1 // pred_fallthru
      _
    // Predicated region
    $region38: #{tpu_custom_call.1} parent=1 // pred_check
      _
    $region39: #{tpu_custom_call.1} parent=1 // pred_check_branch
      %109 = sbr.rel (0) target = $region41
    $region40: #{tpu_custom_call.1} parent=1 // pred_region
      %111 = dma.done [#allocation6], 64
    $region41: #{tpu_custom_call.1} parent=1 // pred_fallthru
      _
    // Predicated region
    $region42: #{tpu_custom_call.1} parent=1 // pred_check
      _
    $region43: #{tpu_custom_call.1} parent=1 // pred_check_branch
      %113 = sbr.rel (0) target = $region45
    $region44: #{tpu_custom_call.1} parent=1 // pred_region
      %115 = dma.done [#allocation9], 32768
    $region45: #{tpu_custom_call.1} parent=1 // pred_fallthru
      _
    // Predicated region
    $region46: #{tpu_custom_call.1} parent=1 // pred_check
      _
    $region47: #{tpu_custom_call.1} parent=1 // pred_check_branch
      %117 = sbr.rel (0) target = $region49
    $region48: #{tpu_custom_call.1} parent=1 // pred_region
      %119 = dma.done [#allocation9], 64
    $region49: #{tpu_custom_call.1} parent=1 // pred_fallthru
      _
    // Predicated region
    $region50: #{tpu_custom_call.1} parent=1 // pred_check
      _
    $region51: #{tpu_custom_call.1} parent=1 // pred_check_branch
      %121 = sbr.rel (0) target = $region53
    $region52: #{tpu_custom_call.1} parent=1 // pred_region
      %123 = dma.done [#allocation12], 8192
    $region53: #{tpu_custom_call.1} parent=1 // pred_fallthru
      _
    // Predicated region
    $region54: #{tpu_custom_call.1} parent=1 // pred_check
      _
    $region55: #{tpu_custom_call.1} parent=1 // pred_check_branch
      %125 = sbr.rel (0) target = $region57
    $region56: #{tpu_custom_call.1} parent=1 // pred_region
      %127 = dma.done [#allocation12], 16
    $region57: #{tpu_custom_call.1} parent=1 // pred_fallthru
      _
    %v128 = vld [vmem:[#allocation2] sm:$0xff]
    %v129 = vld [vmem:[#allocation2 + $0x8] sm:$0xff]
    %v130 = vld [vmem:[#allocation2 + $0x10] sm:$0xff]
    %v131 = vld [vmem:[#allocation2 + $0x18] sm:$0xff]
    %v132 = vld [vmem:[#allocation2 + $0x20] sm:$0xff]
    %v133 = vld [vmem:[#allocation2 + $0x28] sm:$0xff]
    %v134 = vld [vmem:[#allocation2 + $0x30] sm:$0xff]
    %v135 = vld [vmem:[#allocation5] sm:$0xff]
    %v136 = vld [vmem:[#allocation5 + $0x8] sm:$0xff]
    %v137 = vld [vmem:[#allocation5 + $0x10] sm:$0xff]
    %v138 = vld [vmem:[#allocation5 + $0x18] sm:$0xff]
    %v139 = vld [vmem:[#allocation5 + $0x20] sm:$0xff]
    %v140 = vld [vmem:[#allocation5 + $0x28] sm:$0xff]
    %v141 = vld [vmem:[#allocation5 + $0x30] sm:$0xff]
    %v142 = vld [vmem:[#allocation5 + $0x38] sm:$0xff]
    %v143 = vld [vmem:[#allocation5 + $0x40] sm:$0xff]
    %v144 = vld [vmem:[#allocation5 + $0x48] sm:$0xff]
    %v145 = vld [vmem:[#allocation5 + $0x50] sm:$0xff]
    %v146 = vld [vmem:[#allocation5 + $0x58] sm:$0xff]
    %v147 = vld [vmem:[#allocation5 + $0x60] sm:$0xff]
    %v148 = vld [vmem:[#allocation5 + $0x68] sm:$0xff]
    %v149 = vld [vmem:[#allocation5 + $0x70] sm:$0xff]
    %v150 = vld [vmem:[#allocation5 + $0x78] sm:$0xff]
    %v151 = vld [vmem:[#allocation5 + $0x80] sm:$0xff]
    %v152 = vld [vmem:[#allocation5 + $0x88] sm:$0xff]
    %v153 = vld [vmem:[#allocation5 + $0x90] sm:$0xff]
    %v154 = vld [vmem:[#allocation5 + $0x98] sm:$0xff]
    %v155 = vld [vmem:[#allocation5 + $0xa0] sm:$0xff]
    %v156 = vld [vmem:[#allocation5 + $0xa8] sm:$0xff]
    %v157 = vld [vmem:[#allocation5 + $0xb0] sm:$0xff]
    %v158 = vld [vmem:[#allocation5 + $0xb8] sm:$0xff]
    %v159 = vld [vmem:[#allocation5 + $0xc0] sm:$0xff]
    %v160 = vld [vmem:[#allocation5 + $0xc8] sm:$0xff]
    %v161 = vld [vmem:[#allocation5 + $0xd0] sm:$0xff]
    %v162 = vld [vmem:[#allocation5 + $0xd8] sm:$0xff]
    %v163 = vld [vmem:[#allocation5 + $0xe0] sm:$0xff]
    %v164 = vld [vmem:[#allocation5 + $0xe8] sm:$0xff]
    %v165 = vld [vmem:[#allocation5 + $0xf0] sm:$0xff]
    %v166 = vld [vmem:[#allocation5 + $0xf8] sm:$0xff]
    %v167 = vld [vmem:[#allocation5 + $0x100] sm:$0xff]
    %v168 = vld [vmem:[#allocation5 + $0x108] sm:$0xff]
    %v169 = vld [vmem:[#allocation5 + $0x110] sm:$0xff]
    %v170 = vld [vmem:[#allocation5 + $0x118] sm:$0xff]
    %v171 = vld [vmem:[#allocation5 + $0x120] sm:$0xff]
    %v172 = vld [vmem:[#allocation5 + $0x128] sm:$0xff]
    %v173 = vld [vmem:[#allocation5 + $0x130] sm:$0xff]
    %v174 = vld [vmem:[#allocation5 + $0x138] sm:$0xff]
    %v175 = vld [vmem:[#allocation5 + $0x140] sm:$0xff]
    %v176 = vld [vmem:[#allocation5 + $0x148] sm:$0xff]
    %v177 = vld [vmem:[#allocation5 + $0x150] sm:$0xff]
    %v178 = vld [vmem:[#allocation5 + $0x158] sm:$0xff]
    %v179 = vld [vmem:[#allocation5 + $0x160] sm:$0xff]
    %v180 = vld [vmem:[#allocation5 + $0x168] sm:$0xff]
    %v181 = vld [vmem:[#allocation5 + $0x170] sm:$0xff]
    %v182 = vld [vmem:[#allocation5 + $0x178] sm:$0xff]
    %v183 = vld [vmem:[#allocation5 + $0x180] sm:$0xff]
    %v184 = vld [vmem:[#allocation5 + $0x188] sm:$0xff]
    %v185 = vld [vmem:[#allocation5 + $0x190] sm:$0xff]
    %v186 = vld [vmem:[#allocation5 + $0x198] sm:$0xff]
    %v187 = vld [vmem:[#allocation5 + $0x1a0] sm:$0xff]
    %v188 = vld [vmem:[#allocation5 + $0x1a8] sm:$0xff]
    %v189 = vld [vmem:[#allocation5 + $0x1b0] sm:$0xff]
    %v190 = vld [vmem:[#allocation5 + $0x1b8] sm:$0xff]
    %v191 = vld [vmem:[#allocation5 + $0x1c0] sm:$0xff]
    %v192 = vld [vmem:[#allocation5 + $0x1c8] sm:$0xff]
    %v193 = vld [vmem:[#allocation5 + $0x1d0] sm:$0xff]
    %v194 = vld [vmem:[#allocation5 + $0x1d8] sm:$0xff]
    %v195 = vld [vmem:[#allocation5 + $0x1e0] sm:$0xff]
    %v196 = vld [vmem:[#allocation5 + $0x1e8] sm:$0xff]
    %v197 = vld [vmem:[#allocation5 + $0x1f0] sm:$0xff]
    %v198 = vld [vmem:[#allocation5 + $0x1f8] sm:$0xff]
    %v199 = vld [vmem:[#allocation5 + $0x200] sm:$0xff]
    %v200 = vld [vmem:[#allocation5 + $0x208] sm:$0xff]
    %v201 = vld [vmem:[#allocation5 + $0x210] sm:$0xff]
    %v202 = vld [vmem:[#allocation5 + $0x218] sm:$0xff]
    %v203 = vld [vmem:[#allocation5 + $0x220] sm:$0xff]
    %v204 = vld [vmem:[#allocation5 + $0x228] sm:$0xff]
    %v205 = vld [vmem:[#allocation5 + $0x230] sm:$0xff]
    %v206 = vld [vmem:[#allocation5 + $0x238] sm:$0xff]
    %v207 = vld [vmem:[#allocation5 + $0x240] sm:$0xff]
    %v208 = vld [vmem:[#allocation5 + $0x248] sm:$0xff]
    %v209 = vld [vmem:[#allocation5 + $0x250] sm:$0xff]
    %v210 = vld [vmem:[#allocation5 + $0x258] sm:$0xff]
    %v211 = vld [vmem:[#allocation5 + $0x260] sm:$0xff]
    %v212 = vld [vmem:[#allocation5 + $0x268] sm:$0xff]
    %v213 = vld [vmem:[#allocation5 + $0x270] sm:$0xff]
    %v214 = vld [vmem:[#allocation5 + $0x278] sm:$0xff]
    %v215 = vld [vmem:[#allocation5 + $0x280] sm:$0xff]
    %v216 = vld [vmem:[#allocation5 + $0x288] sm:$0xff]
    %v217 = vld [vmem:[#allocation5 + $0x290] sm:$0xff]
    %v218 = vld [vmem:[#allocation5 + $0x298] sm:$0xff]
    %v219 = vld [vmem:[#allocation5 + $0x2a0] sm:$0xff]
    %v220 = vld [vmem:[#allocation5 + $0x2a8] sm:$0xff]
    %v221 = vld [vmem:[#allocation5 + $0x2b0] sm:$0xff]
    %v222 = vld [vmem:[#allocation5 + $0x2b8] sm:$0xff]
    %v223 = vld [vmem:[#allocation5 + $0x2c0] sm:$0xff]
    %v224 = vld [vmem:[#allocation5 + $0x2c8] sm:$0xff]
    %v225 = vld [vmem:[#allocation5 + $0x2d0] sm:$0xff]
    %v226 = vld [vmem:[#allocation5 + $0x2d8] sm:$0xff]
    %v227 = vld [vmem:[#allocation5 + $0x2e0] sm:$0xff]
    %v228 = vld [vmem:[#allocation5 + $0x2e8] sm:$0xff]
    %v229 = vld [vmem:[#allocation5 + $0x2f0] sm:$0xff]
    %v230 = vld [vmem:[#allocation5 + $0x2f8] sm:$0xff]
    %v231 = vld [vmem:[#allocation5 + $0x300] sm:$0xff]
    %v232 = vld [vmem:[#allocation5 + $0x308] sm:$0xff]
    %v233 = vld [vmem:[#allocation5 + $0x310] sm:$0xff]
    %v234 = vld [vmem:[#allocation5 + $0x318] sm:$0xff]
    %v235 = vld [vmem:[#allocation5 + $0x320] sm:$0xff]
    %v236 = vld [vmem:[#allocation5 + $0x328] sm:$0xff]
    %v237 = vld [vmem:[#allocation5 + $0x330] sm:$0xff]
    %v238 = vld [vmem:[#allocation5 + $0x338] sm:$0xff]
    %v239 = vld [vmem:[#allocation5 + $0x340] sm:$0xff]
    %v240 = vld [vmem:[#allocation5 + $0x348] sm:$0xff]
    %v241 = vld [vmem:[#allocation5 + $0x350] sm:$0xff]
    %v242 = vld [vmem:[#allocation5 + $0x358] sm:$0xff]
    %v243 = vld [vmem:[#allocation5 + $0x360] sm:$0xff]
    %v244 = vld [vmem:[#allocation5 + $0x368] sm:$0xff]
    %v245 = vld [vmem:[#allocation5 + $0x370] sm:$0xff]
    %v246 = vld [vmem:[#allocation5 + $0x378] sm:$0xff]
    %v247 = vld [vmem:[#allocation5 + $0x380] sm:$0xff]
    %v248 = vld [vmem:[#allocation5 + $0x388] sm:$0xff]
    %v249 = vld [vmem:[#allocation5 + $0x390] sm:$0xff]
    %v250 = vld [vmem:[#allocation5 + $0x398] sm:$0xff]
    %v251 = vld [vmem:[#allocation5 + $0x3a0] sm:$0xff]
    %v252 = vld [vmem:[#allocation5 + $0x3a8] sm:$0xff]
    %v253 = vld [vmem:[#allocation5 + $0x3b0] sm:$0xff]
    %v254 = vld [vmem:[#allocation5 + $0x3b8] sm:$0xff]
    %v255 = vld [vmem:[#allocation5 + $0x3c0] sm:$0xff]
    %v256 = vld [vmem:[#allocation5 + $0x3c8] sm:$0xff]
    %v257 = vld [vmem:[#allocation5 + $0x3d0] sm:$0xff]
    %v258 = vld [vmem:[#allocation5 + $0x3d8] sm:$0xff]
    %v259 = vld [vmem:[#allocation5 + $0x3e0] sm:$0xff]
    %v260 = vld [vmem:[#allocation5 + $0x3e8] sm:$0xff]
    %v261 = vld [vmem:[#allocation5 + $0x3f0] sm:$0xff]
    %v262 = vld [vmem:[#allocation5 + $0x3f8] sm:$0xff]
    %v263 = vld [vmem:[#allocation5 + $0x400] sm:$0xff]
    %v264 = vld [vmem:[#allocation5 + $0x408] sm:$0xff]
    %v265 = vld [vmem:[#allocation5 + $0x410] sm:$0xff]
    %v266 = vld [vmem:[#allocation5 + $0x418] sm:$0xff]
    %v267 = vld [vmem:[#allocation5 + $0x420] sm:$0xff]
    %v268 = vld [vmem:[#allocation5 + $0x428] sm:$0xff]
    %v269 = vld [vmem:[#allocation5 + $0x430] sm:$0xff]
    %v270 = vld [vmem:[#allocation5 + $0x438] sm:$0xff]
    %v271 = vld [vmem:[#allocation5 + $0x440] sm:$0xff]
    %v272 = vld [vmem:[#allocation5 + $0x448] sm:$0xff]
    %v273 = vld [vmem:[#allocation5 + $0x450] sm:$0xff]
    %v274 = vld [vmem:[#allocation5 + $0x458] sm:$0xff]
    %v275 = vld [vmem:[#allocation5 + $0x460] sm:$0xff]
    %v276 = vld [vmem:[#allocation5 + $0x468] sm:$0xff]
    %v277 = vld [vmem:[#allocation5 + $0x470] sm:$0xff]
    %v278 = vld [vmem:[#allocation5 + $0x478] sm:$0xff]
    %v279 = vld [vmem:[#allocation5 + $0x480] sm:$0xff]
    %v280 = vld [vmem:[#allocation5 + $0x488] sm:$0xff]
    %v281 = vld [vmem:[#allocation5 + $0x490] sm:$0xff]
    %v282 = vld [vmem:[#allocation5 + $0x498] sm:$0xff]
    %v283 = vld [vmem:[#allocation5 + $0x4a0] sm:$0xff]
    %v284 = vld [vmem:[#allocation5 + $0x4a8] sm:$0xff]
    %v285 = vld [vmem:[#allocation5 + $0x4b0] sm:$0xff]
    %v286 = vld [vmem:[#allocation5 + $0x4b8] sm:$0xff]
    %v287 = vld [vmem:[#allocation5 + $0x4c0] sm:$0xff]
    %v288 = vld [vmem:[#allocation5 + $0x4c8] sm:$0xff]
    %v289 = vld [vmem:[#allocation5 + $0x4d0] sm:$0xff]
    %v290 = vld [vmem:[#allocation5 + $0x4d8] sm:$0xff]
    %v291 = vld [vmem:[#allocation5 + $0x4e0] sm:$0xff]
    %v292 = vld [vmem:[#allocation5 + $0x4e8] sm:$0xff]
    %v293 = vld [vmem:[#allocation5 + $0x4f0] sm:$0xff]
    %v294 = vld [vmem:[#allocation5 + $0x4f8] sm:$0xff]
    %v295 = vld [vmem:[#allocation5 + $0x500] sm:$0xff]
    %v296 = vld [vmem:[#allocation5 + $0x508] sm:$0xff]
    %v297 = vld [vmem:[#allocation5 + $0x510] sm:$0xff]
    %v298 = vld [vmem:[#allocation5 + $0x518] sm:$0xff]
    %v299 = vld [vmem:[#allocation5 + $0x520] sm:$0xff]
    %v300 = vld [vmem:[#allocation5 + $0x528] sm:$0xff]
    %v301 = vld [vmem:[#allocation5 + $0x530] sm:$0xff]
    %v302 = vld [vmem:[#allocation5 + $0x538] sm:$0xff]
    %v303 = vld [vmem:[#allocation5 + $0x540] sm:$0xff]
    %v304 = vld [vmem:[#allocation5 + $0x548] sm:$0xff]
    %v305 = vld [vmem:[#allocation5 + $0x550] sm:$0xff]
    %v306 = vld [vmem:[#allocation5 + $0x558] sm:$0xff]
    %v307 = vld [vmem:[#allocation5 + $0x560] sm:$0xff]
    %v308 = vld [vmem:[#allocation5 + $0x568] sm:$0xff]
    %v309 = vld [vmem:[#allocation5 + $0x570] sm:$0xff]
    %v310 = vld [vmem:[#allocation5 + $0x578] sm:$0xff]
    %v311 = vld [vmem:[#allocation5 + $0x580] sm:$0xff]
    %v312 = vld [vmem:[#allocation5 + $0x588] sm:$0xff]
    %v313 = vld [vmem:[#allocation5 + $0x590] sm:$0xff]
    %v314 = vld [vmem:[#allocation5 + $0x598] sm:$0xff]
    %v315 = vld [vmem:[#allocation5 + $0x5a0] sm:$0xff]
    %v316 = vld [vmem:[#allocation5 + $0x5a8] sm:$0xff]
    %v317 = vld [vmem:[#allocation5 + $0x5b0] sm:$0xff]
    %v318 = vld [vmem:[#allocation5 + $0x5b8] sm:$0xff]
    %v319 = vld [vmem:[#allocation5 + $0x5c0] sm:$0xff]
    %v320 = vld [vmem:[#allocation5 + $0x5c8] sm:$0xff]
    %v321 = vld [vmem:[#allocation5 + $0x5d0] sm:$0xff]
    %v322 = vld [vmem:[#allocation5 + $0x5d8] sm:$0xff]
    %v323 = vld [vmem:[#allocation5 + $0x5e0] sm:$0xff]
    %v324 = vld [vmem:[#allocation5 + $0x5e8] sm:$0xff]
    %v325 = vld [vmem:[#allocation5 + $0x5f0] sm:$0xff]
    %v326 = vld [vmem:[#allocation5 + $0x5f8] sm:$0xff]
    %v327 = vld [vmem:[#allocation5 + $0x600] sm:$0xff]
    %v328 = vld [vmem:[#allocation5 + $0x608] sm:$0xff]
    %v329 = vld [vmem:[#allocation5 + $0x610] sm:$0xff]
    %v330 = vld [vmem:[#allocation5 + $0x618] sm:$0xff]
    %v331 = vld [vmem:[#allocation5 + $0x620] sm:$0xff]
    %v332 = vld [vmem:[#allocation5 + $0x628] sm:$0xff]
    %v333 = vld [vmem:[#allocation5 + $0x630] sm:$0xff]
    %v334 = vld [vmem:[#allocation5 + $0x638] sm:$0xff]
    %v335 = vld [vmem:[#allocation5 + $0x640] sm:$0xff]
    %v336 = vld [vmem:[#allocation5 + $0x648] sm:$0xff]
    %v337 = vld [vmem:[#allocation5 + $0x650] sm:$0xff]
    %v338 = vld [vmem:[#allocation5 + $0x658] sm:$0xff]
    %v339 = vld [vmem:[#allocation5 + $0x660] sm:$0xff]
    %v340 = vld [vmem:[#allocation5 + $0x668] sm:$0xff]
    %v341 = vld [vmem:[#allocation5 + $0x670] sm:$0xff]
    %v342 = vld [vmem:[#allocation5 + $0x678] sm:$0xff]
    %v343 = vld [vmem:[#allocation5 + $0x680] sm:$0xff]
    %v344 = vld [vmem:[#allocation5 + $0x688] sm:$0xff]
    %v345 = vld [vmem:[#allocation5 + $0x690] sm:$0xff]
    %v346 = vld [vmem:[#allocation5 + $0x698] sm:$0xff]
    %v347 = vld [vmem:[#allocation5 + $0x6a0] sm:$0xff]
    %v348 = vld [vmem:[#allocation5 + $0x6a8] sm:$0xff]
    %v349 = vld [vmem:[#allocation5 + $0x6b0] sm:$0xff]
    %v350 = vld [vmem:[#allocation5 + $0x6b8] sm:$0xff]
    %v351 = vld [vmem:[#allocation5 + $0x6c0] sm:$0xff]
    %v352 = vld [vmem:[#allocation5 + $0x6c8] sm:$0xff]
    %v353 = vld [vmem:[#allocation5 + $0x6d0] sm:$0xff]
    %v354 = vld [vmem:[#allocation5 + $0x6d8] sm:$0xff]
    %v355 = vld [vmem:[#allocation5 + $0x6e0] sm:$0xff]
    %v356 = vld [vmem:[#allocation5 + $0x6e8] sm:$0xff]
    %v357 = vld [vmem:[#allocation5 + $0x6f0] sm:$0xff]
    %v358 = vld [vmem:[#allocation5 + $0x6f8] sm:$0xff]
    %v359 = vld [vmem:[#allocation5 + $0x700] sm:$0xff]
    %v360 = vld [vmem:[#allocation5 + $0x708] sm:$0xff]
    %v361 = vld [vmem:[#allocation5 + $0x710] sm:$0xff]
    %v362 = vld [vmem:[#allocation5 + $0x718] sm:$0xff]
    %v363 = vld [vmem:[#allocation5 + $0x720] sm:$0xff]
    %v364 = vld [vmem:[#allocation5 + $0x728] sm:$0xff]
    %v365 = vld [vmem:[#allocation5 + $0x730] sm:$0xff]
    %v366 = vld [vmem:[#allocation5 + $0x738] sm:$0xff]
    %v367 = vld [vmem:[#allocation5 + $0x740] sm:$0xff]
    %v368 = vld [vmem:[#allocation5 + $0x748] sm:$0xff]
    %v369 = vld [vmem:[#allocation5 + $0x750] sm:$0xff]
    %v370 = vld [vmem:[#allocation5 + $0x758] sm:$0xff]
    %v371 = vld [vmem:[#allocation5 + $0x760] sm:$0xff]
    %v372 = vld [vmem:[#allocation5 + $0x768] sm:$0xff]
    %v373 = vld [vmem:[#allocation5 + $0x770] sm:$0xff]
    %v374 = vld [vmem:[#allocation5 + $0x778] sm:$0xff]
    %v375 = vld [vmem:[#allocation5 + $0x780] sm:$0xff]
    %v376 = vld [vmem:[#allocation5 + $0x788] sm:$0xff]
    %v377 = vld [vmem:[#allocation5 + $0x790] sm:$0xff]
    %v378 = vld [vmem:[#allocation5 + $0x798] sm:$0xff]
    %v379 = vld [vmem:[#allocation5 + $0x7a0] sm:$0xff]
    %v380 = vld [vmem:[#allocation5 + $0x7a8] sm:$0xff]
    %v381 = vld [vmem:[#allocation5 + $0x7b0] sm:$0xff]
    %v382 = vld [vmem:[#allocation5 + $0x7b8] sm:$0xff]
    %v383 = vld [vmem:[#allocation5 + $0x7c0] sm:$0xff]
    %v384 = vld [vmem:[#allocation5 + $0x7c8] sm:$0xff]
    %v385 = vld [vmem:[#allocation5 + $0x7d0] sm:$0xff]
    %v386 = vld [vmem:[#allocation5 + $0x7d8] sm:$0xff]
    %v387 = vld [vmem:[#allocation5 + $0x7e0] sm:$0xff]
    %v388 = vld [vmem:[#allocation5 + $0x7e8] sm:$0xff]
    %v389 = vld [vmem:[#allocation5 + $0x7f0] sm:$0xff]
    %v390 = vld [vmem:[#allocation5 + $0x7f8] sm:$0xff]
    %v391 = vld [vmem:[#allocation5 + $0x800] sm:$0xff]
    %v392 = vld [vmem:[#allocation5 + $0x808] sm:$0xff]
    %v393 = vld [vmem:[#allocation5 + $0x810] sm:$0xff]
    %v394 = vld [vmem:[#allocation5 + $0x818] sm:$0xff]
    %v395 = vld [vmem:[#allocation5 + $0x820] sm:$0xff]
    %v396 = vld [vmem:[#allocation5 + $0x828] sm:$0xff]
    %v397 = vld [vmem:[#allocation5 + $0x830] sm:$0xff]
    %v398 = vld [vmem:[#allocation5 + $0x838] sm:$0xff]
    %v399 = vld [vmem:[#allocation5 + $0x840] sm:$0xff]
    %v400 = vld [vmem:[#allocation5 + $0x848] sm:$0xff]
    %v401 = vld [vmem:[#allocation5 + $0x850] sm:$0xff]
    %v402 = vld [vmem:[#allocation5 + $0x858] sm:$0xff]
    %v403 = vld [vmem:[#allocation5 + $0x860] sm:$0xff]
    %v404 = vld [vmem:[#allocation5 + $0x868] sm:$0xff]
    %v405 = vld [vmem:[#allocation5 + $0x870] sm:$0xff]
    %v406 = vld [vmem:[#allocation5 + $0x878] sm:$0xff]
    %v407 = vld [vmem:[#allocation5 + $0x880] sm:$0xff]
    %v408 = vld [vmem:[#allocation5 + $0x888] sm:$0xff]
    %v409 = vld [vmem:[#allocation5 + $0x890] sm:$0xff]
    %v410 = vld [vmem:[#allocation5 + $0x898] sm:$0xff]
    %v411 = vld [vmem:[#allocation5 + $0x8a0] sm:$0xff]
    %v412 = vld [vmem:[#allocation5 + $0x8a8] sm:$0xff]
    %v413 = vld [vmem:[#allocation5 + $0x8b0] sm:$0xff]
    %v414 = vld [vmem:[#allocation5 + $0x8b8] sm:$0xff]
    %v415 = vld [vmem:[#allocation5 + $0x8c0] sm:$0xff]
    %v416 = vld [vmem:[#allocation5 + $0x8c8] sm:$0xff]
    %v417 = vld [vmem:[#allocation5 + $0x8d0] sm:$0xff]
    %v418 = vld [vmem:[#allocation5 + $0x8d8] sm:$0xff]
    %v419 = vld [vmem:[#allocation5 + $0x8e0] sm:$0xff]
    %v420 = vld [vmem:[#allocation5 + $0x8e8] sm:$0xff]
    %v421 = vld [vmem:[#allocation5 + $0x8f0] sm:$0xff]
    %v422 = vld [vmem:[#allocation5 + $0x8f8] sm:$0xff]
    %v423 = vld [vmem:[#allocation5 + $0x900] sm:$0xff]
    %v424 = vld [vmem:[#allocation5 + $0x908] sm:$0xff]
    %v425 = vld [vmem:[#allocation5 + $0x910] sm:$0xff]
    %v426 = vld [vmem:[#allocation5 + $0x918] sm:$0xff]
    %v427 = vld [vmem:[#allocation5 + $0x920] sm:$0xff]
    %v428 = vld [vmem:[#allocation5 + $0x928] sm:$0xff]
    %v429 = vld [vmem:[#allocation5 + $0x930] sm:$0xff]
    %v430 = vld [vmem:[#allocation5 + $0x938] sm:$0xff]
    %v431 = vld [vmem:[#allocation5 + $0x940] sm:$0xff]
    %v432 = vld [vmem:[#allocation5 + $0x948] sm:$0xff]
    %v433 = vld [vmem:[#allocation5 + $0x950] sm:$0xff]
    %v434 = vld [vmem:[#allocation5 + $0x958] sm:$0xff]
    %v435 = vld [vmem:[#allocation5 + $0x960] sm:$0xff]
    %v436 = vld [vmem:[#allocation5 + $0x968] sm:$0xff]
    %v437 = vld [vmem:[#allocation5 + $0x970] sm:$0xff]
    %v438 = vld [vmem:[#allocation5 + $0x978] sm:$0xff]
    %v439 = vld [vmem:[#allocation5 + $0x980] sm:$0xff]
    %v440 = vld [vmem:[#allocation5 + $0x988] sm:$0xff]
    %v441 = vld [vmem:[#allocation5 + $0x990] sm:$0xff]
    %v442 = vld [vmem:[#allocation5 + $0x998] sm:$0xff]
    %v443 = vld [vmem:[#allocation5 + $0x9a0] sm:$0xff]
    %v444 = vld [vmem:[#allocation5 + $0x9a8] sm:$0xff]
    %v445 = vld [vmem:[#allocation5 + $0x9b0] sm:$0xff]
    %v446 = vld [vmem:[#allocation5 + $0x9b8] sm:$0xff]
    %v447 = vld [vmem:[#allocation5 + $0x9c0] sm:$0xff]
    %v448 = vld [vmem:[#allocation5 + $0x9c8] sm:$0xff]
    %v449 = vld [vmem:[#allocation5 + $0x9d0] sm:$0xff]
    %v450 = vld [vmem:[#allocation5 + $0x9d8] sm:$0xff]
    %v451 = vld [vmem:[#allocation5 + $0x9e0] sm:$0xff]
    %v452 = vld [vmem:[#allocation5 + $0x9e8] sm:$0xff]
    %v453 = vld [vmem:[#allocation5 + $0x9f0] sm:$0xff]
    %v454 = vld [vmem:[#allocation5 + $0x9f8] sm:$0xff]
    %v455 = vld [vmem:[#allocation5 + $0xa00] sm:$0xff]
    %v456 = vld [vmem:[#allocation5 + $0xa08] sm:$0xff]
    %v457 = vld [vmem:[#allocation5 + $0xa10] sm:$0xff]
    %v458 = vld [vmem:[#allocation5 + $0xa18] sm:$0xff]
    %v459 = vld [vmem:[#allocation5 + $0xa20] sm:$0xff]
    %v460 = vld [vmem:[#allocation5 + $0xa28] sm:$0xff]
    %v461 = vld [vmem:[#allocation5 + $0xa30] sm:$0xff]
    %v462 = vld [vmem:[#allocation5 + $0xa38] sm:$0xff]
    %v463 = vld [vmem:[#allocation5 + $0xa40] sm:$0xff]
    %v464 = vld [vmem:[#allocation5 + $0xa48] sm:$0xff]
    %v465 = vld [vmem:[#allocation5 + $0xa50] sm:$0xff]
    %v466 = vld [vmem:[#allocation5 + $0xa58] sm:$0xff]
    %v467 = vld [vmem:[#allocation5 + $0xa60] sm:$0xff]
    %v468 = vld [vmem:[#allocation5 + $0xa68] sm:$0xff]
    %v469 = vld [vmem:[#allocation5 + $0xa70] sm:$0xff]
    %v470 = vld [vmem:[#allocation5 + $0xa78] sm:$0xff]
    %v471 = vld [vmem:[#allocation5 + $0xa80] sm:$0xff]
    %v472 = vld [vmem:[#allocation5 + $0xa88] sm:$0xff]
    %v473 = vld [vmem:[#allocation5 + $0xa90] sm:$0xff]
    %v474 = vld [vmem:[#allocation5 + $0xa98] sm:$0xff]
    %v475 = vld [vmem:[#allocation5 + $0xaa0] sm:$0xff]
    %v476 = vld [vmem:[#allocation5 + $0xaa8] sm:$0xff]
    %v477 = vld [vmem:[#allocation5 + $0xab0] sm:$0xff]
    %v478 = vld [vmem:[#allocation5 + $0xab8] sm:$0xff]
    %v479 = vld [vmem:[#allocation5 + $0xac0] sm:$0xff]
    %v480 = vld [vmem:[#allocation5 + $0xac8] sm:$0xff]
    %v481 = vld [vmem:[#allocation5 + $0xad0] sm:$0xff]
    %v482 = vld [vmem:[#allocation5 + $0xad8] sm:$0xff]
    %v483 = vld [vmem:[#allocation5 + $0xae0] sm:$0xff]
    %v484 = vld [vmem:[#allocation5 + $0xae8] sm:$0xff]
    %v485 = vld [vmem:[#allocation5 + $0xaf0] sm:$0xff]
    %v486 = vld [vmem:[#allocation5 + $0xaf8] sm:$0xff]
    %v487 = vld [vmem:[#allocation5 + $0xb00] sm:$0xff]
    %v488 = vld [vmem:[#allocation5 + $0xb08] sm:$0xff]
    %v489 = vld [vmem:[#allocation5 + $0xb10] sm:$0xff]
    %v490 = vld [vmem:[#allocation5 + $0xb18] sm:$0xff]
    %v491 = vld [vmem:[#allocation5 + $0xb20] sm:$0xff]
    %v492 = vld [vmem:[#allocation5 + $0xb28] sm:$0xff]
    %v493 = vld [vmem:[#allocation5 + $0xb30] sm:$0xff]
    %v494 = vld [vmem:[#allocation5 + $0xb38] sm:$0xff]
    %v495 = vld [vmem:[#allocation5 + $0xb40] sm:$0xff]
    %v496 = vld [vmem:[#allocation5 + $0xb48] sm:$0xff]
    %v497 = vld [vmem:[#allocation5 + $0xb50] sm:$0xff]
    %v498 = vld [vmem:[#allocation5 + $0xb58] sm:$0xff]
    %v499 = vld [vmem:[#allocation5 + $0xb60] sm:$0xff]
    %v500 = vld [vmem:[#allocation5 + $0xb68] sm:$0xff]
    %v501 = vld [vmem:[#allocation5 + $0xb70] sm:$0xff]
    %v502 = vld [vmem:[#allocation5 + $0xb78] sm:$0xff]
    %v503 = vld [vmem:[#allocation5 + $0xb80] sm:$0xff]
    %v504 = vld [vmem:[#allocation5 + $0xb88] sm:$0xff]
    %v505 = vld [vmem:[#allocation5 + $0xb90] sm:$0xff]
    %v506 = vld [vmem:[#allocation5 + $0xb98] sm:$0xff]
    %v507 = vld [vmem:[#allocation5 + $0xba0] sm:$0xff]
    %v508 = vld [vmem:[#allocation5 + $0xba8] sm:$0xff]
    %v509 = vld [vmem:[#allocation5 + $0xbb0] sm:$0xff]
    %v510 = vld [vmem:[#allocation5 + $0xbb8] sm:$0xff]
    %v511 = vld [vmem:[#allocation5 + $0xbc0] sm:$0xff]
    %v512 = vld [vmem:[#allocation5 + $0xbc8] sm:$0xff]
    %v513 = vld [vmem:[#allocation5 + $0xbd0] sm:$0xff]
    %v514 = vld [vmem:[#allocation5 + $0xbd8] sm:$0xff]
    %v515 = vld [vmem:[#allocation5 + $0xbe0] sm:$0xff]
    %v516 = vld [vmem:[#allocation5 + $0xbe8] sm:$0xff]
    %v517 = vld [vmem:[#allocation5 + $0xbf0] sm:$0xff]
    %v518 = vld [vmem:[#allocation5 + $0xbf8] sm:$0xff]
    %v519 = vld [vmem:[#allocation5 + $0xc00] sm:$0xff]
    %v520 = vld [vmem:[#allocation5 + $0xc08] sm:$0xff]
    %v521 = vld [vmem:[#allocation5 + $0xc10] sm:$0xff]
    %v522 = vld [vmem:[#allocation5 + $0xc18] sm:$0xff]
    %v523 = vld [vmem:[#allocation5 + $0xc20] sm:$0xff]
    %v524 = vld [vmem:[#allocation5 + $0xc28] sm:$0xff]
    %v525 = vld [vmem:[#allocation5 + $0xc30] sm:$0xff]
    %v526 = vld [vmem:[#allocation5 + $0xc38] sm:$0xff]
    %v527 = vld [vmem:[#allocation5 + $0xc40] sm:$0xff]
    %v528 = vld [vmem:[#allocation5 + $0xc48] sm:$0xff]
    %v529 = vld [vmem:[#allocation5 + $0xc50] sm:$0xff]
    %v530 = vld [vmem:[#allocation5 + $0xc58] sm:$0xff]
    %v531 = vld [vmem:[#allocation5 + $0xc60] sm:$0xff]
    %v532 = vld [vmem:[#allocation5 + $0xc68] sm:$0xff]
    %v533 = vld [vmem:[#allocation5 + $0xc70] sm:$0xff]
    %v534 = vld [vmem:[#allocation5 + $0xc78] sm:$0xff]
    %v535 = vld [vmem:[#allocation5 + $0xc80] sm:$0xff]
    %v536 = vld [vmem:[#allocation5 + $0xc88] sm:$0xff]
    %v537 = vld [vmem:[#allocation5 + $0xc90] sm:$0xff]
    %v538 = vld [vmem:[#allocation5 + $0xc98] sm:$0xff]
    %v539 = vld [vmem:[#allocation5 + $0xca0] sm:$0xff]
    %v540 = vld [vmem:[#allocation5 + $0xca8] sm:$0xff]
    %v541 = vld [vmem:[#allocation5 + $0xcb0] sm:$0xff]
    %v542 = vld [vmem:[#allocation5 + $0xcb8] sm:$0xff]
    %v543 = vld [vmem:[#allocation5 + $0xcc0] sm:$0xff]
    %v544 = vld [vmem:[#allocation5 + $0xcc8] sm:$0xff]
    %v545 = vld [vmem:[#allocation5 + $0xcd0] sm:$0xff]
    %v546 = vld [vmem:[#allocation5 + $0xcd8] sm:$0xff]
    %v547 = vld [vmem:[#allocation5 + $0xce0] sm:$0xff]
    %v548 = vld [vmem:[#allocation5 + $0xce8] sm:$0xff]
    %v549 = vld [vmem:[#allocation5 + $0xcf0] sm:$0xff]
    %v550 = vld [vmem:[#allocation5 + $0xcf8] sm:$0xff]
    %v551 = vld [vmem:[#allocation5 + $0xd00] sm:$0xff]
    %v552 = vld [vmem:[#allocation5 + $0xd08] sm:$0xff]
    %v553 = vld [vmem:[#allocation5 + $0xd10] sm:$0xff]
    %v554 = vld [vmem:[#allocation5 + $0xd18] sm:$0xff]
    %v555 = vld [vmem:[#allocation5 + $0xd20] sm:$0xff]
    %v556 = vld [vmem:[#allocation5 + $0xd28] sm:$0xff]
    %v557 = vld [vmem:[#allocation5 + $0xd30] sm:$0xff]
    %v558 = vld [vmem:[#allocation5 + $0xd38] sm:$0xff]
    %v559 = vld [vmem:[#allocation5 + $0xd40] sm:$0xff]
    %v560 = vld [vmem:[#allocation5 + $0xd48] sm:$0xff]
    %v561 = vld [vmem:[#allocation5 + $0xd50] sm:$0xff]
    %v562 = vld [vmem:[#allocation5 + $0xd58] sm:$0xff]
    %v563 = vld [vmem:[#allocation5 + $0xd60] sm:$0xff]
    %v564 = vld [vmem:[#allocation5 + $0xd68] sm:$0xff]
    %v565 = vld [vmem:[#allocation5 + $0xd70] sm:$0xff]
    %v566 = vld [vmem:[#allocation5 + $0xd78] sm:$0xff]
    %v567 = vld [vmem:[#allocation5 + $0xd80] sm:$0xff]
    %v568 = vld [vmem:[#allocation5 + $0xd88] sm:$0xff]
    %v569 = vld [vmem:[#allocation5 + $0xd90] sm:$0xff]
    %v570 = vld [vmem:[#allocation5 + $0xd98] sm:$0xff]
    %v571 = vld [vmem:[#allocation5 + $0xda0] sm:$0xff]
    %v572 = vld [vmem:[#allocation5 + $0xda8] sm:$0xff]
    %v573 = vld [vmem:[#allocation5 + $0xdb0] sm:$0xff]
    %v574 = vld [vmem:[#allocation5 + $0xdb8] sm:$0xff]
    %v575 = vld [vmem:[#allocation5 + $0xdc0] sm:$0xff]
    %v576 = vld [vmem:[#allocation5 + $0xdc8] sm:$0xff]
    %v577 = vld [vmem:[#allocation5 + $0xdd0] sm:$0xff]
    %v578 = vld [vmem:[#allocation5 + $0xdd8] sm:$0xff]
    %v579 = vld [vmem:[#allocation5 + $0xde0] sm:$0xff]
    %v580 = vld [vmem:[#allocation5 + $0xde8] sm:$0xff]
    %v581 = vld [vmem:[#allocation5 + $0xdf0] sm:$0xff]
    %v582 = vld [vmem:[#allocation5 + $0xdf8] sm:$0xff]
    %v583 = vld [vmem:[#allocation7] sm:$0xf]
    %v585 = vperm.slane %v583, 0
    %v586 = vperm.slane %v583, 1
    %v587 = vperm.slane %v583, 2
    %v588 = vperm.slane %v583, 3
    %593 = vmatpush.msra.mxu0 %v195
    %594 = vmatpush.msra.mxu0 %v191
    %595 = vmatpush.msra.mxu0 %v187
    %596 = vmatpush.msra.mxu0 %v183
    %597 = vmatpush.msra.mxu0 %v179
    %598 = vmatpush.msra.mxu0 %v175
    %599 = vmatpush.msra.mxu0 %v171
    %600 = vmatpush.msra.mxu0 %v167
    %601 = vmatpush.msra.mxu0 %v163
    %602 = vmatpush.msra.mxu0 %v159
    %603 = vmatpush.msra.mxu0 %v155
    %604 = vmatpush.msra.mxu0 %v151
    %605 = vmatpush.msra.mxu0 %v147
    %606 = vmatpush.msra.mxu0 %v143
    %607 = vmatpush.msra.mxu0 %v139
    %608 = vmatpush.msra.mxu0 %v135
    %609 = vmatmul.f32.gmra.mxu0 %v128
    %v610 = vpop.f32.mrf.mxu0
    %v611 = vadd.f32 %v585, %v610
    %612 = vdwg.mxu0
    %613 = vmatpush.msra.mxu0 %v259
    %614 = vmatpush.msra.mxu0 %v255
    %615 = vmatpush.msra.mxu0 %v251
    %616 = vmatpush.msra.mxu0 %v247
    %617 = vmatpush.msra.mxu0 %v243
    %618 = vmatpush.msra.mxu0 %v239
    %619 = vmatpush.msra.mxu0 %v235
    %620 = vmatpush.msra.mxu0 %v231
    %621 = vmatpush.msra.mxu0 %v227
    %622 = vmatpush.msra.mxu0 %v223
    %623 = vmatpush.msra.mxu0 %v219
    %624 = vmatpush.msra.mxu0 %v215
    %625 = vmatpush.msra.mxu0 %v211
    %626 = vmatpush.msra.mxu0 %v207
    %627 = vmatpush.msra.mxu0 %v203
    %628 = vmatpush.msra.mxu0 %v199
    %629 = vmatmul.f32.gmra.mxu0 %v129
    %v630 = vpop.f32.mrf.mxu0
    %v631 = vadd.f32 %v611, %v630
    %632 = vdwg.mxu0
    %633 = vmatpush.msra.mxu0 %v323
    %634 = vmatpush.msra.mxu0 %v319
    %635 = vmatpush.msra.mxu0 %v315
    %636 = vmatpush.msra.mxu0 %v311
    %637 = vmatpush.msra.mxu0 %v307
    %638 = vmatpush.msra.mxu0 %v303
    %639 = vmatpush.msra.mxu0 %v299
    %640 = vmatpush.msra.mxu0 %v295
    %641 = vmatpush.msra.mxu0 %v291
    %642 = vmatpush.msra.mxu0 %v287
    %643 = vmatpush.msra.mxu0 %v283
    %644 = vmatpush.msra.mxu0 %v279
    %645 = vmatpush.msra.mxu0 %v275
    %646 = vmatpush.msra.mxu0 %v271
    %647 = vmatpush.msra.mxu0 %v267
    %648 = vmatpush.msra.mxu0 %v263
    %649 = vmatmul.f32.gmra.mxu0 %v130
    %v650 = vpop.f32.mrf.mxu0
    %v651 = vadd.f32 %v631, %v650
    %652 = vdwg.mxu0
    %653 = vmatpush.msra.mxu0 %v387
    %654 = vmatpush.msra.mxu0 %v383
    %655 = vmatpush.msra.mxu0 %v379
    %656 = vmatpush.msra.mxu0 %v375
    %657 = vmatpush.msra.mxu0 %v371
    %658 = vmatpush.msra.mxu0 %v367
    %659 = vmatpush.msra.mxu0 %v363
    %660 = vmatpush.msra.mxu0 %v359
    %661 = vmatpush.msra.mxu0 %v355
    %662 = vmatpush.msra.mxu0 %v351
    %663 = vmatpush.msra.mxu0 %v347
    %664 = vmatpush.msra.mxu0 %v343
    %665 = vmatpush.msra.mxu0 %v339
    %666 = vmatpush.msra.mxu0 %v335
    %667 = vmatpush.msra.mxu0 %v331
    %668 = vmatpush.msra.mxu0 %v327
    %669 = vmatmul.f32.gmra.mxu0 %v131
    %v670 = vpop.f32.mrf.mxu0
    %v671 = vadd.f32 %v651, %v670
    %672 = vdwg.mxu0
    %673 = vmatpush.msra.mxu0 %v451
    %674 = vmatpush.msra.mxu0 %v447
    %675 = vmatpush.msra.mxu0 %v443
    %676 = vmatpush.msra.mxu0 %v439
    %677 = vmatpush.msra.mxu0 %v435
    %678 = vmatpush.msra.mxu0 %v431
    %679 = vmatpush.msra.mxu0 %v427
    %680 = vmatpush.msra.mxu0 %v423
    %681 = vmatpush.msra.mxu0 %v419
    %682 = vmatpush.msra.mxu0 %v415
    %683 = vmatpush.msra.mxu0 %v411
    %684 = vmatpush.msra.mxu0 %v407
    %685 = vmatpush.msra.mxu0 %v403
    %686 = vmatpush.msra.mxu0 %v399
    %687 = vmatpush.msra.mxu0 %v395
    %688 = vmatpush.msra.mxu0 %v391
    %689 = vmatmul.f32.gmra.mxu0 %v132
    %v690 = vpop.f32.mrf.mxu0
    %v691 = vadd.f32 %v671, %v690
    %692 = vdwg.mxu0
    %693 = vmatpush.msra.mxu0 %v515
    %694 = vmatpush.msra.mxu0 %v511
    %695 = vmatpush.msra.mxu0 %v507
    %696 = vmatpush.msra.mxu0 %v503
    %697 = vmatpush.msra.mxu0 %v499
    %698 = vmatpush.msra.mxu0 %v495
    %699 = vmatpush.msra.mxu0 %v491
    %700 = vmatpush.msra.mxu0 %v487
    %701 = vmatpush.msra.mxu0 %v483
    %702 = vmatpush.msra.mxu0 %v479
    %703 = vmatpush.msra.mxu0 %v475
    %704 = vmatpush.msra.mxu0 %v471
    %705 = vmatpush.msra.mxu0 %v467
    %706 = vmatpush.msra.mxu0 %v463
    %707 = vmatpush.msra.mxu0 %v459
    %708 = vmatpush.msra.mxu0 %v455
    %709 = vmatmul.f32.gmra.mxu0 %v133
    %v710 = vpop.f32.mrf.mxu0
    %v711 = vadd.f32 %v691, %v710
    %712 = vdwg.mxu0
    %713 = vmatpush.msra.mxu0 %v579
    %714 = vmatpush.msra.mxu0 %v575
    %715 = vmatpush.msra.mxu0 %v571
    %716 = vmatpush.msra.mxu0 %v567
    %717 = vmatpush.msra.mxu0 %v563
    %718 = vmatpush.msra.mxu0 %v559
    %719 = vmatpush.msra.mxu0 %v555
    %720 = vmatpush.msra.mxu0 %v551
    %721 = vmatpush.msra.mxu0 %v547
    %722 = vmatpush.msra.mxu0 %v543
    %723 = vmatpush.msra.mxu0 %v539
    %724 = vmatpush.msra.mxu0 %v535
    %725 = vmatpush.msra.mxu0 %v531
    %726 = vmatpush.msra.mxu0 %v527
    %727 = vmatpush.msra.mxu0 %v523
    %728 = vmatpush.msra.mxu0 %v519
    %729 = vmatmul.f32.gmra.mxu0 %v134
    %v730 = vpop.f32.mrf.mxu0
    %v731 = vadd.f32 %v711, %v730
    %732 = vdwg.mxu0
    %733 = vmatpush.msra.mxu0 %v196
    %734 = vmatpush.msra.mxu0 %v192
    %735 = vmatpush.msra.mxu0 %v188
    %736 = vmatpush.msra.mxu0 %v184
    %737 = vmatpush.msra.mxu0 %v180
    %738 = vmatpush.msra.mxu0 %v176
    %739 = vmatpush.msra.mxu0 %v172
    %740 = vmatpush.msra.mxu0 %v168
    %741 = vmatpush.msra.mxu0 %v164
    %742 = vmatpush.msra.mxu0 %v160
    %743 = vmatpush.msra.mxu0 %v156
    %744 = vmatpush.msra.mxu0 %v152
    %745 = vmatpush.msra.mxu0 %v148
    %746 = vmatpush.msra.mxu0 %v144
    %747 = vmatpush.msra.mxu0 %v140
    %748 = vmatpush.msra.mxu0 %v136
    %749 = vmatmul.f32.gmra.mxu0 %v128
    %v750 = vpop.f32.mrf.mxu0
    %v751 = vadd.f32 %v586, %v750
    %752 = vdwg.mxu0
    %753 = vmatpush.msra.mxu0 %v260
    %754 = vmatpush.msra.mxu0 %v256
    %755 = vmatpush.msra.mxu0 %v252
    %756 = vmatpush.msra.mxu0 %v248
    %757 = vmatpush.msra.mxu0 %v244
    %758 = vmatpush.msra.mxu0 %v240
    %759 = vmatpush.msra.mxu0 %v236
    %760 = vmatpush.msra.mxu0 %v232
    %761 = vmatpush.msra.mxu0 %v228
    %762 = vmatpush.msra.mxu0 %v224
    %763 = vmatpush.msra.mxu0 %v220
    %764 = vmatpush.msra.mxu0 %v216
    %765 = vmatpush.msra.mxu0 %v212
    %766 = vmatpush.msra.mxu0 %v208
    %767 = vmatpush.msra.mxu0 %v204
    %768 = vmatpush.msra.mxu0 %v200
    %769 = vmatmul.f32.gmra.mxu0 %v129
    %v770 = vpop.f32.mrf.mxu0
    %v771 = vadd.f32 %v751, %v770
    %772 = vdwg.mxu0
    %773 = vmatpush.msra.mxu0 %v324
    %774 = vmatpush.msra.mxu0 %v320
    %775 = vmatpush.msra.mxu0 %v316
    %776 = vmatpush.msra.mxu0 %v312
    %777 = vmatpush.msra.mxu0 %v308
    %778 = vmatpush.msra.mxu0 %v304
    %779 = vmatpush.msra.mxu0 %v300
    %780 = vmatpush.msra.mxu0 %v296
    %781 = vmatpush.msra.mxu0 %v292
    %782 = vmatpush.msra.mxu0 %v288
    %783 = vmatpush.msra.mxu0 %v284
    %784 = vmatpush.msra.mxu0 %v280
    %785 = vmatpush.msra.mxu0 %v276
    %786 = vmatpush.msra.mxu0 %v272
    %787 = vmatpush.msra.mxu0 %v268
    %788 = vmatpush.msra.mxu0 %v264
    %789 = vmatmul.f32.gmra.mxu0 %v130
    %v790 = vpop.f32.mrf.mxu0
    %v791 = vadd.f32 %v771, %v790
    %792 = vdwg.mxu0
    %793 = vmatpush.msra.mxu0 %v388
    %794 = vmatpush.msra.mxu0 %v384
    %795 = vmatpush.msra.mxu0 %v380
    %796 = vmatpush.msra.mxu0 %v376
    %797 = vmatpush.msra.mxu0 %v372
    %798 = vmatpush.msra.mxu0 %v368
    %799 = vmatpush.msra.mxu0 %v364
    %800 = vmatpush.msra.mxu0 %v360
    %801 = vmatpush.msra.mxu0 %v356
    %802 = vmatpush.msra.mxu0 %v352
    %803 = vmatpush.msra.mxu0 %v348
    %804 = vmatpush.msra.mxu0 %v344
    %805 = vmatpush.msra.mxu0 %v340
    %806 = vmatpush.msra.mxu0 %v336
    %807 = vmatpush.msra.mxu0 %v332
    %808 = vmatpush.msra.mxu0 %v328
    %809 = vmatmul.f32.gmra.mxu0 %v131
    %v810 = vpop.f32.mrf.mxu0
    %v811 = vadd.f32 %v791, %v810
    %812 = vdwg.mxu0
    %813 = vmatpush.msra.mxu0 %v452
    %814 = vmatpush.msra.mxu0 %v448
    %815 = vmatpush.msra.mxu0 %v444
    %816 = vmatpush.msra.mxu0 %v440
    %817 = vmatpush.msra.mxu0 %v436
    %818 = vmatpush.msra.mxu0 %v432
    %819 = vmatpush.msra.mxu0 %v428
    %820 = vmatpush.msra.mxu0 %v424
    %821 = vmatpush.msra.mxu0 %v420
    %822 = vmatpush.msra.mxu0 %v416
    %823 = vmatpush.msra.mxu0 %v412
    %824 = vmatpush.msra.mxu0 %v408
    %825 = vmatpush.msra.mxu0 %v404
    %826 = vmatpush.msra.mxu0 %v400
    %827 = vmatpush.msra.mxu0 %v396
    %828 = vmatpush.msra.mxu0 %v392
    %829 = vmatmul.f32.gmra.mxu0 %v132
    %v830 = vpop.f32.mrf.mxu0
    %v831 = vadd.f32 %v811, %v830
    %832 = vdwg.mxu0
    %833 = vmatpush.msra.mxu0 %v516
    %834 = vmatpush.msra.mxu0 %v512
    %835 = vmatpush.msra.mxu0 %v508
    %836 = vmatpush.msra.mxu0 %v504
    %837 = vmatpush.msra.mxu0 %v500
    %838 = vmatpush.msra.mxu0 %v496
    %839 = vmatpush.msra.mxu0 %v492
    %840 = vmatpush.msra.mxu0 %v488
    %841 = vmatpush.msra.mxu0 %v484
    %842 = vmatpush.msra.mxu0 %v480
    %843 = vmatpush.msra.mxu0 %v476
    %844 = vmatpush.msra.mxu0 %v472
    %845 = vmatpush.msra.mxu0 %v468
    %846 = vmatpush.msra.mxu0 %v464
    %847 = vmatpush.msra.mxu0 %v460
    %848 = vmatpush.msra.mxu0 %v456
    %849 = vmatmul.f32.gmra.mxu0 %v133
    %v850 = vpop.f32.mrf.mxu0
    %v851 = vadd.f32 %v831, %v850
    %852 = vdwg.mxu0
    %853 = vmatpush.msra.mxu0 %v580
    %854 = vmatpush.msra.mxu0 %v576
    %855 = vmatpush.msra.mxu0 %v572
    %856 = vmatpush.msra.mxu0 %v568
    %857 = vmatpush.msra.mxu0 %v564
    %858 = vmatpush.msra.mxu0 %v560
    %859 = vmatpush.msra.mxu0 %v556
    %860 = vmatpush.msra.mxu0 %v552
    %861 = vmatpush.msra.mxu0 %v548
    %862 = vmatpush.msra.mxu0 %v544
    %863 = vmatpush.msra.mxu0 %v540
    %864 = vmatpush.msra.mxu0 %v536
    %865 = vmatpush.msra.mxu0 %v532
    %866 = vmatpush.msra.mxu0 %v528
    %867 = vmatpush.msra.mxu0 %v524
    %868 = vmatpush.msra.mxu0 %v520
    %869 = vmatmul.f32.gmra.mxu0 %v134
    %v870 = vpop.f32.mrf.mxu0
    %v871 = vadd.f32 %v851, %v870
    %872 = vdwg.mxu0
    %873 = vmatpush.msra.mxu0 %v197
    %874 = vmatpush.msra.mxu0 %v193
    %875 = vmatpush.msra.mxu0 %v189
    %876 = vmatpush.msra.mxu0 %v185
    %877 = vmatpush.msra.mxu0 %v181
    %878 = vmatpush.msra.mxu0 %v177
    %879 = vmatpush.msra.mxu0 %v173
    %880 = vmatpush.msra.mxu0 %v169
    %881 = vmatpush.msra.mxu0 %v165
    %882 = vmatpush.msra.mxu0 %v161
    %883 = vmatpush.msra.mxu0 %v157
    %884 = vmatpush.msra.mxu0 %v153
    %885 = vmatpush.msra.mxu0 %v149
    %886 = vmatpush.msra.mxu0 %v145
    %887 = vmatpush.msra.mxu0 %v141
    %888 = vmatpush.msra.mxu0 %v137
    %889 = vmatmul.f32.gmra.mxu0 %v128
    %v890 = vpop.f32.mrf.mxu0
    %v891 = vadd.f32 %v587, %v890
    %892 = vdwg.mxu0
    %893 = vmatpush.msra.mxu0 %v261
    %894 = vmatpush.msra.mxu0 %v257
    %895 = vmatpush.msra.mxu0 %v253
    %896 = vmatpush.msra.mxu0 %v249
    %897 = vmatpush.msra.mxu0 %v245
    %898 = vmatpush.msra.mxu0 %v241
    %899 = vmatpush.msra.mxu0 %v237
    %900 = vmatpush.msra.mxu0 %v233
    %901 = vmatpush.msra.mxu0 %v229
    %902 = vmatpush.msra.mxu0 %v225
    %903 = vmatpush.msra.mxu0 %v221
    %904 = vmatpush.msra.mxu0 %v217
    %905 = vmatpush.msra.mxu0 %v213
    %906 = vmatpush.msra.mxu0 %v209
    %907 = vmatpush.msra.mxu0 %v205
    %908 = vmatpush.msra.mxu0 %v201
    %909 = vmatmul.f32.gmra.mxu0 %v129
    %v910 = vpop.f32.mrf.mxu0
    %v911 = vadd.f32 %v891, %v910
    %912 = vdwg.mxu0
    %913 = vmatpush.msra.mxu0 %v325
    %914 = vmatpush.msra.mxu0 %v321
    %915 = vmatpush.msra.mxu0 %v317
    %916 = vmatpush.msra.mxu0 %v313
    %917 = vmatpush.msra.mxu0 %v309
    %918 = vmatpush.msra.mxu0 %v305
    %919 = vmatpush.msra.mxu0 %v301
    %920 = vmatpush.msra.mxu0 %v297
    %921 = vmatpush.msra.mxu0 %v293
    %922 = vmatpush.msra.mxu0 %v289
    %923 = vmatpush.msra.mxu0 %v285
    %924 = vmatpush.msra.mxu0 %v281
    %925 = vmatpush.msra.mxu0 %v277
    %926 = vmatpush.msra.mxu0 %v273
    %927 = vmatpush.msra.mxu0 %v269
    %928 = vmatpush.msra.mxu0 %v265
    %929 = vmatmul.f32.gmra.mxu0 %v130
    %v930 = vpop.f32.mrf.mxu0
    %v931 = vadd.f32 %v911, %v930
    %932 = vdwg.mxu0
    %933 = vmatpush.msra.mxu0 %v389
    %934 = vmatpush.msra.mxu0 %v385
    %935 = vmatpush.msra.mxu0 %v381
    %936 = vmatpush.msra.mxu0 %v377
    %937 = vmatpush.msra.mxu0 %v373
    %938 = vmatpush.msra.mxu0 %v369
    %939 = vmatpush.msra.mxu0 %v365
    %940 = vmatpush.msra.mxu0 %v361
    %941 = vmatpush.msra.mxu0 %v357
    %942 = vmatpush.msra.mxu0 %v353
    %943 = vmatpush.msra.mxu0 %v349
    %944 = vmatpush.msra.mxu0 %v345
    %945 = vmatpush.msra.mxu0 %v341
    %946 = vmatpush.msra.mxu0 %v337
    %947 = vmatpush.msra.mxu0 %v333
    %948 = vmatpush.msra.mxu0 %v329
    %949 = vmatmul.f32.gmra.mxu0 %v131
    %v950 = vpop.f32.mrf.mxu0
    %v951 = vadd.f32 %v931, %v950
    %952 = vdwg.mxu0
    %953 = vmatpush.msra.mxu0 %v453
    %954 = vmatpush.msra.mxu0 %v449
    %955 = vmatpush.msra.mxu0 %v445
    %956 = vmatpush.msra.mxu0 %v441
    %957 = vmatpush.msra.mxu0 %v437
    %958 = vmatpush.msra.mxu0 %v433
    %959 = vmatpush.msra.mxu0 %v429
    %960 = vmatpush.msra.mxu0 %v425
    %961 = vmatpush.msra.mxu0 %v421
    %962 = vmatpush.msra.mxu0 %v417
    %963 = vmatpush.msra.mxu0 %v413
    %964 = vmatpush.msra.mxu0 %v409
    %965 = vmatpush.msra.mxu0 %v405
    %966 = vmatpush.msra.mxu0 %v401
    %967 = vmatpush.msra.mxu0 %v397
    %968 = vmatpush.msra.mxu0 %v393
    %969 = vmatmul.f32.gmra.mxu0 %v132
    %v970 = vpop.f32.mrf.mxu0
    %v971 = vadd.f32 %v951, %v970
    %972 = vdwg.mxu0
    %973 = vmatpush.msra.mxu0 %v517
    %974 = vmatpush.msra.mxu0 %v513
    %975 = vmatpush.msra.mxu0 %v509
    %976 = vmatpush.msra.mxu0 %v505
    %977 = vmatpush.msra.mxu0 %v501
    %978 = vmatpush.msra.mxu0 %v497
    %979 = vmatpush.msra.mxu0 %v493
    %980 = vmatpush.msra.mxu0 %v489
    %981 = vmatpush.msra.mxu0 %v485
    %982 = vmatpush.msra.mxu0 %v481
    %983 = vmatpush.msra.mxu0 %v477
    %984 = vmatpush.msra.mxu0 %v473
    %985 = vmatpush.msra.mxu0 %v469
    %986 = vmatpush.msra.mxu0 %v465
    %987 = vmatpush.msra.mxu0 %v461
    %988 = vmatpush.msra.mxu0 %v457
    %989 = vmatmul.f32.gmra.mxu0 %v133
    %v990 = vpop.f32.mrf.mxu0
    %v991 = vadd.f32 %v971, %v990
    %992 = vdwg.mxu0
    %993 = vmatpush.msra.mxu0 %v581
    %994 = vmatpush.msra.mxu0 %v577
    %995 = vmatpush.msra.mxu0 %v573
    %996 = vmatpush.msra.mxu0 %v569
    %997 = vmatpush.msra.mxu0 %v565
    %998 = vmatpush.msra.mxu0 %v561
    %999 = vmatpush.msra.mxu0 %v557
    %1000 = vmatpush.msra.mxu0 %v553
    %1001 = vmatpush.msra.mxu0 %v549
    %1002 = vmatpush.msra.mxu0 %v545
    %1003 = vmatpush.msra.mxu0 %v541
    %1004 = vmatpush.msra.mxu0 %v537
    %1005 = vmatpush.msra.mxu0 %v533
    %1006 = vmatpush.msra.mxu0 %v529
    %1007 = vmatpush.msra.mxu0 %v525
    %1008 = vmatpush.msra.mxu0 %v521
    %1009 = vmatmul.f32.gmra.mxu0 %v134
    %v1010 = vpop.f32.mrf.mxu0
    %v1011 = vadd.f32 %v991, %v1010
    %1012 = vdwg.mxu0
    %1013 = vmatpush.msra.mxu0 %v198
    %1014 = vmatpush.msra.mxu0 %v194
    %1015 = vmatpush.msra.mxu0 %v190
    %1016 = vmatpush.msra.mxu0 %v186
    %1017 = vmatpush.msra.mxu0 %v182
    %1018 = vmatpush.msra.mxu0 %v178
    %1019 = vmatpush.msra.mxu0 %v174
    %1020 = vmatpush.msra.mxu0 %v170
    %1021 = vmatpush.msra.mxu0 %v166
    %1022 = vmatpush.msra.mxu0 %v162
    %1023 = vmatpush.msra.mxu0 %v158
    %1024 = vmatpush.msra.mxu0 %v154
    %1025 = vmatpush.msra.mxu0 %v150
    %1026 = vmatpush.msra.mxu0 %v146
    %1027 = vmatpush.msra.mxu0 %v142
    %1028 = vmatpush.msra.mxu0 %v138
    %1029 = vmatmul.f32.gmra.mxu0 %v128
    %v1030 = vpop.f32.mrf.mxu0
    %v1031 = vadd.f32 %v588, %v1030
    %1032 = vdwg.mxu0
    %1033 = vmatpush.msra.mxu0 %v262
    %1034 = vmatpush.msra.mxu0 %v258
    %1035 = vmatpush.msra.mxu0 %v254
    %1036 = vmatpush.msra.mxu0 %v250
    %1037 = vmatpush.msra.mxu0 %v246
    %1038 = vmatpush.msra.mxu0 %v242
    %1039 = vmatpush.msra.mxu0 %v238
    %1040 = vmatpush.msra.mxu0 %v234
    %1041 = vmatpush.msra.mxu0 %v230
    %1042 = vmatpush.msra.mxu0 %v226
    %1043 = vmatpush.msra.mxu0 %v222
    %1044 = vmatpush.msra.mxu0 %v218
    %1045 = vmatpush.msra.mxu0 %v214
    %1046 = vmatpush.msra.mxu0 %v210
    %1047 = vmatpush.msra.mxu0 %v206
    %1048 = vmatpush.msra.mxu0 %v202
    %1049 = vmatmul.f32.gmra.mxu0 %v129
    %v1050 = vpop.f32.mrf.mxu0
    %v1051 = vadd.f32 %v1031, %v1050
    %1052 = vdwg.mxu0
    %1053 = vmatpush.msra.mxu0 %v326
    %1054 = vmatpush.msra.mxu0 %v322
    %1055 = vmatpush.msra.mxu0 %v318
    %1056 = vmatpush.msra.mxu0 %v314
    %1057 = vmatpush.msra.mxu0 %v310
    %1058 = vmatpush.msra.mxu0 %v306
    %1059 = vmatpush.msra.mxu0 %v302
    %1060 = vmatpush.msra.mxu0 %v298
    %1061 = vmatpush.msra.mxu0 %v294
    %1062 = vmatpush.msra.mxu0 %v290
    %1063 = vmatpush.msra.mxu0 %v286
    %1064 = vmatpush.msra.mxu0 %v282
    %1065 = vmatpush.msra.mxu0 %v278
    %1066 = vmatpush.msra.mxu0 %v274
    %1067 = vmatpush.msra.mxu0 %v270
    %1068 = vmatpush.msra.mxu0 %v266
    %1069 = vmatmul.f32.gmra.mxu0 %v130
    %v1070 = vpop.f32.mrf.mxu0
    %v1071 = vadd.f32 %v1051, %v1070
    %1072 = vdwg.mxu0
    %1073 = vmatpush.msra.mxu0 %v390
    %1074 = vmatpush.msra.mxu0 %v386
    %1075 = vmatpush.msra.mxu0 %v382
    %1076 = vmatpush.msra.mxu0 %v378
    %1077 = vmatpush.msra.mxu0 %v374
    %1078 = vmatpush.msra.mxu0 %v370
    %1079 = vmatpush.msra.mxu0 %v366
    %1080 = vmatpush.msra.mxu0 %v362
    %1081 = vmatpush.msra.mxu0 %v358
    %1082 = vmatpush.msra.mxu0 %v354
    %1083 = vmatpush.msra.mxu0 %v350
    %1084 = vmatpush.msra.mxu0 %v346
    %1085 = vmatpush.msra.mxu0 %v342
    %1086 = vmatpush.msra.mxu0 %v338
    %1087 = vmatpush.msra.mxu0 %v334
    %1088 = vmatpush.msra.mxu0 %v330
    %1089 = vmatmul.f32.gmra.mxu0 %v131
    %v1090 = vpop.f32.mrf.mxu0
    %v1091 = vadd.f32 %v1071, %v1090
    %1092 = vdwg.mxu0
    %1093 = vmatpush.msra.mxu0 %v454
    %1094 = vmatpush.msra.mxu0 %v450
    %1095 = vmatpush.msra.mxu0 %v446
    %1096 = vmatpush.msra.mxu0 %v442
    %1097 = vmatpush.msra.mxu0 %v438
    %1098 = vmatpush.msra.mxu0 %v434
    %1099 = vmatpush.msra.mxu0 %v430
    %1100 = vmatpush.msra.mxu0 %v426
    %1101 = vmatpush.msra.mxu0 %v422
    %1102 = vmatpush.msra.mxu0 %v418
    %1103 = vmatpush.msra.mxu0 %v414
    %1104 = vmatpush.msra.mxu0 %v410
    %1105 = vmatpush.msra.mxu0 %v406
    %1106 = vmatpush.msra.mxu0 %v402
    %1107 = vmatpush.msra.mxu0 %v398
    %1108 = vmatpush.msra.mxu0 %v394
    %1109 = vmatmul.f32.gmra.mxu0 %v132
    %v1110 = vpop.f32.mrf.mxu0
    %v1111 = vadd.f32 %v1091, %v1110
    %1112 = vdwg.mxu0
    %1113 = vmatpush.msra.mxu0 %v518
    %1114 = vmatpush.msra.mxu0 %v514
    %1115 = vmatpush.msra.mxu0 %v510
    %1116 = vmatpush.msra.mxu0 %v506
    %1117 = vmatpush.msra.mxu0 %v502
    %1118 = vmatpush.msra.mxu0 %v498
    %1119 = vmatpush.msra.mxu0 %v494
    %1120 = vmatpush.msra.mxu0 %v490
    %1121 = vmatpush.msra.mxu0 %v486
    %1122 = vmatpush.msra.mxu0 %v482
    %1123 = vmatpush.msra.mxu0 %v478
    %1124 = vmatpush.msra.mxu0 %v474
    %1125 = vmatpush.msra.mxu0 %v470
    %1126 = vmatpush.msra.mxu0 %v466
    %1127 = vmatpush.msra.mxu0 %v462
    %1128 = vmatpush.msra.mxu0 %v458
    %1129 = vmatmul.f32.gmra.mxu0 %v133
    %v1130 = vpop.f32.mrf.mxu0
    %v1131 = vadd.f32 %v1111, %v1130
    %1132 = vdwg.mxu0
    %1133 = vmatpush.msra.mxu0 %v582
    %1134 = vmatpush.msra.mxu0 %v578
    %1135 = vmatpush.msra.mxu0 %v574
    %1136 = vmatpush.msra.mxu0 %v570
    %1137 = vmatpush.msra.mxu0 %v566
    %1138 = vmatpush.msra.mxu0 %v562
    %1139 = vmatpush.msra.mxu0 %v558
    %1140 = vmatpush.msra.mxu0 %v554
    %1141 = vmatpush.msra.mxu0 %v550
    %1142 = vmatpush.msra.mxu0 %v546
    %1143 = vmatpush.msra.mxu0 %v542
    %1144 = vmatpush.msra.mxu0 %v538
    %1145 = vmatpush.msra.mxu0 %v534
    %1146 = vmatpush.msra.mxu0 %v530
    %1147 = vmatpush.msra.mxu0 %v526
    %1148 = vmatpush.msra.mxu0 %v522
    %1149 = vmatmul.f32.gmra.mxu0 %v134
    %v1150 = vpop.f32.mrf.mxu0
    %v1151 = vadd.f32 %v1131, %v1150
    %1152 = vdwg.mxu0
    %v1153 = vmax.f32 %v731, 0.0
    %v1154 = vmax.f32 %v871, 0.0
    %v1155 = vmax.f32 %v1011, 0.0
    %v1156 = vmax.f32 %v1151, 0.0
    %v1157 = vld [vmem:[#allocation8] sm:$0xff]
    %v1158 = vld [vmem:[#allocation8 + $0x8] sm:$0xff]
    %v1159 = vld [vmem:[#allocation8 + $0x10] sm:$0xff]
    %v1160 = vld [vmem:[#allocation8 + $0x18] sm:$0xff]
    %v1161 = vld [vmem:[#allocation8 + $0x20] sm:$0xff]
    %v1162 = vld [vmem:[#allocation8 + $0x28] sm:$0xff]
    %v1163 = vld [vmem:[#allocation8 + $0x30] sm:$0xff]
    %v1164 = vld [vmem:[#allocation8 + $0x38] sm:$0xff]
    %v1165 = vld [vmem:[#allocation8 + $0x40] sm:$0xff]
    %v1166 = vld [vmem:[#allocation8 + $0x48] sm:$0xff]
    %v1167 = vld [vmem:[#allocation8 + $0x50] sm:$0xff]
    %v1168 = vld [vmem:[#allocation8 + $0x58] sm:$0xff]
    %v1169 = vld [vmem:[#allocation8 + $0x60] sm:$0xff]
    %v1170 = vld [vmem:[#allocation8 + $0x68] sm:$0xff]
    %v1171 = vld [vmem:[#allocation8 + $0x70] sm:$0xff]
    %v1172 = vld [vmem:[#allocation8 + $0x78] sm:$0xff]
    %v1173 = vld [vmem:[#allocation8 + $0x80] sm:$0xff]
    %v1174 = vld [vmem:[#allocation8 + $0x88] sm:$0xff]
    %v1175 = vld [vmem:[#allocation8 + $0x90] sm:$0xff]
    %v1176 = vld [vmem:[#allocation8 + $0x98] sm:$0xff]
    %v1177 = vld [vmem:[#allocation8 + $0xa0] sm:$0xff]
    %v1178 = vld [vmem:[#allocation8 + $0xa8] sm:$0xff]
    %v1179 = vld [vmem:[#allocation8 + $0xb0] sm:$0xff]
    %v1180 = vld [vmem:[#allocation8 + $0xb8] sm:$0xff]
    %v1181 = vld [vmem:[#allocation8 + $0xc0] sm:$0xff]
    %v1182 = vld [vmem:[#allocation8 + $0xc8] sm:$0xff]
    %v1183 = vld [vmem:[#allocation8 + $0xd0] sm:$0xff]
    %v1184 = vld [vmem:[#allocation8 + $0xd8] sm:$0xff]
    %v1185 = vld [vmem:[#allocation8 + $0xe0] sm:$0xff]
    %v1186 = vld [vmem:[#allocation8 + $0xe8] sm:$0xff]
    %v1187 = vld [vmem:[#allocation8 + $0xf0] sm:$0xff]
    %v1188 = vld [vmem:[#allocation8 + $0xf8] sm:$0xff]
    %v1189 = vld [vmem:[#allocation8 + $0x100] sm:$0xff]
    %v1190 = vld [vmem:[#allocation8 + $0x108] sm:$0xff]
    %v1191 = vld [vmem:[#allocation8 + $0x110] sm:$0xff]
    %v1192 = vld [vmem:[#allocation8 + $0x118] sm:$0xff]
    %v1193 = vld [vmem:[#allocation8 + $0x120] sm:$0xff]
    %v1194 = vld [vmem:[#allocation8 + $0x128] sm:$0xff]
    %v1195 = vld [vmem:[#allocation8 + $0x130] sm:$0xff]
    %v1196 = vld [vmem:[#allocation8 + $0x138] sm:$0xff]
    %v1197 = vld [vmem:[#allocation8 + $0x140] sm:$0xff]
    %v1198 = vld [vmem:[#allocation8 + $0x148] sm:$0xff]
    %v1199 = vld [vmem:[#allocation8 + $0x150] sm:$0xff]
    %v1200 = vld [vmem:[#allocation8 + $0x158] sm:$0xff]
    %v1201 = vld [vmem:[#allocation8 + $0x160] sm:$0xff]
    %v1202 = vld [vmem:[#allocation8 + $0x168] sm:$0xff]
    %v1203 = vld [vmem:[#allocation8 + $0x170] sm:$0xff]
    %v1204 = vld [vmem:[#allocation8 + $0x178] sm:$0xff]
    %v1205 = vld [vmem:[#allocation8 + $0x180] sm:$0xff]
    %v1206 = vld [vmem:[#allocation8 + $0x188] sm:$0xff]
    %v1207 = vld [vmem:[#allocation8 + $0x190] sm:$0xff]
    %v1208 = vld [vmem:[#allocation8 + $0x198] sm:$0xff]
    %v1209 = vld [vmem:[#allocation8 + $0x1a0] sm:$0xff]
    %v1210 = vld [vmem:[#allocation8 + $0x1a8] sm:$0xff]
    %v1211 = vld [vmem:[#allocation8 + $0x1b0] sm:$0xff]
    %v1212 = vld [vmem:[#allocation8 + $0x1b8] sm:$0xff]
    %v1213 = vld [vmem:[#allocation8 + $0x1c0] sm:$0xff]
    %v1214 = vld [vmem:[#allocation8 + $0x1c8] sm:$0xff]
    %v1215 = vld [vmem:[#allocation8 + $0x1d0] sm:$0xff]
    %v1216 = vld [vmem:[#allocation8 + $0x1d8] sm:$0xff]
    %v1217 = vld [vmem:[#allocation8 + $0x1e0] sm:$0xff]
    %v1218 = vld [vmem:[#allocation8 + $0x1e8] sm:$0xff]
    %v1219 = vld [vmem:[#allocation8 + $0x1f0] sm:$0xff]
    %v1220 = vld [vmem:[#allocation8 + $0x1f8] sm:$0xff]
    %v1221 = vld [vmem:[#allocation8 + $0x200] sm:$0xff]
    %v1222 = vld [vmem:[#allocation8 + $0x208] sm:$0xff]
    %v1223 = vld [vmem:[#allocation8 + $0x210] sm:$0xff]
    %v1224 = vld [vmem:[#allocation8 + $0x218] sm:$0xff]
    %v1225 = vld [vmem:[#allocation8 + $0x220] sm:$0xff]
    %v1226 = vld [vmem:[#allocation8 + $0x228] sm:$0xff]
    %v1227 = vld [vmem:[#allocation8 + $0x230] sm:$0xff]
    %v1228 = vld [vmem:[#allocation8 + $0x238] sm:$0xff]
    %v1229 = vld [vmem:[#allocation8 + $0x240] sm:$0xff]
    %v1230 = vld [vmem:[#allocation8 + $0x248] sm:$0xff]
    %v1231 = vld [vmem:[#allocation8 + $0x250] sm:$0xff]
    %v1232 = vld [vmem:[#allocation8 + $0x258] sm:$0xff]
    %v1233 = vld [vmem:[#allocation8 + $0x260] sm:$0xff]
    %v1234 = vld [vmem:[#allocation8 + $0x268] sm:$0xff]
    %v1235 = vld [vmem:[#allocation8 + $0x270] sm:$0xff]
    %v1236 = vld [vmem:[#allocation8 + $0x278] sm:$0xff]
    %v1237 = vld [vmem:[#allocation8 + $0x280] sm:$0xff]
    %v1238 = vld [vmem:[#allocation8 + $0x288] sm:$0xff]
    %v1239 = vld [vmem:[#allocation8 + $0x290] sm:$0xff]
    %v1240 = vld [vmem:[#allocation8 + $0x298] sm:$0xff]
    %v1241 = vld [vmem:[#allocation8 + $0x2a0] sm:$0xff]
    %v1242 = vld [vmem:[#allocation8 + $0x2a8] sm:$0xff]
    %v1243 = vld [vmem:[#allocation8 + $0x2b0] sm:$0xff]
    %v1244 = vld [vmem:[#allocation8 + $0x2b8] sm:$0xff]
    %v1245 = vld [vmem:[#allocation8 + $0x2c0] sm:$0xff]
    %v1246 = vld [vmem:[#allocation8 + $0x2c8] sm:$0xff]
    %v1247 = vld [vmem:[#allocation8 + $0x2d0] sm:$0xff]
    %v1248 = vld [vmem:[#allocation8 + $0x2d8] sm:$0xff]
    %v1249 = vld [vmem:[#allocation8 + $0x2e0] sm:$0xff]
    %v1250 = vld [vmem:[#allocation8 + $0x2e8] sm:$0xff]
    %v1251 = vld [vmem:[#allocation8 + $0x2f0] sm:$0xff]
    %v1252 = vld [vmem:[#allocation8 + $0x2f8] sm:$0xff]
    %v1253 = vld [vmem:[#allocation8 + $0x300] sm:$0xff]
    %v1254 = vld [vmem:[#allocation8 + $0x308] sm:$0xff]
    %v1255 = vld [vmem:[#allocation8 + $0x310] sm:$0xff]
    %v1256 = vld [vmem:[#allocation8 + $0x318] sm:$0xff]
    %v1257 = vld [vmem:[#allocation8 + $0x320] sm:$0xff]
    %v1258 = vld [vmem:[#allocation8 + $0x328] sm:$0xff]
    %v1259 = vld [vmem:[#allocation8 + $0x330] sm:$0xff]
    %v1260 = vld [vmem:[#allocation8 + $0x338] sm:$0xff]
    %v1261 = vld [vmem:[#allocation8 + $0x340] sm:$0xff]
    %v1262 = vld [vmem:[#allocation8 + $0x348] sm:$0xff]
    %v1263 = vld [vmem:[#allocation8 + $0x350] sm:$0xff]
    %v1264 = vld [vmem:[#allocation8 + $0x358] sm:$0xff]
    %v1265 = vld [vmem:[#allocation8 + $0x360] sm:$0xff]
    %v1266 = vld [vmem:[#allocation8 + $0x368] sm:$0xff]
    %v1267 = vld [vmem:[#allocation8 + $0x370] sm:$0xff]
    %v1268 = vld [vmem:[#allocation8 + $0x378] sm:$0xff]
    %v1269 = vld [vmem:[#allocation8 + $0x380] sm:$0xff]
    %v1270 = vld [vmem:[#allocation8 + $0x388] sm:$0xff]
    %v1271 = vld [vmem:[#allocation8 + $0x390] sm:$0xff]
    %v1272 = vld [vmem:[#allocation8 + $0x398] sm:$0xff]
    %v1273 = vld [vmem:[#allocation8 + $0x3a0] sm:$0xff]
    %v1274 = vld [vmem:[#allocation8 + $0x3a8] sm:$0xff]
    %v1275 = vld [vmem:[#allocation8 + $0x3b0] sm:$0xff]
    %v1276 = vld [vmem:[#allocation8 + $0x3b8] sm:$0xff]
    %v1277 = vld [vmem:[#allocation8 + $0x3c0] sm:$0xff]
    %v1278 = vld [vmem:[#allocation8 + $0x3c8] sm:$0xff]
    %v1279 = vld [vmem:[#allocation8 + $0x3d0] sm:$0xff]
    %v1280 = vld [vmem:[#allocation8 + $0x3d8] sm:$0xff]
    %v1281 = vld [vmem:[#allocation8 + $0x3e0] sm:$0xff]
    %v1282 = vld [vmem:[#allocation8 + $0x3e8] sm:$0xff]
    %v1283 = vld [vmem:[#allocation8 + $0x3f0] sm:$0xff]
    %v1284 = vld [vmem:[#allocation8 + $0x3f8] sm:$0xff]
    %v1285 = vld [vmem:[#allocation8 + $0x400] sm:$0xff]
    %v1286 = vld [vmem:[#allocation8 + $0x408] sm:$0xff]
    %v1287 = vld [vmem:[#allocation8 + $0x410] sm:$0xff]
    %v1288 = vld [vmem:[#allocation8 + $0x418] sm:$0xff]
    %v1289 = vld [vmem:[#allocation8 + $0x420] sm:$0xff]
    %v1290 = vld [vmem:[#allocation8 + $0x428] sm:$0xff]
    %v1291 = vld [vmem:[#allocation8 + $0x430] sm:$0xff]
    %v1292 = vld [vmem:[#allocation8 + $0x438] sm:$0xff]
    %v1293 = vld [vmem:[#allocation8 + $0x440] sm:$0xff]
    %v1294 = vld [vmem:[#allocation8 + $0x448] sm:$0xff]
    %v1295 = vld [vmem:[#allocation8 + $0x450] sm:$0xff]
    %v1296 = vld [vmem:[#allocation8 + $0x458] sm:$0xff]
    %v1297 = vld [vmem:[#allocation8 + $0x460] sm:$0xff]
    %v1298 = vld [vmem:[#allocation8 + $0x468] sm:$0xff]
    %v1299 = vld [vmem:[#allocation8 + $0x470] sm:$0xff]
    %v1300 = vld [vmem:[#allocation8 + $0x478] sm:$0xff]
    %v1301 = vld [vmem:[#allocation8 + $0x480] sm:$0xff]
    %v1302 = vld [vmem:[#allocation8 + $0x488] sm:$0xff]
    %v1303 = vld [vmem:[#allocation8 + $0x490] sm:$0xff]
    %v1304 = vld [vmem:[#allocation8 + $0x498] sm:$0xff]
    %v1305 = vld [vmem:[#allocation8 + $0x4a0] sm:$0xff]
    %v1306 = vld [vmem:[#allocation8 + $0x4a8] sm:$0xff]
    %v1307 = vld [vmem:[#allocation8 + $0x4b0] sm:$0xff]
    %v1308 = vld [vmem:[#allocation8 + $0x4b8] sm:$0xff]
    %v1309 = vld [vmem:[#allocation8 + $0x4c0] sm:$0xff]
    %v1310 = vld [vmem:[#allocation8 + $0x4c8] sm:$0xff]
    %v1311 = vld [vmem:[#allocation8 + $0x4d0] sm:$0xff]
    %v1312 = vld [vmem:[#allocation8 + $0x4d8] sm:$0xff]
    %v1313 = vld [vmem:[#allocation8 + $0x4e0] sm:$0xff]
    %v1314 = vld [vmem:[#allocation8 + $0x4e8] sm:$0xff]
    %v1315 = vld [vmem:[#allocation8 + $0x4f0] sm:$0xff]
    %v1316 = vld [vmem:[#allocation8 + $0x4f8] sm:$0xff]
    %v1317 = vld [vmem:[#allocation8 + $0x500] sm:$0xff]
    %v1318 = vld [vmem:[#allocation8 + $0x508] sm:$0xff]
    %v1319 = vld [vmem:[#allocation8 + $0x510] sm:$0xff]
    %v1320 = vld [vmem:[#allocation8 + $0x518] sm:$0xff]
    %v1321 = vld [vmem:[#allocation8 + $0x520] sm:$0xff]
    %v1322 = vld [vmem:[#allocation8 + $0x528] sm:$0xff]
    %v1323 = vld [vmem:[#allocation8 + $0x530] sm:$0xff]
    %v1324 = vld [vmem:[#allocation8 + $0x538] sm:$0xff]
    %v1325 = vld [vmem:[#allocation8 + $0x540] sm:$0xff]
    %v1326 = vld [vmem:[#allocation8 + $0x548] sm:$0xff]
    %v1327 = vld [vmem:[#allocation8 + $0x550] sm:$0xff]
    %v1328 = vld [vmem:[#allocation8 + $0x558] sm:$0xff]
    %v1329 = vld [vmem:[#allocation8 + $0x560] sm:$0xff]
    %v1330 = vld [vmem:[#allocation8 + $0x568] sm:$0xff]
    %v1331 = vld [vmem:[#allocation8 + $0x570] sm:$0xff]
    %v1332 = vld [vmem:[#allocation8 + $0x578] sm:$0xff]
    %v1333 = vld [vmem:[#allocation8 + $0x580] sm:$0xff]
    %v1334 = vld [vmem:[#allocation8 + $0x588] sm:$0xff]
    %v1335 = vld [vmem:[#allocation8 + $0x590] sm:$0xff]
    %v1336 = vld [vmem:[#allocation8 + $0x598] sm:$0xff]
    %v1337 = vld [vmem:[#allocation8 + $0x5a0] sm:$0xff]
    %v1338 = vld [vmem:[#allocation8 + $0x5a8] sm:$0xff]
    %v1339 = vld [vmem:[#allocation8 + $0x5b0] sm:$0xff]
    %v1340 = vld [vmem:[#allocation8 + $0x5b8] sm:$0xff]
    %v1341 = vld [vmem:[#allocation8 + $0x5c0] sm:$0xff]
    %v1342 = vld [vmem:[#allocation8 + $0x5c8] sm:$0xff]
    %v1343 = vld [vmem:[#allocation8 + $0x5d0] sm:$0xff]
    %v1344 = vld [vmem:[#allocation8 + $0x5d8] sm:$0xff]
    %v1345 = vld [vmem:[#allocation8 + $0x5e0] sm:$0xff]
    %v1346 = vld [vmem:[#allocation8 + $0x5e8] sm:$0xff]
    %v1347 = vld [vmem:[#allocation8 + $0x5f0] sm:$0xff]
    %v1348 = vld [vmem:[#allocation8 + $0x5f8] sm:$0xff]
    %v1349 = vld [vmem:[#allocation8 + $0x600] sm:$0xff]
    %v1350 = vld [vmem:[#allocation8 + $0x608] sm:$0xff]
    %v1351 = vld [vmem:[#allocation8 + $0x610] sm:$0xff]
    %v1352 = vld [vmem:[#allocation8 + $0x618] sm:$0xff]
    %v1353 = vld [vmem:[#allocation8 + $0x620] sm:$0xff]
    %v1354 = vld [vmem:[#allocation8 + $0x628] sm:$0xff]
    %v1355 = vld [vmem:[#allocation8 + $0x630] sm:$0xff]
    %v1356 = vld [vmem:[#allocation8 + $0x638] sm:$0xff]
    %v1357 = vld [vmem:[#allocation8 + $0x640] sm:$0xff]
    %v1358 = vld [vmem:[#allocation8 + $0x648] sm:$0xff]
    %v1359 = vld [vmem:[#allocation8 + $0x650] sm:$0xff]
    %v1360 = vld [vmem:[#allocation8 + $0x658] sm:$0xff]
    %v1361 = vld [vmem:[#allocation8 + $0x660] sm:$0xff]
    %v1362 = vld [vmem:[#allocation8 + $0x668] sm:$0xff]
    %v1363 = vld [vmem:[#allocation8 + $0x670] sm:$0xff]
    %v1364 = vld [vmem:[#allocation8 + $0x678] sm:$0xff]
    %v1365 = vld [vmem:[#allocation8 + $0x680] sm:$0xff]
    %v1366 = vld [vmem:[#allocation8 + $0x688] sm:$0xff]
    %v1367 = vld [vmem:[#allocation8 + $0x690] sm:$0xff]
    %v1368 = vld [vmem:[#allocation8 + $0x698] sm:$0xff]
    %v1369 = vld [vmem:[#allocation8 + $0x6a0] sm:$0xff]
    %v1370 = vld [vmem:[#allocation8 + $0x6a8] sm:$0xff]
    %v1371 = vld [vmem:[#allocation8 + $0x6b0] sm:$0xff]
    %v1372 = vld [vmem:[#allocation8 + $0x6b8] sm:$0xff]
    %v1373 = vld [vmem:[#allocation8 + $0x6c0] sm:$0xff]
    %v1374 = vld [vmem:[#allocation8 + $0x6c8] sm:$0xff]
    %v1375 = vld [vmem:[#allocation8 + $0x6d0] sm:$0xff]
    %v1376 = vld [vmem:[#allocation8 + $0x6d8] sm:$0xff]
    %v1377 = vld [vmem:[#allocation8 + $0x6e0] sm:$0xff]
    %v1378 = vld [vmem:[#allocation8 + $0x6e8] sm:$0xff]
    %v1379 = vld [vmem:[#allocation8 + $0x6f0] sm:$0xff]
    %v1380 = vld [vmem:[#allocation8 + $0x6f8] sm:$0xff]
    %v1381 = vld [vmem:[#allocation8 + $0x700] sm:$0xff]
    %v1382 = vld [vmem:[#allocation8 + $0x708] sm:$0xff]
    %v1383 = vld [vmem:[#allocation8 + $0x710] sm:$0xff]
    %v1384 = vld [vmem:[#allocation8 + $0x718] sm:$0xff]
    %v1385 = vld [vmem:[#allocation8 + $0x720] sm:$0xff]
    %v1386 = vld [vmem:[#allocation8 + $0x728] sm:$0xff]
    %v1387 = vld [vmem:[#allocation8 + $0x730] sm:$0xff]
    %v1388 = vld [vmem:[#allocation8 + $0x738] sm:$0xff]
    %v1389 = vld [vmem:[#allocation8 + $0x740] sm:$0xff]
    %v1390 = vld [vmem:[#allocation8 + $0x748] sm:$0xff]
    %v1391 = vld [vmem:[#allocation8 + $0x750] sm:$0xff]
    %v1392 = vld [vmem:[#allocation8 + $0x758] sm:$0xff]
    %v1393 = vld [vmem:[#allocation8 + $0x760] sm:$0xff]
    %v1394 = vld [vmem:[#allocation8 + $0x768] sm:$0xff]
    %v1395 = vld [vmem:[#allocation8 + $0x770] sm:$0xff]
    %v1396 = vld [vmem:[#allocation8 + $0x778] sm:$0xff]
    %v1397 = vld [vmem:[#allocation8 + $0x780] sm:$0xff]
    %v1398 = vld [vmem:[#allocation8 + $0x788] sm:$0xff]
    %v1399 = vld [vmem:[#allocation8 + $0x790] sm:$0xff]
    %v1400 = vld [vmem:[#allocation8 + $0x798] sm:$0xff]
    %v1401 = vld [vmem:[#allocation8 + $0x7a0] sm:$0xff]
    %v1402 = vld [vmem:[#allocation8 + $0x7a8] sm:$0xff]
    %v1403 = vld [vmem:[#allocation8 + $0x7b0] sm:$0xff]
    %v1404 = vld [vmem:[#allocation8 + $0x7b8] sm:$0xff]
    %v1405 = vld [vmem:[#allocation8 + $0x7c0] sm:$0xff]
    %v1406 = vld [vmem:[#allocation8 + $0x7c8] sm:$0xff]
    %v1407 = vld [vmem:[#allocation8 + $0x7d0] sm:$0xff]
    %v1408 = vld [vmem:[#allocation8 + $0x7d8] sm:$0xff]
    %v1409 = vld [vmem:[#allocation8 + $0x7e0] sm:$0xff]
    %v1410 = vld [vmem:[#allocation8 + $0x7e8] sm:$0xff]
    %v1411 = vld [vmem:[#allocation8 + $0x7f0] sm:$0xff]
    %v1412 = vld [vmem:[#allocation8 + $0x7f8] sm:$0xff]
    %v1413 = vld [vmem:[#allocation10] sm:$0xf]
    %v1415 = vperm.slane %v1413, 0
    %v1416 = vperm.slane %v1413, 1
    %v1417 = vperm.slane %v1413, 2
    %v1418 = vperm.slane %v1413, 3
    %1423 = vmatpush.msra.mxu0 %v1217
    %1424 = vmatpush.msra.mxu0 %v1213
    %1425 = vmatpush.msra.mxu0 %v1209
    %1426 = vmatpush.msra.mxu0 %v1205
    %1427 = vmatpush.msra.mxu0 %v1201
    %1428 = vmatpush.msra.mxu0 %v1197
    %1429 = vmatpush.msra.mxu0 %v1193
    %1430 = vmatpush.msra.mxu0 %v1189
    %1431 = vmatpush.msra.mxu0 %v1185
    %1432 = vmatpush.msra.mxu0 %v1181
    %1433 = vmatpush.msra.mxu0 %v1177
    %1434 = vmatpush.msra.mxu0 %v1173
    %1435 = vmatpush.msra.mxu0 %v1169
    %1436 = vmatpush.msra.mxu0 %v1165
    %1437 = vmatpush.msra.mxu0 %v1161
    %1438 = vmatpush.msra.mxu0 %v1157
    %1439 = vmatmul.f32.gmra.mxu0 %v1153
    %v1440 = vpop.f32.mrf.mxu0
    %v1441 = vadd.f32 %v1415, %v1440
    %1442 = vdwg.mxu0
    %1443 = vmatpush.msra.mxu0 %v1281
    %1444 = vmatpush.msra.mxu0 %v1277
    %1445 = vmatpush.msra.mxu0 %v1273
    %1446 = vmatpush.msra.mxu0 %v1269
    %1447 = vmatpush.msra.mxu0 %v1265
    %1448 = vmatpush.msra.mxu0 %v1261
    %1449 = vmatpush.msra.mxu0 %v1257
    %1450 = vmatpush.msra.mxu0 %v1253
    %1451 = vmatpush.msra.mxu0 %v1249
    %1452 = vmatpush.msra.mxu0 %v1245
    %1453 = vmatpush.msra.mxu0 %v1241
    %1454 = vmatpush.msra.mxu0 %v1237
    %1455 = vmatpush.msra.mxu0 %v1233
    %1456 = vmatpush.msra.mxu0 %v1229
    %1457 = vmatpush.msra.mxu0 %v1225
    %1458 = vmatpush.msra.mxu0 %v1221
    %1459 = vmatmul.f32.gmra.mxu0 %v1154
    %v1460 = vpop.f32.mrf.mxu0
    %v1461 = vadd.f32 %v1441, %v1460
    %1462 = vdwg.mxu0
    %1463 = vmatpush.msra.mxu0 %v1345
    %1464 = vmatpush.msra.mxu0 %v1341
    %1465 = vmatpush.msra.mxu0 %v1337
    %1466 = vmatpush.msra.mxu0 %v1333
    %1467 = vmatpush.msra.mxu0 %v1329
    %1468 = vmatpush.msra.mxu0 %v1325
    %1469 = vmatpush.msra.mxu0 %v1321
    %1470 = vmatpush.msra.mxu0 %v1317
    %1471 = vmatpush.msra.mxu0 %v1313
    %1472 = vmatpush.msra.mxu0 %v1309
    %1473 = vmatpush.msra.mxu0 %v1305
    %1474 = vmatpush.msra.mxu0 %v1301
    %1475 = vmatpush.msra.mxu0 %v1297
    %1476 = vmatpush.msra.mxu0 %v1293
    %1477 = vmatpush.msra.mxu0 %v1289
    %1478 = vmatpush.msra.mxu0 %v1285
    %1479 = vmatmul.f32.gmra.mxu0 %v1155
    %v1480 = vpop.f32.mrf.mxu0
    %v1481 = vadd.f32 %v1461, %v1480
    %1482 = vdwg.mxu0
    %1483 = vmatpush.msra.mxu0 %v1409
    %1484 = vmatpush.msra.mxu0 %v1405
    %1485 = vmatpush.msra.mxu0 %v1401
    %1486 = vmatpush.msra.mxu0 %v1397
    %1487 = vmatpush.msra.mxu0 %v1393
    %1488 = vmatpush.msra.mxu0 %v1389
    %1489 = vmatpush.msra.mxu0 %v1385
    %1490 = vmatpush.msra.mxu0 %v1381
    %1491 = vmatpush.msra.mxu0 %v1377
    %1492 = vmatpush.msra.mxu0 %v1373
    %1493 = vmatpush.msra.mxu0 %v1369
    %1494 = vmatpush.msra.mxu0 %v1365
    %1495 = vmatpush.msra.mxu0 %v1361
    %1496 = vmatpush.msra.mxu0 %v1357
    %1497 = vmatpush.msra.mxu0 %v1353
    %1498 = vmatpush.msra.mxu0 %v1349
    %1499 = vmatmul.f32.gmra.mxu0 %v1156
    %v1500 = vpop.f32.mrf.mxu0
    %v1501 = vadd.f32 %v1481, %v1500
    %1502 = vdwg.mxu0
    %1503 = vmatpush.msra.mxu0 %v1218
    %1504 = vmatpush.msra.mxu0 %v1214
    %1505 = vmatpush.msra.mxu0 %v1210
    %1506 = vmatpush.msra.mxu0 %v1206
    %1507 = vmatpush.msra.mxu0 %v1202
    %1508 = vmatpush.msra.mxu0 %v1198
    %1509 = vmatpush.msra.mxu0 %v1194
    %1510 = vmatpush.msra.mxu0 %v1190
    %1511 = vmatpush.msra.mxu0 %v1186
    %1512 = vmatpush.msra.mxu0 %v1182
    %1513 = vmatpush.msra.mxu0 %v1178
    %1514 = vmatpush.msra.mxu0 %v1174
    %1515 = vmatpush.msra.mxu0 %v1170
    %1516 = vmatpush.msra.mxu0 %v1166
    %1517 = vmatpush.msra.mxu0 %v1162
    %1518 = vmatpush.msra.mxu0 %v1158
    %1519 = vmatmul.f32.gmra.mxu0 %v1153
    %v1520 = vpop.f32.mrf.mxu0
    %v1521 = vadd.f32 %v1416, %v1520
    %1522 = vdwg.mxu0
    %1523 = vmatpush.msra.mxu0 %v1282
    %1524 = vmatpush.msra.mxu0 %v1278
    %1525 = vmatpush.msra.mxu0 %v1274
    %1526 = vmatpush.msra.mxu0 %v1270
    %1527 = vmatpush.msra.mxu0 %v1266
    %1528 = vmatpush.msra.mxu0 %v1262
    %1529 = vmatpush.msra.mxu0 %v1258
    %1530 = vmatpush.msra.mxu0 %v1254
    %1531 = vmatpush.msra.mxu0 %v1250
    %1532 = vmatpush.msra.mxu0 %v1246
    %1533 = vmatpush.msra.mxu0 %v1242
    %1534 = vmatpush.msra.mxu0 %v1238
    %1535 = vmatpush.msra.mxu0 %v1234
    %1536 = vmatpush.msra.mxu0 %v1230
    %1537 = vmatpush.msra.mxu0 %v1226
    %1538 = vmatpush.msra.mxu0 %v1222
    %1539 = vmatmul.f32.gmra.mxu0 %v1154
    %v1540 = vpop.f32.mrf.mxu0
    %v1541 = vadd.f32 %v1521, %v1540
    %1542 = vdwg.mxu0
    %1543 = vmatpush.msra.mxu0 %v1346
    %1544 = vmatpush.msra.mxu0 %v1342
    %1545 = vmatpush.msra.mxu0 %v1338
    %1546 = vmatpush.msra.mxu0 %v1334
    %1547 = vmatpush.msra.mxu0 %v1330
    %1548 = vmatpush.msra.mxu0 %v1326
    %1549 = vmatpush.msra.mxu0 %v1322
    %1550 = vmatpush.msra.mxu0 %v1318
    %1551 = vmatpush.msra.mxu0 %v1314
    %1552 = vmatpush.msra.mxu0 %v1310
    %1553 = vmatpush.msra.mxu0 %v1306
    %1554 = vmatpush.msra.mxu0 %v1302
    %1555 = vmatpush.msra.mxu0 %v1298
    %1556 = vmatpush.msra.mxu0 %v1294
    %1557 = vmatpush.msra.mxu0 %v1290
    %1558 = vmatpush.msra.mxu0 %v1286
    %1559 = vmatmul.f32.gmra.mxu0 %v1155
    %v1560 = vpop.f32.mrf.mxu0
    %v1561 = vadd.f32 %v1541, %v1560
    %1562 = vdwg.mxu0
    %1563 = vmatpush.msra.mxu0 %v1410
    %1564 = vmatpush.msra.mxu0 %v1406
    %1565 = vmatpush.msra.mxu0 %v1402
    %1566 = vmatpush.msra.mxu0 %v1398
    %1567 = vmatpush.msra.mxu0 %v1394
    %1568 = vmatpush.msra.mxu0 %v1390
    %1569 = vmatpush.msra.mxu0 %v1386
    %1570 = vmatpush.msra.mxu0 %v1382
    %1571 = vmatpush.msra.mxu0 %v1378
    %1572 = vmatpush.msra.mxu0 %v1374
    %1573 = vmatpush.msra.mxu0 %v1370
    %1574 = vmatpush.msra.mxu0 %v1366
    %1575 = vmatpush.msra.mxu0 %v1362
    %1576 = vmatpush.msra.mxu0 %v1358
    %1577 = vmatpush.msra.mxu0 %v1354
    %1578 = vmatpush.msra.mxu0 %v1350
    %1579 = vmatmul.f32.gmra.mxu0 %v1156
    %v1580 = vpop.f32.mrf.mxu0
    %v1581 = vadd.f32 %v1561, %v1580
    %1582 = vdwg.mxu0
    %1583 = vmatpush.msra.mxu0 %v1219
    %1584 = vmatpush.msra.mxu0 %v1215
    %1585 = vmatpush.msra.mxu0 %v1211
    %1586 = vmatpush.msra.mxu0 %v1207
    %1587 = vmatpush.msra.mxu0 %v1203
    %1588 = vmatpush.msra.mxu0 %v1199
    %1589 = vmatpush.msra.mxu0 %v1195
    %1590 = vmatpush.msra.mxu0 %v1191
    %1591 = vmatpush.msra.mxu0 %v1187
    %1592 = vmatpush.msra.mxu0 %v1183
    %1593 = vmatpush.msra.mxu0 %v1179
    %1594 = vmatpush.msra.mxu0 %v1175
    %1595 = vmatpush.msra.mxu0 %v1171
    %1596 = vmatpush.msra.mxu0 %v1167
    %1597 = vmatpush.msra.mxu0 %v1163
    %1598 = vmatpush.msra.mxu0 %v1159
    %1599 = vmatmul.f32.gmra.mxu0 %v1153
    %v1600 = vpop.f32.mrf.mxu0
    %v1601 = vadd.f32 %v1417, %v1600
    %1602 = vdwg.mxu0
    %1603 = vmatpush.msra.mxu0 %v1283
    %1604 = vmatpush.msra.mxu0 %v1279
    %1605 = vmatpush.msra.mxu0 %v1275
    %1606 = vmatpush.msra.mxu0 %v1271
    %1607 = vmatpush.msra.mxu0 %v1267
    %1608 = vmatpush.msra.mxu0 %v1263
    %1609 = vmatpush.msra.mxu0 %v1259
    %1610 = vmatpush.msra.mxu0 %v1255
    %1611 = vmatpush.msra.mxu0 %v1251
    %1612 = vmatpush.msra.mxu0 %v1247
    %1613 = vmatpush.msra.mxu0 %v1243
    %1614 = vmatpush.msra.mxu0 %v1239
    %1615 = vmatpush.msra.mxu0 %v1235
    %1616 = vmatpush.msra.mxu0 %v1231
    %1617 = vmatpush.msra.mxu0 %v1227
    %1618 = vmatpush.msra.mxu0 %v1223
    %1619 = vmatmul.f32.gmra.mxu0 %v1154
    %v1620 = vpop.f32.mrf.mxu0
    %v1621 = vadd.f32 %v1601, %v1620
    %1622 = vdwg.mxu0
    %1623 = vmatpush.msra.mxu0 %v1347
    %1624 = vmatpush.msra.mxu0 %v1343
    %1625 = vmatpush.msra.mxu0 %v1339
    %1626 = vmatpush.msra.mxu0 %v1335
    %1627 = vmatpush.msra.mxu0 %v1331
    %1628 = vmatpush.msra.mxu0 %v1327
    %1629 = vmatpush.msra.mxu0 %v1323
    %1630 = vmatpush.msra.mxu0 %v1319
    %1631 = vmatpush.msra.mxu0 %v1315
    %1632 = vmatpush.msra.mxu0 %v1311
    %1633 = vmatpush.msra.mxu0 %v1307
    %1634 = vmatpush.msra.mxu0 %v1303
    %1635 = vmatpush.msra.mxu0 %v1299
    %1636 = vmatpush.msra.mxu0 %v1295
    %1637 = vmatpush.msra.mxu0 %v1291
    %1638 = vmatpush.msra.mxu0 %v1287
    %1639 = vmatmul.f32.gmra.mxu0 %v1155
    %v1640 = vpop.f32.mrf.mxu0
    %v1641 = vadd.f32 %v1621, %v1640
    %1642 = vdwg.mxu0
    %1643 = vmatpush.msra.mxu0 %v1411
    %1644 = vmatpush.msra.mxu0 %v1407
    %1645 = vmatpush.msra.mxu0 %v1403
    %1646 = vmatpush.msra.mxu0 %v1399
    %1647 = vmatpush.msra.mxu0 %v1395
    %1648 = vmatpush.msra.mxu0 %v1391
    %1649 = vmatpush.msra.mxu0 %v1387
    %1650 = vmatpush.msra.mxu0 %v1383
    %1651 = vmatpush.msra.mxu0 %v1379
    %1652 = vmatpush.msra.mxu0 %v1375
    %1653 = vmatpush.msra.mxu0 %v1371
    %1654 = vmatpush.msra.mxu0 %v1367
    %1655 = vmatpush.msra.mxu0 %v1363
    %1656 = vmatpush.msra.mxu0 %v1359
    %1657 = vmatpush.msra.mxu0 %v1355
    %1658 = vmatpush.msra.mxu0 %v1351
    %1659 = vmatmul.f32.gmra.mxu0 %v1156
    %v1660 = vpop.f32.mrf.mxu0
    %v1661 = vadd.f32 %v1641, %v1660
    %1662 = vdwg.mxu0
    %1663 = vmatpush.msra.mxu0 %v1220
    %1664 = vmatpush.msra.mxu0 %v1216
    %1665 = vmatpush.msra.mxu0 %v1212
    %1666 = vmatpush.msra.mxu0 %v1208
    %1667 = vmatpush.msra.mxu0 %v1204
    %1668 = vmatpush.msra.mxu0 %v1200
    %1669 = vmatpush.msra.mxu0 %v1196
    %1670 = vmatpush.msra.mxu0 %v1192
    %1671 = vmatpush.msra.mxu0 %v1188
    %1672 = vmatpush.msra.mxu0 %v1184
    %1673 = vmatpush.msra.mxu0 %v1180
    %1674 = vmatpush.msra.mxu0 %v1176
    %1675 = vmatpush.msra.mxu0 %v1172
    %1676 = vmatpush.msra.mxu0 %v1168
    %1677 = vmatpush.msra.mxu0 %v1164
    %1678 = vmatpush.msra.mxu0 %v1160
    %1679 = vmatmul.f32.gmra.mxu0 %v1153
    %v1680 = vpop.f32.mrf.mxu0
    %v1681 = vadd.f32 %v1418, %v1680
    %1682 = vdwg.mxu0
    %1683 = vmatpush.msra.mxu0 %v1284
    %1684 = vmatpush.msra.mxu0 %v1280
    %1685 = vmatpush.msra.mxu0 %v1276
    %1686 = vmatpush.msra.mxu0 %v1272
    %1687 = vmatpush.msra.mxu0 %v1268
    %1688 = vmatpush.msra.mxu0 %v1264
    %1689 = vmatpush.msra.mxu0 %v1260
    %1690 = vmatpush.msra.mxu0 %v1256
    %1691 = vmatpush.msra.mxu0 %v1252
    %1692 = vmatpush.msra.mxu0 %v1248
    %1693 = vmatpush.msra.mxu0 %v1244
    %1694 = vmatpush.msra.mxu0 %v1240
    %1695 = vmatpush.msra.mxu0 %v1236
    %1696 = vmatpush.msra.mxu0 %v1232
    %1697 = vmatpush.msra.mxu0 %v1228
    %1698 = vmatpush.msra.mxu0 %v1224
    %1699 = vmatmul.f32.gmra.mxu0 %v1154
    %v1700 = vpop.f32.mrf.mxu0
    %v1701 = vadd.f32 %v1681, %v1700
    %1702 = vdwg.mxu0
    %1703 = vmatpush.msra.mxu0 %v1348
    %1704 = vmatpush.msra.mxu0 %v1344
    %1705 = vmatpush.msra.mxu0 %v1340
    %1706 = vmatpush.msra.mxu0 %v1336
    %1707 = vmatpush.msra.mxu0 %v1332
    %1708 = vmatpush.msra.mxu0 %v1328
    %1709 = vmatpush.msra.mxu0 %v1324
    %1710 = vmatpush.msra.mxu0 %v1320
    %1711 = vmatpush.msra.mxu0 %v1316
    %1712 = vmatpush.msra.mxu0 %v1312
    %1713 = vmatpush.msra.mxu0 %v1308
    %1714 = vmatpush.msra.mxu0 %v1304
    %1715 = vmatpush.msra.mxu0 %v1300
    %1716 = vmatpush.msra.mxu0 %v1296
    %1717 = vmatpush.msra.mxu0 %v1292
    %1718 = vmatpush.msra.mxu0 %v1288
    %1719 = vmatmul.f32.gmra.mxu0 %v1155
    %v1720 = vpop.f32.mrf.mxu0
    %v1721 = vadd.f32 %v1701, %v1720
    %1722 = vdwg.mxu0
    %1723 = vmatpush.msra.mxu0 %v1412
    %1724 = vmatpush.msra.mxu0 %v1408
    %1725 = vmatpush.msra.mxu0 %v1404
    %1726 = vmatpush.msra.mxu0 %v1400
    %1727 = vmatpush.msra.mxu0 %v1396
    %1728 = vmatpush.msra.mxu0 %v1392
    %1729 = vmatpush.msra.mxu0 %v1388
    %1730 = vmatpush.msra.mxu0 %v1384
    %1731 = vmatpush.msra.mxu0 %v1380
    %1732 = vmatpush.msra.mxu0 %v1376
    %1733 = vmatpush.msra.mxu0 %v1372
    %1734 = vmatpush.msra.mxu0 %v1368
    %1735 = vmatpush.msra.mxu0 %v1364
    %1736 = vmatpush.msra.mxu0 %v1360
    %1737 = vmatpush.msra.mxu0 %v1356
    %1738 = vmatpush.msra.mxu0 %v1352
    %1739 = vmatmul.f32.gmra.mxu0 %v1156
    %v1740 = vpop.f32.mrf.mxu0
    %v1741 = vadd.f32 %v1721, %v1740
    %1742 = vdwg.mxu0
    %v1743 = vmax.f32 %v1501, 0.0
    %v1744 = vmax.f32 %v1581, 0.0
    %v1745 = vmax.f32 %v1661, 0.0
    %v1746 = vmax.f32 %v1741, 0.0
    %v1747 = vld [vmem:[#allocation11] sm:$0xff]
    %v1748 = vld [vmem:[#allocation11 + $0x8] sm:$0xff]
    %v1749 = vld [vmem:[#allocation11 + $0x10] sm:$0xff]
    %v1750 = vld [vmem:[#allocation11 + $0x18] sm:$0xff]
    %v1751 = vld [vmem:[#allocation11 + $0x20] sm:$0xff]
    %v1752 = vld [vmem:[#allocation11 + $0x28] sm:$0xff]
    %v1753 = vld [vmem:[#allocation11 + $0x30] sm:$0xff]
    %v1754 = vld [vmem:[#allocation11 + $0x38] sm:$0xff]
    %v1755 = vld [vmem:[#allocation11 + $0x40] sm:$0xff]
    %v1756 = vld [vmem:[#allocation11 + $0x48] sm:$0xff]
    %v1757 = vld [vmem:[#allocation11 + $0x50] sm:$0xff]
    %v1758 = vld [vmem:[#allocation11 + $0x58] sm:$0xff]
    %v1759 = vld [vmem:[#allocation11 + $0x60] sm:$0xff]
    %v1760 = vld [vmem:[#allocation11 + $0x68] sm:$0xff]
    %v1761 = vld [vmem:[#allocation11 + $0x70] sm:$0xff]
    %v1762 = vld [vmem:[#allocation11 + $0x78] sm:$0xff]
    %v1763 = vld [vmem:[#allocation11 + $0x80] sm:$0xff]
    %v1764 = vld [vmem:[#allocation11 + $0x88] sm:$0xff]
    %v1765 = vld [vmem:[#allocation11 + $0x90] sm:$0xff]
    %v1766 = vld [vmem:[#allocation11 + $0x98] sm:$0xff]
    %v1767 = vld [vmem:[#allocation11 + $0xa0] sm:$0xff]
    %v1768 = vld [vmem:[#allocation11 + $0xa8] sm:$0xff]
    %v1769 = vld [vmem:[#allocation11 + $0xb0] sm:$0xff]
    %v1770 = vld [vmem:[#allocation11 + $0xb8] sm:$0xff]
    %v1771 = vld [vmem:[#allocation11 + $0xc0] sm:$0xff]
    %v1772 = vld [vmem:[#allocation11 + $0xc8] sm:$0xff]
    %v1773 = vld [vmem:[#allocation11 + $0xd0] sm:$0xff]
    %v1774 = vld [vmem:[#allocation11 + $0xd8] sm:$0xff]
    %v1775 = vld [vmem:[#allocation11 + $0xe0] sm:$0xff]
    %v1776 = vld [vmem:[#allocation11 + $0xe8] sm:$0xff]
    %v1777 = vld [vmem:[#allocation11 + $0xf0] sm:$0xff]
    %v1778 = vld [vmem:[#allocation11 + $0xf8] sm:$0xff]
    %v1779 = vld [vmem:[#allocation11 + $0x100] sm:$0xff]
    %v1780 = vld [vmem:[#allocation11 + $0x108] sm:$0xff]
    %v1781 = vld [vmem:[#allocation11 + $0x110] sm:$0xff]
    %v1782 = vld [vmem:[#allocation11 + $0x118] sm:$0xff]
    %v1783 = vld [vmem:[#allocation11 + $0x120] sm:$0xff]
    %v1784 = vld [vmem:[#allocation11 + $0x128] sm:$0xff]
    %v1785 = vld [vmem:[#allocation11 + $0x130] sm:$0xff]
    %v1786 = vld [vmem:[#allocation11 + $0x138] sm:$0xff]
    %v1787 = vld [vmem:[#allocation11 + $0x140] sm:$0xff]
    %v1788 = vld [vmem:[#allocation11 + $0x148] sm:$0xff]
    %v1789 = vld [vmem:[#allocation11 + $0x150] sm:$0xff]
    %v1790 = vld [vmem:[#allocation11 + $0x158] sm:$0xff]
    %v1791 = vld [vmem:[#allocation11 + $0x160] sm:$0xff]
    %v1792 = vld [vmem:[#allocation11 + $0x168] sm:$0xff]
    %v1793 = vld [vmem:[#allocation11 + $0x170] sm:$0xff]
    %v1794 = vld [vmem:[#allocation11 + $0x178] sm:$0xff]
    %v1795 = vld [vmem:[#allocation11 + $0x180] sm:$0xff]
    %v1796 = vld [vmem:[#allocation11 + $0x188] sm:$0xff]
    %v1797 = vld [vmem:[#allocation11 + $0x190] sm:$0xff]
    %v1798 = vld [vmem:[#allocation11 + $0x198] sm:$0xff]
    %v1799 = vld [vmem:[#allocation11 + $0x1a0] sm:$0xff]
    %v1800 = vld [vmem:[#allocation11 + $0x1a8] sm:$0xff]
    %v1801 = vld [vmem:[#allocation11 + $0x1b0] sm:$0xff]
    %v1802 = vld [vmem:[#allocation11 + $0x1b8] sm:$0xff]
    %v1803 = vld [vmem:[#allocation11 + $0x1c0] sm:$0xff]
    %v1804 = vld [vmem:[#allocation11 + $0x1c8] sm:$0xff]
    %v1805 = vld [vmem:[#allocation11 + $0x1d0] sm:$0xff]
    %v1806 = vld [vmem:[#allocation11 + $0x1d8] sm:$0xff]
    %v1807 = vld [vmem:[#allocation11 + $0x1e0] sm:$0xff]
    %v1808 = vld [vmem:[#allocation11 + $0x1e8] sm:$0xff]
    %v1809 = vld [vmem:[#allocation11 + $0x1f0] sm:$0xff]
    %v1810 = vld [vmem:[#allocation11 + $0x1f8] sm:$0xff]
    %v1811 = vld [vmem:[#allocation13] sm:$0x1]
    %v1813 = vperm.slane %v1811, 0
    %1815 = vmatpush.msra.mxu0 %v1762
    %1816 = vmatpush.msra.mxu0 %v1761
    %1817 = vmatpush.msra.mxu0 %v1760
    %1818 = vmatpush.msra.mxu0 %v1759
    %1819 = vmatpush.msra.mxu0 %v1758
    %1820 = vmatpush.msra.mxu0 %v1757
    %1821 = vmatpush.msra.mxu0 %v1756
    %1822 = vmatpush.msra.mxu0 %v1755
    %1823 = vmatpush.msra.mxu0 %v1754
    %1824 = vmatpush.msra.mxu0 %v1753
    %1825 = vmatpush.msra.mxu0 %v1752
    %1826 = vmatpush.msra.mxu0 %v1751
    %1827 = vmatpush.msra.mxu0 %v1750
    %1828 = vmatpush.msra.mxu0 %v1749
    %1829 = vmatpush.msra.mxu0 %v1748
    %1830 = vmatpush.msra.mxu0 %v1747
    %1831 = vmatmul.f32.gmra.mxu0 %v1743
    %v1832 = vpop.f32.mrf.mxu0
    %v1833 = vadd.f32 %v1813, %v1832
    %1834 = vdwg.mxu0
    %1835 = vmatpush.msra.mxu0 %v1778
    %1836 = vmatpush.msra.mxu0 %v1777
    %1837 = vmatpush.msra.mxu0 %v1776
    %1838 = vmatpush.msra.mxu0 %v1775
    %1839 = vmatpush.msra.mxu0 %v1774
    %1840 = vmatpush.msra.mxu0 %v1773
    %1841 = vmatpush.msra.mxu0 %v1772
    %1842 = vmatpush.msra.mxu0 %v1771
    %1843 = vmatpush.msra.mxu0 %v1770
    %1844 = vmatpush.msra.mxu0 %v1769
    %1845 = vmatpush.msra.mxu0 %v1768
    %1846 = vmatpush.msra.mxu0 %v1767
    %1847 = vmatpush.msra.mxu0 %v1766
    %1848 = vmatpush.msra.mxu0 %v1765
    %1849 = vmatpush.msra.mxu0 %v1764
    %1850 = vmatpush.msra.mxu0 %v1763
    %1851 = vmatmul.f32.gmra.mxu0 %v1744
    %v1852 = vpop.f32.mrf.mxu0
    %v1853 = vadd.f32 %v1833, %v1852
    %1854 = vdwg.mxu0
    %1855 = vmatpush.msra.mxu0 %v1794
    %1856 = vmatpush.msra.mxu0 %v1793
    %1857 = vmatpush.msra.mxu0 %v1792
    %1858 = vmatpush.msra.mxu0 %v1791
    %1859 = vmatpush.msra.mxu0 %v1790
    %1860 = vmatpush.msra.mxu0 %v1789
    %1861 = vmatpush.msra.mxu0 %v1788
    %1862 = vmatpush.msra.mxu0 %v1787
    %1863 = vmatpush.msra.mxu0 %v1786
    %1864 = vmatpush.msra.mxu0 %v1785
    %1865 = vmatpush.msra.mxu0 %v1784
    %1866 = vmatpush.msra.mxu0 %v1783
    %1867 = vmatpush.msra.mxu0 %v1782
    %1868 = vmatpush.msra.mxu0 %v1781
    %1869 = vmatpush.msra.mxu0 %v1780
    %1870 = vmatpush.msra.mxu0 %v1779
    %1871 = vmatmul.f32.gmra.mxu0 %v1745
    %v1872 = vpop.f32.mrf.mxu0
    %v1873 = vadd.f32 %v1853, %v1872
    %1874 = vdwg.mxu0
    %1875 = vmatpush.msra.mxu0 %v1810
    %1876 = vmatpush.msra.mxu0 %v1809
    %1877 = vmatpush.msra.mxu0 %v1808
    %1878 = vmatpush.msra.mxu0 %v1807
    %1879 = vmatpush.msra.mxu0 %v1806
    %1880 = vmatpush.msra.mxu0 %v1805
    %1881 = vmatpush.msra.mxu0 %v1804
    %1882 = vmatpush.msra.mxu0 %v1803
    %1883 = vmatpush.msra.mxu0 %v1802
    %1884 = vmatpush.msra.mxu0 %v1801
    %1885 = vmatpush.msra.mxu0 %v1800
    %1886 = vmatpush.msra.mxu0 %v1799
    %1887 = vmatpush.msra.mxu0 %v1798
    %1888 = vmatpush.msra.mxu0 %v1797
    %1889 = vmatpush.msra.mxu0 %v1796
    %1890 = vmatpush.msra.mxu0 %v1795
    %1891 = vmatmul.f32.gmra.mxu0 %v1746
    %v1892 = vpop.f32.mrf.mxu0
    %v1893 = vadd.f32 %v1873, %v1892
    %1894 = vdwg.mxu0
    %1895 = vst [vmem:[#allocation14] sm:$0xff] %v1893
    // Predicated region
    $region58: #{tpu_custom_call.1} parent=1 // pred_check
      _
    $region59: #{tpu_custom_call.1} parent=1 // pred_check_branch
      %1897 = sbr.rel (0) target = $region61
    $region60: #{tpu_custom_call.1} parent=1 // pred_region
      %1899 = vsyncadd [#allocation4], 0
      %s1901 = sshll.u32 [#allocation14], 4
      %s1902 = int_to_ptr.vmem [resolvable:$true] %s1901
      %s1903 = sshll.u32 %s7, 4
      %s1904 = int_to_ptr.hbm [resolvable:$true] %s1903
      %1906 = dma.vmem_to_hbm [thread:$0]  %s1902, 128, %s1904, [#allocation4]
    $region61: #{tpu_custom_call.1} parent=1 // pred_fallthru
      _
    // Predicated region
    $region62: #{tpu_custom_call.1} parent=1 // pred_check
      _
    $region63: #{tpu_custom_call.1} parent=1 // pred_check_branch
      %1908 = sbr.rel (0) target = $region65
    $region64: #{tpu_custom_call.1} parent=1 // pred_region
      %1910 = dma.done [#allocation4], 128
    $region65: #{tpu_custom_call.1} parent=1 // pred_fallthru
      _
    %1911 = vsyncpa [#allocation3], 1
    %1912 = vsyncpa [#allocation6], 1
    %1913 = vsyncpa [#allocation9], 1
    %1914 = vsyncpa [#allocation12], 1
    %1915 = vsyncpa [#allocation4], 1

// kernel: tpu_custom_call.1
$region0: #{tpu_custom_call.1}
  #allocation0 [shape = 'u32[]', space=smem, size = 0x4, offset = 0x4, fixed_abs, tag = 'smem constant byte address 0x4 - core index']
  #allocation1 [shape = 'u32[72,128]{1,0:T(1,128)}', space=vmem, size = 0x9000, scoped, tag = 'internal scratch']
  %s0 = inlined_call_operand.hbm [shape: f32[8,896], index: 0, kind: input, shape index: {}]
  %s1 = inlined_call_operand.hbm [shape: f32[896,512], index: 1, kind: input, shape index: {}]
  %s2 = inlined_call_operand.hbm [shape: f32[1,512], index: 2, kind: input, shape index: {}]
  %s3 = inlined_call_operand.hbm [shape: f32[512,512], index: 3, kind: input, shape index: {}]
  %s4 = inlined_call_operand.hbm [shape: f32[1,512], index: 4, kind: input, shape index: {}]
  %s5 = inlined_call_operand.hbm [shape: f32[512,128], index: 5, kind: input, shape index: {}]
  %s6 = inlined_call_operand.hbm [shape: f32[1,128], index: 6, kind: input, shape index: {}]
  %s7 = inlined_call_operand.hbm [shape: f32[8,128], index: 7, kind: output, shape index: {}]
  %s8 = sld [smem:[#allocation0]]
  $region66: #{tpu_custom_call.1} parent=0
    _
  %s10 = ssub.s32 1, %s8
  %s11 = scalar_select 0, %s10, %s8
  $region1: #{tpu_custom_call.1} parent=0
    #allocation2 [shape = 'u8[28672]{0}', space=vmem, size = 0x7000, scoped, tag = 'input window, operand 0, single buffered']
    #allocation3 [shape = 's32[1]{0}', space=sflag, size = 0x4, scoped, tag = 'scoped memory for tpu_custom_call.1']
    #allocation4 [shape = 's32[1]{0}', space=sflag, size = 0x4, scoped, tag = 'scoped memory for tpu_custom_call.1']
    #allocation5 [shape = 'u8[1835008]{0}', space=vmem, size = 0x1c0000, scoped, tag = 'input window, operand 1, single buffered']
    #allocation6 [shape = 's32[1]{0}', space=sflag, size = 0x4, scoped, tag = 'scoped memory for tpu_custom_call.1']
    #allocation7 [shape = 'u8[2048]{0}', space=vmem, size = 0x800, scoped, tag = 'input window, operand 2, single buffered']
    #allocation8 [shape = 'u8[1048576]{0}', space=vmem, size = 0x100000, scoped, tag = 'input window, operand 3, single buffered']
    #allocation9 [shape = 's32[1]{0}', space=sflag, size = 0x4, scoped, tag = 'scoped memory for tpu_custom_call.1']
    #allocation10 [shape = 'u8[2048]{0}', space=vmem, size = 0x800, scoped, tag = 'input window, operand 4, single buffered']
    #allocation11 [shape = 'u8[262144]{0}', space=vmem, size = 0x40000, scoped, tag = 'input window, operand 5, single buffered']
    #allocation12 [shape = 's32[1]{0}', space=sflag, size = 0x4, scoped, tag = 'scoped memory for tpu_custom_call.1']
    #allocation13 [shape = 'u8[512]{0}', space=vmem, size = 0x400, scoped, tag = 'input window, operand 6, single buffered']
    #allocation14 [shape = 'u8[4096]{0}', space=vmem, size = 0x1000, scoped, tag = 'output window, operand 0, single buffered']
    %12 = vsyncpa [#allocation3], 0
    %13 = vsyncpa [#allocation6], 0
    %14 = vsyncpa [#allocation9], 0
    %15 = vsyncpa [#allocation12], 0
    %16 = vsyncpa [#allocation4], 0
    // Predicated region
    $region2: #{tpu_custom_call.1} parent=1 // pred_check
      _
    $region3: #{tpu_custom_call.1} parent=1 // pred_check_branch
      %18 = sbr.rel (0) target = $region5
    $region4: #{tpu_custom_call.1} parent=1 // pred_region
      %20 = vsyncadd [#allocation3], 0
      %s22 = sshll.u32 %s0, 4
      %s23 = int_to_ptr.hbm [resolvable:$true] %s22
      %s24 = sshll.u32 [#allocation2], 4
      %s25 = int_to_ptr.vmem [resolvable:$true] %s24
      %27 = dma.hbm_to_vmem [thread:$0]  %s23, 896, %s25, [#allocation3]
    $region5: #{tpu_custom_call.1} parent=1 // pred_fallthru
      _
    // Predicated region
    $region6: #{tpu_custom_call.1} parent=1 // pred_check
      _
    $region7: #{tpu_custom_call.1} parent=1 // pred_check_branch
      %29 = sbr.rel (0) target = $region9
    $region8: #{tpu_custom_call.1} parent=1 // pred_region
      %31 = vsyncadd [#allocation6], 0
      %s32 = sshll.u32 %s1, 4
      %s33 = int_to_ptr.hbm [resolvable:$true] %s32
      %s34 = sshll.u32 [#allocation5], 4
      %s35 = int_to_ptr.vmem [resolvable:$true] %s34
      %40 = dma.hbm_to_vmem [thread:$0]  %s33, 57344, %s35, [#allocation6], 512, 512, 32
    $region9: #{tpu_custom_call.1} parent=1 // pred_fallthru
      _
    // Predicated region
    $region10: #{tpu_custom_call.1} parent=1 // pred_check
      _
    $region11: #{tpu_custom_call.1} parent=1 // pred_check_branch
      %42 = sbr.rel (0) target = $region13
    $region12: #{tpu_custom_call.1} parent=1 // pred_region
      %44 = vsyncadd [#allocation6], 0
      %s46 = sshll.u32 %s2, 4
      %s47 = int_to_ptr.hbm [resolvable:$true] %s46
      %s48 = sshll.u32 [#allocation7], 4
      %s49 = int_to_ptr.vmem [resolvable:$true] %s48
      %51 = dma.hbm_to_vmem [thread:$0]  %s47, 64, %s49, [#allocation6]
    $region13: #{tpu_custom_call.1} parent=1 // pred_fallthru
      _
    // Predicated region
    $region14: #{tpu_custom_call.1} parent=1 // pred_check
      _
    $region15: #{tpu_custom_call.1} parent=1 // pred_check_branch
      %53 = sbr.rel (0) target = $region17
    $region16: #{tpu_custom_call.1} parent=1 // pred_region
      %55 = vsyncadd [#allocation9], 0
      %s56 = sshll.u32 %s3, 4
      %s57 = int_to_ptr.hbm [resolvable:$true] %s56
      %s58 = sshll.u32 [#allocation8], 4
      %s59 = int_to_ptr.vmem [resolvable:$true] %s58
      %64 = dma.hbm_to_vmem [thread:$0]  %s57, 32768, %s59, [#allocation9], 512, 512, 32
    $region17: #{tpu_custom_call.1} parent=1 // pred_fallthru
      _
    // Predicated region
    $region18: #{tpu_custom_call.1} parent=1 // pred_check
      _
    $region19: #{tpu_custom_call.1} parent=1 // pred_check_branch
      %66 = sbr.rel (0) target = $region21
    $region20: #{tpu_custom_call.1} parent=1 // pred_region
      %68 = vsyncadd [#allocation9], 0
      %s70 = sshll.u32 %s4, 4
      %s71 = int_to_ptr.hbm [resolvable:$true] %s70
      %s72 = sshll.u32 [#allocation10], 4
      %s73 = int_to_ptr.vmem [resolvable:$true] %s72
      %75 = dma.hbm_to_vmem [thread:$0]  %s71, 64, %s73, [#allocation9]
    $region21: #{tpu_custom_call.1} parent=1 // pred_fallthru
      _
    // Predicated region
    $region22: #{tpu_custom_call.1} parent=1 // pred_check
      _
    $region23: #{tpu_custom_call.1} parent=1 // pred_check_branch
      %77 = sbr.rel (0) target = $region25
    $region24: #{tpu_custom_call.1} parent=1 // pred_region
      %79 = vsyncadd [#allocation12], 0
      %s80 = sshll.u32 %s5, 4
      %s81 = int_to_ptr.hbm [resolvable:$true] %s80
      %s82 = sshll.u32 [#allocation11], 4
      %s83 = int_to_ptr.vmem [resolvable:$true] %s82
      %88 = dma.hbm_to_vmem [thread:$0]  %s81, 8192, %s83, [#allocation12], 128, 128, 8
    $region25: #{tpu_custom_call.1} parent=1 // pred_fallthru
      _
    // Predicated region
    $region26: #{tpu_custom_call.1} parent=1 // pred_check
      _
    $region27: #{tpu_custom_call.1} parent=1 // pred_check_branch
      %90 = sbr.rel (0) target = $region29
    $region28: #{tpu_custom_call.1} parent=1 // pred_region
      %92 = vsyncadd [#allocation12], 0
      %s94 = sshll.u32 %s6, 4
      %s95 = int_to_ptr.hbm [resolvable:$true] %s94
      %s96 = sshll.u32 [#allocation13], 4
      %s97 = int_to_ptr.vmem [resolvable:$true] %s96
      %99 = dma.hbm_to_vmem [thread:$0]  %s95, 16, %s97, [#allocation12]
    $region29: #{tpu_custom_call.1} parent=1 // pred_fallthru
      _
    // Predicated region
    $region30: #{tpu_custom_call.1} parent=1 // pred_check
      _
    $region31: #{tpu_custom_call.1} parent=1 // pred_check_branch
      %101 = sbr.rel (0) target = $region33
    $region32: #{tpu_custom_call.1} parent=1 // pred_region
      %103 = dma.done [#allocation3], 896
    $region33: #{tpu_custom_call.1} parent=1 // pred_fallthru
      _
    // Predicated region
    $region34: #{tpu_custom_call.1} parent=1 // pred_check
      _
    $region35: #{tpu_custom_call.1} parent=1 // pred_check_branch
      %105 = sbr.rel (0) target = $region37
    $region36: #{tpu_custom_call.1} parent=1 // pred_region
      %107 = dma.done [#allocation6], 57344
    $region37: #{tpu_custom_call.1} parent=1 // pred_fallthru
      _
    // Predicated region
    $region38: #{tpu_custom_call.1} parent=1 // pred_check
      _
    $region39: #{tpu_custom_call.1} parent=1 // pred_check_branch
      %109 = sbr.rel (0) target = $region41
    $region40: #{tpu_custom_call.1} parent=1 // pred_region
      %111 = dma.done [#allocation6], 64
    $region41: #{tpu_custom_call.1} parent=1 // pred_fallthru
      _
    // Predicated region
    $region42: #{tpu_custom_call.1} parent=1 // pred_check
      _
    $region43: #{tpu_custom_call.1} parent=1 // pred_check_branch
      %113 = sbr.rel (0) target = $region45
    $region44: #{tpu_custom_call.1} parent=1 // pred_region
      %115 = dma.done [#allocation9], 32768
    $region45: #{tpu_custom_call.1} parent=1 // pred_fallthru
      _
    // Predicated region
    $region46: #{tpu_custom_call.1} parent=1 // pred_check
      _
    $region47: #{tpu_custom_call.1} parent=1 // pred_check_branch
      %117 = sbr.rel (0) target = $region49
    $region48: #{tpu_custom_call.1} parent=1 // pred_region
      %119 = dma.done [#allocation9], 64
    $region49: #{tpu_custom_call.1} parent=1 // pred_fallthru
      _
    // Predicated region
    $region50: #{tpu_custom_call.1} parent=1 // pred_check
      _
    $region51: #{tpu_custom_call.1} parent=1 // pred_check_branch
      %121 = sbr.rel (0) target = $region53
    $region52: #{tpu_custom_call.1} parent=1 // pred_region
      %123 = dma.done [#allocation12], 8192
    $region53: #{tpu_custom_call.1} parent=1 // pred_fallthru
      _
    // Predicated region
    $region54: #{tpu_custom_call.1} parent=1 // pred_check
      _
    $region55: #{tpu_custom_call.1} parent=1 // pred_check_branch
      %125 = sbr.rel (0) target = $region57
    $region56: #{tpu_custom_call.1} parent=1 // pred_region
      %127 = dma.done [#allocation12], 16
    $region57: #{tpu_custom_call.1} parent=1 // pred_fallthru
      _
    %v128 = vld [vmem:[#allocation2] sm:$0xff]
    %v129 = vld [vmem:[#allocation2 + $0x8] sm:$0xff]
    %v130 = vld [vmem:[#allocation2 + $0x10] sm:$0xff]
    %v131 = vld [vmem:[#allocation2 + $0x18] sm:$0xff]
    %v132 = vld [vmem:[#allocation2 + $0x20] sm:$0xff]
    %v133 = vld [vmem:[#allocation2 + $0x28] sm:$0xff]
    %v134 = vld [vmem:[#allocation2 + $0x30] sm:$0xff]
    %v135 = vld [vmem:[#allocation5] sm:$0xff]
    %v136 = vld [vmem:[#allocation5 + $0x8] sm:$0xff]
    %v137 = vld [vmem:[#allocation5 + $0x10] sm:$0xff]
    %v138 = vld [vmem:[#allocation5 + $0x18] sm:$0xff]
    %v139 = vld [vmem:[#allocation5 + $0x20] sm:$0xff]
    %v140 = vld [vmem:[#allocation5 + $0x28] sm:$0xff]
    %v141 = vld [vmem:[#allocation5 + $0x30] sm:$0xff]
    %v142 = vld [vmem:[#allocation5 + $0x38] sm:$0xff]
    %v143 = vld [vmem:[#allocation5 + $0x40] sm:$0xff]
    %v144 = vld [vmem:[#allocation5 + $0x48] sm:$0xff]
    %v145 = vld [vmem:[#allocation5 + $0x50] sm:$0xff]
    %v146 = vld [vmem:[#allocation5 + $0x58] sm:$0xff]
    %v147 = vld [vmem:[#allocation5 + $0x60] sm:$0xff]
    %v148 = vld [vmem:[#allocation5 + $0x68] sm:$0xff]
    %v149 = vld [vmem:[#allocation5 + $0x70] sm:$0xff]
    %v150 = vld [vmem:[#allocation5 + $0x78] sm:$0xff]
    %v151 = vld [vmem:[#allocation5 + $0x80] sm:$0xff]
    %v152 = vld [vmem:[#allocation5 + $0x88] sm:$0xff]
    %v153 = vld [vmem:[#allocation5 + $0x90] sm:$0xff]
    %v154 = vld [vmem:[#allocation5 + $0x98] sm:$0xff]
    %v155 = vld [vmem:[#allocation5 + $0xa0] sm:$0xff]
    %v156 = vld [vmem:[#allocation5 + $0xa8] sm:$0xff]
    %v157 = vld [vmem:[#allocation5 + $0xb0] sm:$0xff]
    %v158 = vld [vmem:[#allocation5 + $0xb8] sm:$0xff]
    %v159 = vld [vmem:[#allocation5 + $0xc0] sm:$0xff]
    %v160 = vld [vmem:[#allocation5 + $0xc8] sm:$0xff]
    %v161 = vld [vmem:[#allocation5 + $0xd0] sm:$0xff]
    %v162 = vld [vmem:[#allocation5 + $0xd8] sm:$0xff]
    %v163 = vld [vmem:[#allocation5 + $0xe0] sm:$0xff]
    %v164 = vld [vmem:[#allocation5 + $0xe8] sm:$0xff]
    %v165 = vld [vmem:[#allocation5 + $0xf0] sm:$0xff]
    %v166 = vld [vmem:[#allocation5 + $0xf8] sm:$0xff]
    %v167 = vld [vmem:[#allocation5 + $0x100] sm:$0xff]
    %v168 = vld [vmem:[#allocation5 + $0x108] sm:$0xff]
    %v169 = vld [vmem:[#allocation5 + $0x110] sm:$0xff]
    %v170 = vld [vmem:[#allocation5 + $0x118] sm:$0xff]
    %v171 = vld [vmem:[#allocation5 + $0x120] sm:$0xff]
    %v172 = vld [vmem:[#allocation5 + $0x128] sm:$0xff]
    %v173 = vld [vmem:[#allocation5 + $0x130] sm:$0xff]
    %v174 = vld [vmem:[#allocation5 + $0x138] sm:$0xff]
    %v175 = vld [vmem:[#allocation5 + $0x140] sm:$0xff]
    %v176 = vld [vmem:[#allocation5 + $0x148] sm:$0xff]
    %v177 = vld [vmem:[#allocation5 + $0x150] sm:$0xff]
    %v178 = vld [vmem:[#allocation5 + $0x158] sm:$0xff]
    %v179 = vld [vmem:[#allocation5 + $0x160] sm:$0xff]
    %v180 = vld [vmem:[#allocation5 + $0x168] sm:$0xff]
    %v181 = vld [vmem:[#allocation5 + $0x170] sm:$0xff]
    %v182 = vld [vmem:[#allocation5 + $0x178] sm:$0xff]
    %v183 = vld [vmem:[#allocation5 + $0x180] sm:$0xff]
    %v184 = vld [vmem:[#allocation5 + $0x188] sm:$0xff]
    %v185 = vld [vmem:[#allocation5 + $0x190] sm:$0xff]
    %v186 = vld [vmem:[#allocation5 + $0x198] sm:$0xff]
    %v187 = vld [vmem:[#allocation5 + $0x1a0] sm:$0xff]
    %v188 = vld [vmem:[#allocation5 + $0x1a8] sm:$0xff]
    %v189 = vld [vmem:[#allocation5 + $0x1b0] sm:$0xff]
    %v190 = vld [vmem:[#allocation5 + $0x1b8] sm:$0xff]
    %v191 = vld [vmem:[#allocation5 + $0x1c0] sm:$0xff]
    %v192 = vld [vmem:[#allocation5 + $0x1c8] sm:$0xff]
    %v193 = vld [vmem:[#allocation5 + $0x1d0] sm:$0xff]
    %v194 = vld [vmem:[#allocation5 + $0x1d8] sm:$0xff]
    %v195 = vld [vmem:[#allocation5 + $0x1e0] sm:$0xff]
    %v196 = vld [vmem:[#allocation5 + $0x1e8] sm:$0xff]
    %v197 = vld [vmem:[#allocation5 + $0x1f0] sm:$0xff]
    %v198 = vld [vmem:[#allocation5 + $0x1f8] sm:$0xff]
    %v199 = vld [vmem:[#allocation5 + $0x200] sm:$0xff]
    %v200 = vld [vmem:[#allocation5 + $0x208] sm:$0xff]
    %v201 = vld [vmem:[#allocation5 + $0x210] sm:$0xff]
    %v202 = vld [vmem:[#allocation5 + $0x218] sm:$0xff]
    %v203 = vld [vmem:[#allocation5 + $0x220] sm:$0xff]
    %v204 = vld [vmem:[#allocation5 + $0x228] sm:$0xff]
    %v205 = vld [vmem:[#allocation5 + $0x230] sm:$0xff]
    %v206 = vld [vmem:[#allocation5 + $0x238] sm:$0xff]
    %v207 = vld [vmem:[#allocation5 + $0x240] sm:$0xff]
    %v208 = vld [vmem:[#allocation5 + $0x248] sm:$0xff]
    %v209 = vld [vmem:[#allocation5 + $0x250] sm:$0xff]
    %v210 = vld [vmem:[#allocation5 + $0x258] sm:$0xff]
    %v211 = vld [vmem:[#allocation5 + $0x260] sm:$0xff]
    %v212 = vld [vmem:[#allocation5 + $0x268] sm:$0xff]
    %v213 = vld [vmem:[#allocation5 + $0x270] sm:$0xff]
    %v214 = vld [vmem:[#allocation5 + $0x278] sm:$0xff]
    %v215 = vld [vmem:[#allocation5 + $0x280] sm:$0xff]
    %v216 = vld [vmem:[#allocation5 + $0x288] sm:$0xff]
    %v217 = vld [vmem:[#allocation5 + $0x290] sm:$0xff]
    %v218 = vld [vmem:[#allocation5 + $0x298] sm:$0xff]
    %v219 = vld [vmem:[#allocation5 + $0x2a0] sm:$0xff]
    %v220 = vld [vmem:[#allocation5 + $0x2a8] sm:$0xff]
    %v221 = vld [vmem:[#allocation5 + $0x2b0] sm:$0xff]
    %v222 = vld [vmem:[#allocation5 + $0x2b8] sm:$0xff]
    %v223 = vld [vmem:[#allocation5 + $0x2c0] sm:$0xff]
    %v224 = vld [vmem:[#allocation5 + $0x2c8] sm:$0xff]
    %v225 = vld [vmem:[#allocation5 + $0x2d0] sm:$0xff]
    %v226 = vld [vmem:[#allocation5 + $0x2d8] sm:$0xff]
    %v227 = vld [vmem:[#allocation5 + $0x2e0] sm:$0xff]
    %v228 = vld [vmem:[#allocation5 + $0x2e8] sm:$0xff]
    %v229 = vld [vmem:[#allocation5 + $0x2f0] sm:$0xff]
    %v230 = vld [vmem:[#allocation5 + $0x2f8] sm:$0xff]
    %v231 = vld [vmem:[#allocation5 + $0x300] sm:$0xff]
    %v232 = vld [vmem:[#allocation5 + $0x308] sm:$0xff]
    %v233 = vld [vmem:[#allocation5 + $0x310] sm:$0xff]
    %v234 = vld [vmem:[#allocation5 + $0x318] sm:$0xff]
    %v235 = vld [vmem:[#allocation5 + $0x320] sm:$0xff]
    %v236 = vld [vmem:[#allocation5 + $0x328] sm:$0xff]
    %v237 = vld [vmem:[#allocation5 + $0x330] sm:$0xff]
    %v238 = vld [vmem:[#allocation5 + $0x338] sm:$0xff]
    %v239 = vld [vmem:[#allocation5 + $0x340] sm:$0xff]
    %v240 = vld [vmem:[#allocation5 + $0x348] sm:$0xff]
    %v241 = vld [vmem:[#allocation5 + $0x350] sm:$0xff]
    %v242 = vld [vmem:[#allocation5 + $0x358] sm:$0xff]
    %v243 = vld [vmem:[#allocation5 + $0x360] sm:$0xff]
    %v244 = vld [vmem:[#allocation5 + $0x368] sm:$0xff]
    %v245 = vld [vmem:[#allocation5 + $0x370] sm:$0xff]
    %v246 = vld [vmem:[#allocation5 + $0x378] sm:$0xff]
    %v247 = vld [vmem:[#allocation5 + $0x380] sm:$0xff]
    %v248 = vld [vmem:[#allocation5 + $0x388] sm:$0xff]
    %v249 = vld [vmem:[#allocation5 + $0x390] sm:$0xff]
    %v250 = vld [vmem:[#allocation5 + $0x398] sm:$0xff]
    %v251 = vld [vmem:[#allocation5 + $0x3a0] sm:$0xff]
    %v252 = vld [vmem:[#allocation5 + $0x3a8] sm:$0xff]
    %v253 = vld [vmem:[#allocation5 + $0x3b0] sm:$0xff]
    %v254 = vld [vmem:[#allocation5 + $0x3b8] sm:$0xff]
    %v255 = vld [vmem:[#allocation5 + $0x3c0] sm:$0xff]
    %v256 = vld [vmem:[#allocation5 + $0x3c8] sm:$0xff]
    %v257 = vld [vmem:[#allocation5 + $0x3d0] sm:$0xff]
    %v258 = vld [vmem:[#allocation5 + $0x3d8] sm:$0xff]
    %v259 = vld [vmem:[#allocation5 + $0x3e0] sm:$0xff]
    %v260 = vld [vmem:[#allocation5 + $0x3e8] sm:$0xff]
    %v261 = vld [vmem:[#allocation5 + $0x3f0] sm:$0xff]
    %v262 = vld [vmem:[#allocation5 + $0x3f8] sm:$0xff]
    %v263 = vld [vmem:[#allocation5 + $0x400] sm:$0xff]
    %v264 = vld [vmem:[#allocation5 + $0x408] sm:$0xff]
    %v265 = vld [vmem:[#allocation5 + $0x410] sm:$0xff]
    %v266 = vld [vmem:[#allocation5 + $0x418] sm:$0xff]
    %v267 = vld [vmem:[#allocation5 + $0x420] sm:$0xff]
    %v268 = vld [vmem:[#allocation5 + $0x428] sm:$0xff]
    %v269 = vld [vmem:[#allocation5 + $0x430] sm:$0xff]
    %v270 = vld [vmem:[#allocation5 + $0x438] sm:$0xff]
    %v271 = vld [vmem:[#allocation5 + $0x440] sm:$0xff]
    %v272 = vld [vmem:[#allocation5 + $0x448] sm:$0xff]
    %v273 = vld [vmem:[#allocation5 + $0x450] sm:$0xff]
    %v274 = vld [vmem:[#allocation5 + $0x458] sm:$0xff]
    %v275 = vld [vmem:[#allocation5 + $0x460] sm:$0xff]
    %v276 = vld [vmem:[#allocation5 + $0x468] sm:$0xff]
    %v277 = vld [vmem:[#allocation5 + $0x470] sm:$0xff]
    %v278 = vld [vmem:[#allocation5 + $0x478] sm:$0xff]
    %v279 = vld [vmem:[#allocation5 + $0x480] sm:$0xff]
    %v280 = vld [vmem:[#allocation5 + $0x488] sm:$0xff]
    %v281 = vld [vmem:[#allocation5 + $0x490] sm:$0xff]
    %v282 = vld [vmem:[#allocation5 + $0x498] sm:$0xff]
    %v283 = vld [vmem:[#allocation5 + $0x4a0] sm:$0xff]
    %v284 = vld [vmem:[#allocation5 + $0x4a8] sm:$0xff]
    %v285 = vld [vmem:[#allocation5 + $0x4b0] sm:$0xff]
    %v286 = vld [vmem:[#allocation5 + $0x4b8] sm:$0xff]
    %v287 = vld [vmem:[#allocation5 + $0x4c0] sm:$0xff]
    %v288 = vld [vmem:[#allocation5 + $0x4c8] sm:$0xff]
    %v289 = vld [vmem:[#allocation5 + $0x4d0] sm:$0xff]
    %v290 = vld [vmem:[#allocation5 + $0x4d8] sm:$0xff]
    %v291 = vld [vmem:[#allocation5 + $0x4e0] sm:$0xff]
    %v292 = vld [vmem:[#allocation5 + $0x4e8] sm:$0xff]
    %v293 = vld [vmem:[#allocation5 + $0x4f0] sm:$0xff]
    %v294 = vld [vmem:[#allocation5 + $0x4f8] sm:$0xff]
    %v295 = vld [vmem:[#allocation5 + $0x500] sm:$0xff]
    %v296 = vld [vmem:[#allocation5 + $0x508] sm:$0xff]
    %v297 = vld [vmem:[#allocation5 + $0x510] sm:$0xff]
    %v298 = vld [vmem:[#allocation5 + $0x518] sm:$0xff]
    %v299 = vld [vmem:[#allocation5 + $0x520] sm:$0xff]
    %v300 = vld [vmem:[#allocation5 + $0x528] sm:$0xff]
    %v301 = vld [vmem:[#allocation5 + $0x530] sm:$0xff]
    %v302 = vld [vmem:[#allocation5 + $0x538] sm:$0xff]
    %v303 = vld [vmem:[#allocation5 + $0x540] sm:$0xff]
    %v304 = vld [vmem:[#allocation5 + $0x548] sm:$0xff]
    %v305 = vld [vmem:[#allocation5 + $0x550] sm:$0xff]
    %v306 = vld [vmem:[#allocation5 + $0x558] sm:$0xff]
    %v307 = vld [vmem:[#allocation5 + $0x560] sm:$0xff]
    %v308 = vld [vmem:[#allocation5 + $0x568] sm:$0xff]
    %v309 = vld [vmem:[#allocation5 + $0x570] sm:$0xff]
    %v310 = vld [vmem:[#allocation5 + $0x578] sm:$0xff]
    %v311 = vld [vmem:[#allocation5 + $0x580] sm:$0xff]
    %v312 = vld [vmem:[#allocation5 + $0x588] sm:$0xff]
    %v313 = vld [vmem:[#allocation5 + $0x590] sm:$0xff]
    %v314 = vld [vmem:[#allocation5 + $0x598] sm:$0xff]
    %v315 = vld [vmem:[#allocation5 + $0x5a0] sm:$0xff]
    %v316 = vld [vmem:[#allocation5 + $0x5a8] sm:$0xff]
    %v317 = vld [vmem:[#allocation5 + $0x5b0] sm:$0xff]
    %v318 = vld [vmem:[#allocation5 + $0x5b8] sm:$0xff]
    %v319 = vld [vmem:[#allocation5 + $0x5c0] sm:$0xff]
    %v320 = vld [vmem:[#allocation5 + $0x5c8] sm:$0xff]
    %v321 = vld [vmem:[#allocation5 + $0x5d0] sm:$0xff]
    %v322 = vld [vmem:[#allocation5 + $0x5d8] sm:$0xff]
    %v323 = vld [vmem:[#allocation5 + $0x5e0] sm:$0xff]
    %v324 = vld [vmem:[#allocation5 + $0x5e8] sm:$0xff]
    %v325 = vld [vmem:[#allocation5 + $0x5f0] sm:$0xff]
    %v326 = vld [vmem:[#allocation5 + $0x5f8] sm:$0xff]
    %v327 = vld [vmem:[#allocation5 + $0x600] sm:$0xff]
    %v328 = vld [vmem:[#allocation5 + $0x608] sm:$0xff]
    %v329 = vld [vmem:[#allocation5 + $0x610] sm:$0xff]
    %v330 = vld [vmem:[#allocation5 + $0x618] sm:$0xff]
    %v331 = vld [vmem:[#allocation5 + $0x620] sm:$0xff]
    %v332 = vld [vmem:[#allocation5 + $0x628] sm:$0xff]
    %v333 = vld [vmem:[#allocation5 + $0x630] sm:$0xff]
    %v334 = vld [vmem:[#allocation5 + $0x638] sm:$0xff]
    %v335 = vld [vmem:[#allocation5 + $0x640] sm:$0xff]
    %v336 = vld [vmem:[#allocation5 + $0x648] sm:$0xff]
    %v337 = vld [vmem:[#allocation5 + $0x650] sm:$0xff]
    %v338 = vld [vmem:[#allocation5 + $0x658] sm:$0xff]
    %v339 = vld [vmem:[#allocation5 + $0x660] sm:$0xff]
    %v340 = vld [vmem:[#allocation5 + $0x668] sm:$0xff]
    %v341 = vld [vmem:[#allocation5 + $0x670] sm:$0xff]
    %v342 = vld [vmem:[#allocation5 + $0x678] sm:$0xff]
    %v343 = vld [vmem:[#allocation5 + $0x680] sm:$0xff]
    %v344 = vld [vmem:[#allocation5 + $0x688] sm:$0xff]
    %v345 = vld [vmem:[#allocation5 + $0x690] sm:$0xff]
    %v346 = vld [vmem:[#allocation5 + $0x698] sm:$0xff]
    %v347 = vld [vmem:[#allocation5 + $0x6a0] sm:$0xff]
    %v348 = vld [vmem:[#allocation5 + $0x6a8] sm:$0xff]
    %v349 = vld [vmem:[#allocation5 + $0x6b0] sm:$0xff]
    %v350 = vld [vmem:[#allocation5 + $0x6b8] sm:$0xff]
    %v351 = vld [vmem:[#allocation5 + $0x6c0] sm:$0xff]
    %v352 = vld [vmem:[#allocation5 + $0x6c8] sm:$0xff]
    %v353 = vld [vmem:[#allocation5 + $0x6d0] sm:$0xff]
    %v354 = vld [vmem:[#allocation5 + $0x6d8] sm:$0xff]
    %v355 = vld [vmem:[#allocation5 + $0x6e0] sm:$0xff]
    %v356 = vld [vmem:[#allocation5 + $0x6e8] sm:$0xff]
    %v357 = vld [vmem:[#allocation5 + $0x6f0] sm:$0xff]
    %v358 = vld [vmem:[#allocation5 + $0x6f8] sm:$0xff]
    %v359 = vld [vmem:[#allocation5 + $0x700] sm:$0xff]
    %v360 = vld [vmem:[#allocation5 + $0x708] sm:$0xff]
    %v361 = vld [vmem:[#allocation5 + $0x710] sm:$0xff]
    %v362 = vld [vmem:[#allocation5 + $0x718] sm:$0xff]
    %v363 = vld [vmem:[#allocation5 + $0x720] sm:$0xff]
    %v364 = vld [vmem:[#allocation5 + $0x728] sm:$0xff]
    %v365 = vld [vmem:[#allocation5 + $0x730] sm:$0xff]
    %v366 = vld [vmem:[#allocation5 + $0x738] sm:$0xff]
    %v367 = vld [vmem:[#allocation5 + $0x740] sm:$0xff]
    %v368 = vld [vmem:[#allocation5 + $0x748] sm:$0xff]
    %v369 = vld [vmem:[#allocation5 + $0x750] sm:$0xff]
    %v370 = vld [vmem:[#allocation5 + $0x758] sm:$0xff]
    %v371 = vld [vmem:[#allocation5 + $0x760] sm:$0xff]
    %v372 = vld [vmem:[#allocation5 + $0x768] sm:$0xff]
    %v373 = vld [vmem:[#allocation5 + $0x770] sm:$0xff]
    %v374 = vld [vmem:[#allocation5 + $0x778] sm:$0xff]
    %v375 = vld [vmem:[#allocation5 + $0x780] sm:$0xff]
    %v376 = vld [vmem:[#allocation5 + $0x788] sm:$0xff]
    %v377 = vld [vmem:[#allocation5 + $0x790] sm:$0xff]
    %v378 = vld [vmem:[#allocation5 + $0x798] sm:$0xff]
    %v379 = vld [vmem:[#allocation5 + $0x7a0] sm:$0xff]
    %v380 = vld [vmem:[#allocation5 + $0x7a8] sm:$0xff]
    %v381 = vld [vmem:[#allocation5 + $0x7b0] sm:$0xff]
    %v382 = vld [vmem:[#allocation5 + $0x7b8] sm:$0xff]
    %v383 = vld [vmem:[#allocation5 + $0x7c0] sm:$0xff]
    %v384 = vld [vmem:[#allocation5 + $0x7c8] sm:$0xff]
    %v385 = vld [vmem:[#allocation5 + $0x7d0] sm:$0xff]
    %v386 = vld [vmem:[#allocation5 + $0x7d8] sm:$0xff]
    %v387 = vld [vmem:[#allocation5 + $0x7e0] sm:$0xff]
    %v388 = vld [vmem:[#allocation5 + $0x7e8] sm:$0xff]
    %v389 = vld [vmem:[#allocation5 + $0x7f0] sm:$0xff]
    %v390 = vld [vmem:[#allocation5 + $0x7f8] sm:$0xff]
    %v391 = vld [vmem:[#allocation5 + $0x800] sm:$0xff]
    %v392 = vld [vmem:[#allocation5 + $0x808] sm:$0xff]
    %v393 = vld [vmem:[#allocation5 + $0x810] sm:$0xff]
    %v394 = vld [vmem:[#allocation5 + $0x818] sm:$0xff]
    %v395 = vld [vmem:[#allocation5 + $0x820] sm:$0xff]
    %v396 = vld [vmem:[#allocation5 + $0x828] sm:$0xff]
    %v397 = vld [vmem:[#allocation5 + $0x830] sm:$0xff]
    %v398 = vld [vmem:[#allocation5 + $0x838] sm:$0xff]
    %v399 = vld [vmem:[#allocation5 + $0x840] sm:$0xff]
    %v400 = vld [vmem:[#allocation5 + $0x848] sm:$0xff]
    %v401 = vld [vmem:[#allocation5 + $0x850] sm:$0xff]
    %v402 = vld [vmem:[#allocation5 + $0x858] sm:$0xff]
    %v403 = vld [vmem:[#allocation5 + $0x860] sm:$0xff]
    %v404 = vld [vmem:[#allocation5 + $0x868] sm:$0xff]
    %v405 = vld [vmem:[#allocation5 + $0x870] sm:$0xff]
    %v406 = vld [vmem:[#allocation5 + $0x878] sm:$0xff]
    %v407 = vld [vmem:[#allocation5 + $0x880] sm:$0xff]
    %v408 = vld [vmem:[#allocation5 + $0x888] sm:$0xff]
    %v409 = vld [vmem:[#allocation5 + $0x890] sm:$0xff]
    %v410 = vld [vmem:[#allocation5 + $0x898] sm:$0xff]
    %v411 = vld [vmem:[#allocation5 + $0x8a0] sm:$0xff]
    %v412 = vld [vmem:[#allocation5 + $0x8a8] sm:$0xff]
    %v413 = vld [vmem:[#allocation5 + $0x8b0] sm:$0xff]
    %v414 = vld [vmem:[#allocation5 + $0x8b8] sm:$0xff]
    %v415 = vld [vmem:[#allocation5 + $0x8c0] sm:$0xff]
    %v416 = vld [vmem:[#allocation5 + $0x8c8] sm:$0xff]
    %v417 = vld [vmem:[#allocation5 + $0x8d0] sm:$0xff]
    %v418 = vld [vmem:[#allocation5 + $0x8d8] sm:$0xff]
    %v419 = vld [vmem:[#allocation5 + $0x8e0] sm:$0xff]
    %v420 = vld [vmem:[#allocation5 + $0x8e8] sm:$0xff]
    %v421 = vld [vmem:[#allocation5 + $0x8f0] sm:$0xff]
    %v422 = vld [vmem:[#allocation5 + $0x8f8] sm:$0xff]
    %v423 = vld [vmem:[#allocation5 + $0x900] sm:$0xff]
    %v424 = vld [vmem:[#allocation5 + $0x908] sm:$0xff]
    %v425 = vld [vmem:[#allocation5 + $0x910] sm:$0xff]
    %v426 = vld [vmem:[#allocation5 + $0x918] sm:$0xff]
    %v427 = vld [vmem:[#allocation5 + $0x920] sm:$0xff]
    %v428 = vld [vmem:[#allocation5 + $0x928] sm:$0xff]
    %v429 = vld [vmem:[#allocation5 + $0x930] sm:$0xff]
    %v430 = vld [vmem:[#allocation5 + $0x938] sm:$0xff]
    %v431 = vld [vmem:[#allocation5 + $0x940] sm:$0xff]
    %v432 = vld [vmem:[#allocation5 + $0x948] sm:$0xff]
    %v433 = vld [vmem:[#allocation5 + $0x950] sm:$0xff]
    %v434 = vld [vmem:[#allocation5 + $0x958] sm:$0xff]
    %v435 = vld [vmem:[#allocation5 + $0x960] sm:$0xff]
    %v436 = vld [vmem:[#allocation5 + $0x968] sm:$0xff]
    %v437 = vld [vmem:[#allocation5 + $0x970] sm:$0xff]
    %v438 = vld [vmem:[#allocation5 + $0x978] sm:$0xff]
    %v439 = vld [vmem:[#allocation5 + $0x980] sm:$0xff]
    %v440 = vld [vmem:[#allocation5 + $0x988] sm:$0xff]
    %v441 = vld [vmem:[#allocation5 + $0x990] sm:$0xff]
    %v442 = vld [vmem:[#allocation5 + $0x998] sm:$0xff]
    %v443 = vld [vmem:[#allocation5 + $0x9a0] sm:$0xff]
    %v444 = vld [vmem:[#allocation5 + $0x9a8] sm:$0xff]
    %v445 = vld [vmem:[#allocation5 + $0x9b0] sm:$0xff]
    %v446 = vld [vmem:[#allocation5 + $0x9b8] sm:$0xff]
    %v447 = vld [vmem:[#allocation5 + $0x9c0] sm:$0xff]
    %v448 = vld [vmem:[#allocation5 + $0x9c8] sm:$0xff]
    %v449 = vld [vmem:[#allocation5 + $0x9d0] sm:$0xff]
    %v450 = vld [vmem:[#allocation5 + $0x9d8] sm:$0xff]
    %v451 = vld [vmem:[#allocation5 + $0x9e0] sm:$0xff]
    %v452 = vld [vmem:[#allocation5 + $0x9e8] sm:$0xff]
    %v453 = vld [vmem:[#allocation5 + $0x9f0] sm:$0xff]
    %v454 = vld [vmem:[#allocation5 + $0x9f8] sm:$0xff]
    %v455 = vld [vmem:[#allocation5 + $0xa00] sm:$0xff]
    %v456 = vld [vmem:[#allocation5 + $0xa08] sm:$0xff]
    %v457 = vld [vmem:[#allocation5 + $0xa10] sm:$0xff]
    %v458 = vld [vmem:[#allocation5 + $0xa18] sm:$0xff]
    %v459 = vld [vmem:[#allocation5 + $0xa20] sm:$0xff]
    %v460 = vld [vmem:[#allocation5 + $0xa28] sm:$0xff]
    %v461 = vld [vmem:[#allocation5 + $0xa30] sm:$0xff]
    %v462 = vld [vmem:[#allocation5 + $0xa38] sm:$0xff]
    %v463 = vld [vmem:[#allocation5 + $0xa40] sm:$0xff]
    %v464 = vld [vmem:[#allocation5 + $0xa48] sm:$0xff]
    %v465 = vld [vmem:[#allocation5 + $0xa50] sm:$0xff]
    %v466 = vld [vmem:[#allocation5 + $0xa58] sm:$0xff]
    %v467 = vld [vmem:[#allocation5 + $0xa60] sm:$0xff]
    %v468 = vld [vmem:[#allocation5 + $0xa68] sm:$0xff]
    %v469 = vld [vmem:[#allocation5 + $0xa70] sm:$0xff]
    %v470 = vld [vmem:[#allocation5 + $0xa78] sm:$0xff]
    %v471 = vld [vmem:[#allocation5 + $0xa80] sm:$0xff]
    %v472 = vld [vmem:[#allocation5 + $0xa88] sm:$0xff]
    %v473 = vld [vmem:[#allocation5 + $0xa90] sm:$0xff]
    %v474 = vld [vmem:[#allocation5 + $0xa98] sm:$0xff]
    %v475 = vld [vmem:[#allocation5 + $0xaa0] sm:$0xff]
    %v476 = vld [vmem:[#allocation5 + $0xaa8] sm:$0xff]
    %v477 = vld [vmem:[#allocation5 + $0xab0] sm:$0xff]
    %v478 = vld [vmem:[#allocation5 + $0xab8] sm:$0xff]
    %v479 = vld [vmem:[#allocation5 + $0xac0] sm:$0xff]
    %v480 = vld [vmem:[#allocation5 + $0xac8] sm:$0xff]
    %v481 = vld [vmem:[#allocation5 + $0xad0] sm:$0xff]
    %v482 = vld [vmem:[#allocation5 + $0xad8] sm:$0xff]
    %v483 = vld [vmem:[#allocation5 + $0xae0] sm:$0xff]
    %v484 = vld [vmem:[#allocation5 + $0xae8] sm:$0xff]
    %v485 = vld [vmem:[#allocation5 + $0xaf0] sm:$0xff]
    %v486 = vld [vmem:[#allocation5 + $0xaf8] sm:$0xff]
    %v487 = vld [vmem:[#allocation5 + $0xb00] sm:$0xff]
    %v488 = vld [vmem:[#allocation5 + $0xb08] sm:$0xff]
    %v489 = vld [vmem:[#allocation5 + $0xb10] sm:$0xff]
    %v490 = vld [vmem:[#allocation5 + $0xb18] sm:$0xff]
    %v491 = vld [vmem:[#allocation5 + $0xb20] sm:$0xff]
    %v492 = vld [vmem:[#allocation5 + $0xb28] sm:$0xff]
    %v493 = vld [vmem:[#allocation5 + $0xb30] sm:$0xff]
    %v494 = vld [vmem:[#allocation5 + $0xb38] sm:$0xff]
    %v495 = vld [vmem:[#allocation5 + $0xb40] sm:$0xff]
    %v496 = vld [vmem:[#allocation5 + $0xb48] sm:$0xff]
    %v497 = vld [vmem:[#allocation5 + $0xb50] sm:$0xff]
    %v498 = vld [vmem:[#allocation5 + $0xb58] sm:$0xff]
    %v499 = vld [vmem:[#allocation5 + $0xb60] sm:$0xff]
    %v500 = vld [vmem:[#allocation5 + $0xb68] sm:$0xff]
    %v501 = vld [vmem:[#allocation5 + $0xb70] sm:$0xff]
    %v502 = vld [vmem:[#allocation5 + $0xb78] sm:$0xff]
    %v503 = vld [vmem:[#allocation5 + $0xb80] sm:$0xff]
    %v504 = vld [vmem:[#allocation5 + $0xb88] sm:$0xff]
    %v505 = vld [vmem:[#allocation5 + $0xb90] sm:$0xff]
    %v506 = vld [vmem:[#allocation5 + $0xb98] sm:$0xff]
    %v507 = vld [vmem:[#allocation5 + $0xba0] sm:$0xff]
    %v508 = vld [vmem:[#allocation5 + $0xba8] sm:$0xff]
    %v509 = vld [vmem:[#allocation5 + $0xbb0] sm:$0xff]
    %v510 = vld [vmem:[#allocation5 + $0xbb8] sm:$0xff]
    %v511 = vld [vmem:[#allocation5 + $0xbc0] sm:$0xff]
    %v512 = vld [vmem:[#allocation5 + $0xbc8] sm:$0xff]
    %v513 = vld [vmem:[#allocation5 + $0xbd0] sm:$0xff]
    %v514 = vld [vmem:[#allocation5 + $0xbd8] sm:$0xff]
    %v515 = vld [vmem:[#allocation5 + $0xbe0] sm:$0xff]
    %v516 = vld [vmem:[#allocation5 + $0xbe8] sm:$0xff]
    %v517 = vld [vmem:[#allocation5 + $0xbf0] sm:$0xff]
    %v518 = vld [vmem:[#allocation5 + $0xbf8] sm:$0xff]
    %v519 = vld [vmem:[#allocation5 + $0xc00] sm:$0xff]
    %v520 = vld [vmem:[#allocation5 + $0xc08] sm:$0xff]
    %v521 = vld [vmem:[#allocation5 + $0xc10] sm:$0xff]
    %v522 = vld [vmem:[#allocation5 + $0xc18] sm:$0xff]
    %v523 = vld [vmem:[#allocation5 + $0xc20] sm:$0xff]
    %v524 = vld [vmem:[#allocation5 + $0xc28] sm:$0xff]
    %v525 = vld [vmem:[#allocation5 + $0xc30] sm:$0xff]
    %v526 = vld [vmem:[#allocation5 + $0xc38] sm:$0xff]
    %v527 = vld [vmem:[#allocation5 + $0xc40] sm:$0xff]
    %v528 = vld [vmem:[#allocation5 + $0xc48] sm:$0xff]
    %v529 = vld [vmem:[#allocation5 + $0xc50] sm:$0xff]
    %v530 = vld [vmem:[#allocation5 + $0xc58] sm:$0xff]
    %v531 = vld [vmem:[#allocation5 + $0xc60] sm:$0xff]
    %v532 = vld [vmem:[#allocation5 + $0xc68] sm:$0xff]
    %v533 = vld [vmem:[#allocation5 + $0xc70] sm:$0xff]
    %v534 = vld [vmem:[#allocation5 + $0xc78] sm:$0xff]
    %v535 = vld [vmem:[#allocation5 + $0xc80] sm:$0xff]
    %v536 = vld [vmem:[#allocation5 + $0xc88] sm:$0xff]
    %v537 = vld [vmem:[#allocation5 + $0xc90] sm:$0xff]
    %v538 = vld [vmem:[#allocation5 + $0xc98] sm:$0xff]
    %v539 = vld [vmem:[#allocation5 + $0xca0] sm:$0xff]
    %v540 = vld [vmem:[#allocation5 + $0xca8] sm:$0xff]
    %v541 = vld [vmem:[#allocation5 + $0xcb0] sm:$0xff]
    %v542 = vld [vmem:[#allocation5 + $0xcb8] sm:$0xff]
    %v543 = vld [vmem:[#allocation5 + $0xcc0] sm:$0xff]
    %v544 = vld [vmem:[#allocation5 + $0xcc8] sm:$0xff]
    %v545 = vld [vmem:[#allocation5 + $0xcd0] sm:$0xff]
    %v546 = vld [vmem:[#allocation5 + $0xcd8] sm:$0xff]
    %v547 = vld [vmem:[#allocation5 + $0xce0] sm:$0xff]
    %v548 = vld [vmem:[#allocation5 + $0xce8] sm:$0xff]
    %v549 = vld [vmem:[#allocation5 + $0xcf0] sm:$0xff]
    %v550 = vld [vmem:[#allocation5 + $0xcf8] sm:$0xff]
    %v551 = vld [vmem:[#allocation5 + $0xd00] sm:$0xff]
    %v552 = vld [vmem:[#allocation5 + $0xd08] sm:$0xff]
    %v553 = vld [vmem:[#allocation5 + $0xd10] sm:$0xff]
    %v554 = vld [vmem:[#allocation5 + $0xd18] sm:$0xff]
    %v555 = vld [vmem:[#allocation5 + $0xd20] sm:$0xff]
    %v556 = vld [vmem:[#allocation5 + $0xd28] sm:$0xff]
    %v557 = vld [vmem:[#allocation5 + $0xd30] sm:$0xff]
    %v558 = vld [vmem:[#allocation5 + $0xd38] sm:$0xff]
    %v559 = vld [vmem:[#allocation5 + $0xd40] sm:$0xff]
    %v560 = vld [vmem:[#allocation5 + $0xd48] sm:$0xff]
    %v561 = vld [vmem:[#allocation5 + $0xd50] sm:$0xff]
    %v562 = vld [vmem:[#allocation5 + $0xd58] sm:$0xff]
    %v563 = vld [vmem:[#allocation5 + $0xd60] sm:$0xff]
    %v564 = vld [vmem:[#allocation5 + $0xd68] sm:$0xff]
    %v565 = vld [vmem:[#allocation5 + $0xd70] sm:$0xff]
    %v566 = vld [vmem:[#allocation5 + $0xd78] sm:$0xff]
    %v567 = vld [vmem:[#allocation5 + $0xd80] sm:$0xff]
    %v568 = vld [vmem:[#allocation5 + $0xd88] sm:$0xff]
    %v569 = vld [vmem:[#allocation5 + $0xd90] sm:$0xff]
    %v570 = vld [vmem:[#allocation5 + $0xd98] sm:$0xff]
    %v571 = vld [vmem:[#allocation5 + $0xda0] sm:$0xff]
    %v572 = vld [vmem:[#allocation5 + $0xda8] sm:$0xff]
    %v573 = vld [vmem:[#allocation5 + $0xdb0] sm:$0xff]
    %v574 = vld [vmem:[#allocation5 + $0xdb8] sm:$0xff]
    %v575 = vld [vmem:[#allocation5 + $0xdc0] sm:$0xff]
    %v576 = vld [vmem:[#allocation5 + $0xdc8] sm:$0xff]
    %v577 = vld [vmem:[#allocation5 + $0xdd0] sm:$0xff]
    %v578 = vld [vmem:[#allocation5 + $0xdd8] sm:$0xff]
    %v579 = vld [vmem:[#allocation5 + $0xde0] sm:$0xff]
    %v580 = vld [vmem:[#allocation5 + $0xde8] sm:$0xff]
    %v581 = vld [vmem:[#allocation5 + $0xdf0] sm:$0xff]
    %v582 = vld [vmem:[#allocation5 + $0xdf8] sm:$0xff]
    %v583 = vld [vmem:[#allocation7] sm:$0xf]
    %v585 = vperm.slane %v583, 0
    %v586 = vperm.slane %v583, 1
    %v587 = vperm.slane %v583, 2
    %v588 = vperm.slane %v583, 3
    %593 = vmatpush.msra.mxu0 %v195
    %594 = vmatpush.msra.mxu0 %v191
    %595 = vmatpush.msra.mxu0 %v187
    %596 = vmatpush.msra.mxu0 %v183
    %597 = vmatpush.msra.mxu0 %v179
    %598 = vmatpush.msra.mxu0 %v175
    %599 = vmatpush.msra.mxu0 %v171
    %600 = vmatpush.msra.mxu0 %v167
    %601 = vmatpush.msra.mxu0 %v163
    %602 = vmatpush.msra.mxu0 %v159
    %603 = vmatpush.msra.mxu0 %v155
    %604 = vmatpush.msra.mxu0 %v151
    %605 = vmatpush.msra.mxu0 %v147
    %606 = vmatpush.msra.mxu0 %v143
    %607 = vmatpush.msra.mxu0 %v139
    %608 = vmatpush.msra.mxu0 %v135
    %609 = vmatmul.f32.gmra.mxu0 %v128
    %v610 = vpop.f32.mrf.mxu0
    %v611 = vadd.f32 %v585, %v610
    %612 = vdwg.mxu0
    %613 = vmatpush.msra.mxu0 %v259
    %614 = vmatpush.msra.mxu0 %v255
    %615 = vmatpush.msra.mxu0 %v251
    %616 = vmatpush.msra.mxu0 %v247
    %617 = vmatpush.msra.mxu0 %v243
    %618 = vmatpush.msra.mxu0 %v239
    %619 = vmatpush.msra.mxu0 %v235
    %620 = vmatpush.msra.mxu0 %v231
    %621 = vmatpush.msra.mxu0 %v227
    %622 = vmatpush.msra.mxu0 %v223
    %623 = vmatpush.msra.mxu0 %v219
    %624 = vmatpush.msra.mxu0 %v215
    %625 = vmatpush.msra.mxu0 %v211
    %626 = vmatpush.msra.mxu0 %v207
    %627 = vmatpush.msra.mxu0 %v203
    %628 = vmatpush.msra.mxu0 %v199
    %629 = vmatmul.f32.gmra.mxu0 %v129
    %v630 = vpop.f32.mrf.mxu0
    %v631 = vadd.f32 %v611, %v630
    %632 = vdwg.mxu0
    %633 = vmatpush.msra.mxu0 %v323
    %634 = vmatpush.msra.mxu0 %v319
    %635 = vmatpush.msra.mxu0 %v315
    %636 = vmatpush.msra.mxu0 %v311
    %637 = vmatpush.msra.mxu0 %v307
    %638 = vmatpush.msra.mxu0 %v303
    %639 = vmatpush.msra.mxu0 %v299
    %640 = vmatpush.msra.mxu0 %v295
    %641 = vmatpush.msra.mxu0 %v291
    %642 = vmatpush.msra.mxu0 %v287
    %643 = vmatpush.msra.mxu0 %v283
    %644 = vmatpush.msra.mxu0 %v279
    %645 = vmatpush.msra.mxu0 %v275
    %646 = vmatpush.msra.mxu0 %v271
    %647 = vmatpush.msra.mxu0 %v267
    %648 = vmatpush.msra.mxu0 %v263
    %649 = vmatmul.f32.gmra.mxu0 %v130
    %v650 = vpop.f32.mrf.mxu0
    %v651 = vadd.f32 %v631, %v650
    %652 = vdwg.mxu0
    %653 = vmatpush.msra.mxu0 %v387
    %654 = vmatpush.msra.mxu0 %v383
    %655 = vmatpush.msra.mxu0 %v379
    %656 = vmatpush.msra.mxu0 %v375
    %657 = vmatpush.msra.mxu0 %v371
    %658 = vmatpush.msra.mxu0 %v367
    %659 = vmatpush.msra.mxu0 %v363
    %660 = vmatpush.msra.mxu0 %v359
    %661 = vmatpush.msra.mxu0 %v355
    %662 = vmatpush.msra.mxu0 %v351
    %663 = vmatpush.msra.mxu0 %v347
    %664 = vmatpush.msra.mxu0 %v343
    %665 = vmatpush.msra.mxu0 %v339
    %666 = vmatpush.msra.mxu0 %v335
    %667 = vmatpush.msra.mxu0 %v331
    %668 = vmatpush.msra.mxu0 %v327
    %669 = vmatmul.f32.gmra.mxu0 %v131
    %v670 = vpop.f32.mrf.mxu0
    %v671 = vadd.f32 %v651, %v670
    %672 = vdwg.mxu0
    %673 = vmatpush.msra.mxu0 %v451
    %674 = vmatpush.msra.mxu0 %v447
    %675 = vmatpush.msra.mxu0 %v443
    %676 = vmatpush.msra.mxu0 %v439
    %677 = vmatpush.msra.mxu0 %v435
    %678 = vmatpush.msra.mxu0 %v431
    %679 = vmatpush.msra.mxu0 %v427
    %680 = vmatpush.msra.mxu0 %v423
    %681 = vmatpush.msra.mxu0 %v419
    %682 = vmatpush.msra.mxu0 %v415
    %683 = vmatpush.msra.mxu0 %v411
    %684 = vmatpush.msra.mxu0 %v407
    %685 = vmatpush.msra.mxu0 %v403
    %686 = vmatpush.msra.mxu0 %v399
    %687 = vmatpush.msra.mxu0 %v395
    %688 = vmatpush.msra.mxu0 %v391
    %689 = vmatmul.f32.gmra.mxu0 %v132
    %v690 = vpop.f32.mrf.mxu0
    %v691 = vadd.f32 %v671, %v690
    %692 = vdwg.mxu0
    %693 = vmatpush.msra.mxu0 %v515
    %694 = vmatpush.msra.mxu0 %v511
    %695 = vmatpush.msra.mxu0 %v507
    %696 = vmatpush.msra.mxu0 %v503
    %697 = vmatpush.msra.mxu0 %v499
    %698 = vmatpush.msra.mxu0 %v495
    %699 = vmatpush.msra.mxu0 %v491
    %700 = vmatpush.msra.mxu0 %v487
    %701 = vmatpush.msra.mxu0 %v483
    %702 = vmatpush.msra.mxu0 %v479
    %703 = vmatpush.msra.mxu0 %v475
    %704 = vmatpush.msra.mxu0 %v471
    %705 = vmatpush.msra.mxu0 %v467
    %706 = vmatpush.msra.mxu0 %v463
    %707 = vmatpush.msra.mxu0 %v459
    %708 = vmatpush.msra.mxu0 %v455
    %709 = vmatmul.f32.gmra.mxu0 %v133
    %v710 = vpop.f32.mrf.mxu0
    %v711 = vadd.f32 %v691, %v710
    %712 = vdwg.mxu0
    %713 = vmatpush.msra.mxu0 %v579
    %714 = vmatpush.msra.mxu0 %v575
    %715 = vmatpush.msra.mxu0 %v571
    %716 = vmatpush.msra.mxu0 %v567
    %717 = vmatpush.msra.mxu0 %v563
    %718 = vmatpush.msra.mxu0 %v559
    %719 = vmatpush.msra.mxu0 %v555
    %720 = vmatpush.msra.mxu0 %v551
    %721 = vmatpush.msra.mxu0 %v547
    %722 = vmatpush.msra.mxu0 %v543
    %723 = vmatpush.msra.mxu0 %v539
    %724 = vmatpush.msra.mxu0 %v535
    %725 = vmatpush.msra.mxu0 %v531
    %726 = vmatpush.msra.mxu0 %v527
    %727 = vmatpush.msra.mxu0 %v523
    %728 = vmatpush.msra.mxu0 %v519
    %729 = vmatmul.f32.gmra.mxu0 %v134
    %v730 = vpop.f32.mrf.mxu0
    %v731 = vadd.f32 %v711, %v730
    %732 = vdwg.mxu0
    %733 = vmatpush.msra.mxu0 %v196
    %734 = vmatpush.msra.mxu0 %v192
    %735 = vmatpush.msra.mxu0 %v188
    %736 = vmatpush.msra.mxu0 %v184
    %737 = vmatpush.msra.mxu0 %v180
    %738 = vmatpush.msra.mxu0 %v176
    %739 = vmatpush.msra.mxu0 %v172
    %740 = vmatpush.msra.mxu0 %v168
    %741 = vmatpush.msra.mxu0 %v164
    %742 = vmatpush.msra.mxu0 %v160
    %743 = vmatpush.msra.mxu0 %v156
    %744 = vmatpush.msra.mxu0 %v152
    %745 = vmatpush.msra.mxu0 %v148
    %746 = vmatpush.msra.mxu0 %v144
    %747 = vmatpush.msra.mxu0 %v140
    %748 = vmatpush.msra.mxu0 %v136
    %749 = vmatmul.f32.gmra.mxu0 %v128
    %v750 = vpop.f32.mrf.mxu0
    %v751 = vadd.f32 %v586, %v750
    %752 = vdwg.mxu0
    %753 = vmatpush.msra.mxu0 %v260
    %754 = vmatpush.msra.mxu0 %v256
    %755 = vmatpush.msra.mxu0 %v252
    %756 = vmatpush.msra.mxu0 %v248
    %757 = vmatpush.msra.mxu0 %v244
    %758 = vmatpush.msra.mxu0 %v240
    %759 = vmatpush.msra.mxu0 %v236
    %760 = vmatpush.msra.mxu0 %v232
    %761 = vmatpush.msra.mxu0 %v228
    %762 = vmatpush.msra.mxu0 %v224
    %763 = vmatpush.msra.mxu0 %v220
    %764 = vmatpush.msra.mxu0 %v216
    %765 = vmatpush.msra.mxu0 %v212
    %766 = vmatpush.msra.mxu0 %v208
    %767 = vmatpush.msra.mxu0 %v204
    %768 = vmatpush.msra.mxu0 %v200
    %769 = vmatmul.f32.gmra.mxu0 %v129
    %v770 = vpop.f32.mrf.mxu0
    %v771 = vadd.f32 %v751, %v770
    %772 = vdwg.mxu0
    %773 = vmatpush.msra.mxu0 %v324
    %774 = vmatpush.msra.mxu0 %v320
    %775 = vmatpush.msra.mxu0 %v316
    %776 = vmatpush.msra.mxu0 %v312
    %777 = vmatpush.msra.mxu0 %v308
    %778 = vmatpush.msra.mxu0 %v304
    %779 = vmatpush.msra.mxu0 %v300
    %780 = vmatpush.msra.mxu0 %v296
    %781 = vmatpush.msra.mxu0 %v292
    %782 = vmatpush.msra.mxu0 %v288
    %783 = vmatpush.msra.mxu0 %v284
    %784 = vmatpush.msra.mxu0 %v280
    %785 = vmatpush.msra.mxu0 %v276
    %786 = vmatpush.msra.mxu0 %v272
    %787 = vmatpush.msra.mxu0 %v268
    %788 = vmatpush.msra.mxu0 %v264
    %789 = vmatmul.f32.gmra.mxu0 %v130
    %v790 = vpop.f32.mrf.mxu0
    %v791 = vadd.f32 %v771, %v790
    %792 = vdwg.mxu0
    %793 = vmatpush.msra.mxu0 %v388
    %794 = vmatpush.msra.mxu0 %v384
    %795 = vmatpush.msra.mxu0 %v380
    %796 = vmatpush.msra.mxu0 %v376
    %797 = vmatpush.msra.mxu0 %v372
    %798 = vmatpush.msra.mxu0 %v368
    %799 = vmatpush.msra.mxu0 %v364
    %800 = vmatpush.msra.mxu0 %v360
    %801 = vmatpush.msra.mxu0 %v356
    %802 = vmatpush.msra.mxu0 %v352
    %803 = vmatpush.msra.mxu0 %v348
    %804 = vmatpush.msra.mxu0 %v344
    %805 = vmatpush.msra.mxu0 %v340
    %806 = vmatpush.msra.mxu0 %v336
    %807 = vmatpush.msra.mxu0 %v332
    %808 = vmatpush.msra.mxu0 %v328
    %809 = vmatmul.f32.gmra.mxu0 %v131
    %v810 = vpop.f32.mrf.mxu0
    %v811 = vadd.f32 %v791, %v810
    %812 = vdwg.mxu0
    %813 = vmatpush.msra.mxu0 %v452
    %814 = vmatpush.msra.mxu0 %v448
    %815 = vmatpush.msra.mxu0 %v444
    %816 = vmatpush.msra.mxu0 %v440
    %817 = vmatpush.msra.mxu0 %v436
    %818 = vmatpush.msra.mxu0 %v432
    %819 = vmatpush.msra.mxu0 %v428
    %820 = vmatpush.msra.mxu0 %v424
    %821 = vmatpush.msra.mxu0 %v420
    %822 = vmatpush.msra.mxu0 %v416
    %823 = vmatpush.msra.mxu0 %v412
    %824 = vmatpush.msra.mxu0 %v408
    %825 = vmatpush.msra.mxu0 %v404
    %826 = vmatpush.msra.mxu0 %v400
    %827 = vmatpush.msra.mxu0 %v396
    %828 = vmatpush.msra.mxu0 %v392
    %829 = vmatmul.f32.gmra.mxu0 %v132
    %v830 = vpop.f32.mrf.mxu0
    %v831 = vadd.f32 %v811, %v830
    %832 = vdwg.mxu0
    %833 = vmatpush.msra.mxu0 %v516
    %834 = vmatpush.msra.mxu0 %v512
    %835 = vmatpush.msra.mxu0 %v508
    %836 = vmatpush.msra.mxu0 %v504
    %837 = vmatpush.msra.mxu0 %v500
    %838 = vmatpush.msra.mxu0 %v496
    %839 = vmatpush.msra.mxu0 %v492
    %840 = vmatpush.msra.mxu0 %v488
    %841 = vmatpush.msra.mxu0 %v484
    %842 = vmatpush.msra.mxu0 %v480
    %843 = vmatpush.msra.mxu0 %v476
    %844 = vmatpush.msra.mxu0 %v472
    %845 = vmatpush.msra.mxu0 %v468
    %846 = vmatpush.msra.mxu0 %v464
    %847 = vmatpush.msra.mxu0 %v460
    %848 = vmatpush.msra.mxu0 %v456
    %849 = vmatmul.f32.gmra.mxu0 %v133
    %v850 = vpop.f32.mrf.mxu0
    %v851 = vadd.f32 %v831, %v850
    %852 = vdwg.mxu0
    %853 = vmatpush.msra.mxu0 %v580
    %854 = vmatpush.msra.mxu0 %v576
    %855 = vmatpush.msra.mxu0 %v572
    %856 = vmatpush.msra.mxu0 %v568
    %857 = vmatpush.msra.mxu0 %v564
    %858 = vmatpush.msra.mxu0 %v560
    %859 = vmatpush.msra.mxu0 %v556
    %860 = vmatpush.msra.mxu0 %v552
    %861 = vmatpush.msra.mxu0 %v548
    %862 = vmatpush.msra.mxu0 %v544
    %863 = vmatpush.msra.mxu0 %v540
    %864 = vmatpush.msra.mxu0 %v536
    %865 = vmatpush.msra.mxu0 %v532
    %866 = vmatpush.msra.mxu0 %v528
    %867 = vmatpush.msra.mxu0 %v524
    %868 = vmatpush.msra.mxu0 %v520
    %869 = vmatmul.f32.gmra.mxu0 %v134
    %v870 = vpop.f32.mrf.mxu0
    %v871 = vadd.f32 %v851, %v870
    %872 = vdwg.mxu0
    %873 = vmatpush.msra.mxu0 %v197
    %874 = vmatpush.msra.mxu0 %v193
    %875 = vmatpush.msra.mxu0 %v189
    %876 = vmatpush.msra.mxu0 %v185
    %877 = vmatpush.msra.mxu0 %v181
    %878 = vmatpush.msra.mxu0 %v177
    %879 = vmatpush.msra.mxu0 %v173
    %880 = vmatpush.msra.mxu0 %v169
    %881 = vmatpush.msra.mxu0 %v165
    %882 = vmatpush.msra.mxu0 %v161
    %883 = vmatpush.msra.mxu0 %v157
    %884 = vmatpush.msra.mxu0 %v153
    %885 = vmatpush.msra.mxu0 %v149
    %886 = vmatpush.msra.mxu0 %v145
    %887 = vmatpush.msra.mxu0 %v141
    %888 = vmatpush.msra.mxu0 %v137
    %889 = vmatmul.f32.gmra.mxu0 %v128
    %v890 = vpop.f32.mrf.mxu0
    %v891 = vadd.f32 %v587, %v890
    %892 = vdwg.mxu0
    %893 = vmatpush.msra.mxu0 %v261
    %894 = vmatpush.msra.mxu0 %v257
    %895 = vmatpush.msra.mxu0 %v253
    %896 = vmatpush.msra.mxu0 %v249
    %897 = vmatpush.msra.mxu0 %v245
    %898 = vmatpush.msra.mxu0 %v241
    %899 = vmatpush.msra.mxu0 %v237
    %900 = vmatpush.msra.mxu0 %v233
    %901 = vmatpush.msra.mxu0 %v229
    %902 = vmatpush.msra.mxu0 %v225
    %903 = vmatpush.msra.mxu0 %v221
    %904 = vmatpush.msra.mxu0 %v217
    %905 = vmatpush.msra.mxu0 %v213
    %906 = vmatpush.msra.mxu0 %v209
    %907 = vmatpush.msra.mxu0 %v205
    %908 = vmatpush.msra.mxu0 %v201
    %909 = vmatmul.f32.gmra.mxu0 %v129
    %v910 = vpop.f32.mrf.mxu0
    %v911 = vadd.f32 %v891, %v910
    %912 = vdwg.mxu0
    %913 = vmatpush.msra.mxu0 %v325
    %914 = vmatpush.msra.mxu0 %v321
    %915 = vmatpush.msra.mxu0 %v317
    %916 = vmatpush.msra.mxu0 %v313
    %917 = vmatpush.msra.mxu0 %v309
    %918 = vmatpush.msra.mxu0 %v305
    %919 = vmatpush.msra.mxu0 %v301
    %920 = vmatpush.msra.mxu0 %v297
    %921 = vmatpush.msra.mxu0 %v293
    %922 = vmatpush.msra.mxu0 %v289
    %923 = vmatpush.msra.mxu0 %v285
    %924 = vmatpush.msra.mxu0 %v281
    %925 = vmatpush.msra.mxu0 %v277
    %926 = vmatpush.msra.mxu0 %v273
    %927 = vmatpush.msra.mxu0 %v269
    %928 = vmatpush.msra.mxu0 %v265
    %929 = vmatmul.f32.gmra.mxu0 %v130
    %v930 = vpop.f32.mrf.mxu0
    %v931 = vadd.f32 %v911, %v930
    %932 = vdwg.mxu0
    %933 = vmatpush.msra.mxu0 %v389
    %934 = vmatpush.msra.mxu0 %v385
    %935 = vmatpush.msra.mxu0 %v381
    %936 = vmatpush.msra.mxu0 %v377
    %937 = vmatpush.msra.mxu0 %v373
    %938 = vmatpush.msra.mxu0 %v369
    %939 = vmatpush.msra.mxu0 %v365
    %940 = vmatpush.msra.mxu0 %v361
    %941 = vmatpush.msra.mxu0 %v357
    %942 = vmatpush.msra.mxu0 %v353
    %943 = vmatpush.msra.mxu0 %v349
    %944 = vmatpush.msra.mxu0 %v345
    %945 = vmatpush.msra.mxu0 %v341
    %946 = vmatpush.msra.mxu0 %v337
    %947 = vmatpush.msra.mxu0 %v333
    %948 = vmatpush.msra.mxu0 %v329
    %949 = vmatmul.f32.gmra.mxu0 %v131
    %v950 = vpop.f32.mrf.mxu0
    %v951 = vadd.f32 %v931, %v950
    %952 = vdwg.mxu0
    %953 = vmatpush.msra.mxu0 %v453
    %954 = vmatpush.msra.mxu0 %v449
    %955 = vmatpush.msra.mxu0 %v445
    %956 = vmatpush.msra.mxu0 %v441
    %957 = vmatpush.msra.mxu0 %v437
    %958 = vmatpush.msra.mxu0 %v433
    %959 = vmatpush.msra.mxu0 %v429
    %960 = vmatpush.msra.mxu0 %v425
    %961 = vmatpush.msra.mxu0 %v421
    %962 = vmatpush.msra.mxu0 %v417
    %963 = vmatpush.msra.mxu0 %v413
    %964 = vmatpush.msra.mxu0 %v409
    %965 = vmatpush.msra.mxu0 %v405
    %966 = vmatpush.msra.mxu0 %v401
    %967 = vmatpush.msra.mxu0 %v397
    %968 = vmatpush.msra.mxu0 %v393
    %969 = vmatmul.f32.gmra.mxu0 %v132
    %v970 = vpop.f32.mrf.mxu0
    %v971 = vadd.f32 %v951, %v970
    %972 = vdwg.mxu0
    %973 = vmatpush.msra.mxu0 %v517
    %974 = vmatpush.msra.mxu0 %v513
    %975 = vmatpush.msra.mxu0 %v509
    %976 = vmatpush.msra.mxu0 %v505
    %977 = vmatpush.msra.mxu0 %v501
    %978 = vmatpush.msra.mxu0 %v497
    %979 = vmatpush.msra.mxu0 %v493
    %980 = vmatpush.msra.mxu0 %v489
    %981 = vmatpush.msra.mxu0 %v485
    %982 = vmatpush.msra.mxu0 %v481
    %983 = vmatpush.msra.mxu0 %v477
    %984 = vmatpush.msra.mxu0 %v473
    %985 = vmatpush.msra.mxu0 %v469
    %986 = vmatpush.msra.mxu0 %v465
    %987 = vmatpush.msra.mxu0 %v461
    %988 = vmatpush.msra.mxu0 %v457
    %989 = vmatmul.f32.gmra.mxu0 %v133
    %v990 = vpop.f32.mrf.mxu0
    %v991 = vadd.f32 %v971, %v990
    %992 = vdwg.mxu0
    %993 = vmatpush.msra.mxu0 %v581
    %994 = vmatpush.msra.mxu0 %v577
    %995 = vmatpush.msra.mxu0 %v573
    %996 = vmatpush.msra.mxu0 %v569
    %997 = vmatpush.msra.mxu0 %v565
    %998 = vmatpush.msra.mxu0 %v561
    %999 = vmatpush.msra.mxu0 %v557
    %1000 = vmatpush.msra.mxu0 %v553
    %1001 = vmatpush.msra.mxu0 %v549
    %1002 = vmatpush.msra.mxu0 %v545
    %1003 = vmatpush.msra.mxu0 %v541
    %1004 = vmatpush.msra.mxu0 %v537
    %1005 = vmatpush.msra.mxu0 %v533
    %1006 = vmatpush.msra.mxu0 %v529
    %1007 = vmatpush.msra.mxu0 %v525
    %1008 = vmatpush.msra.mxu0 %v521
    %1009 = vmatmul.f32.gmra.mxu0 %v134
    %v1010 = vpop.f32.mrf.mxu0
    %v1011 = vadd.f32 %v991, %v1010
    %1012 = vdwg.mxu0
    %1013 = vmatpush.msra.mxu0 %v198
    %1014 = vmatpush.msra.mxu0 %v194
    %1015 = vmatpush.msra.mxu0 %v190
    %1016 = vmatpush.msra.mxu0 %v186
    %1017 = vmatpush.msra.mxu0 %v182
    %1018 = vmatpush.msra.mxu0 %v178
    %1019 = vmatpush.msra.mxu0 %v174
    %1020 = vmatpush.msra.mxu0 %v170
    %1021 = vmatpush.msra.mxu0 %v166
    %1022 = vmatpush.msra.mxu0 %v162
    %1023 = vmatpush.msra.mxu0 %v158
    %1024 = vmatpush.msra.mxu0 %v154
    %1025 = vmatpush.msra.mxu0 %v150
    %1026 = vmatpush.msra.mxu0 %v146
    %1027 = vmatpush.msra.mxu0 %v142
    %1028 = vmatpush.msra.mxu0 %v138
    %1029 = vmatmul.f32.gmra.mxu0 %v128
    %v1030 = vpop.f32.mrf.mxu0
    %v1031 = vadd.f32 %v588, %v1030
    %1032 = vdwg.mxu0
    %1033 = vmatpush.msra.mxu0 %v262
    %1034 = vmatpush.msra.mxu0 %v258
    %1035 = vmatpush.msra.mxu0 %v254
    %1036 = vmatpush.msra.mxu0 %v250
    %1037 = vmatpush.msra.mxu0 %v246
    %1038 = vmatpush.msra.mxu0 %v242
    %1039 = vmatpush.msra.mxu0 %v238
    %1040 = vmatpush.msra.mxu0 %v234
    %1041 = vmatpush.msra.mxu0 %v230
    %1042 = vmatpush.msra.mxu0 %v226
    %1043 = vmatpush.msra.mxu0 %v222
    %1044 = vmatpush.msra.mxu0 %v218
    %1045 = vmatpush.msra.mxu0 %v214
    %1046 = vmatpush.msra.mxu0 %v210
    %1047 = vmatpush.msra.mxu0 %v206
    %1048 = vmatpush.msra.mxu0 %v202
    %1049 = vmatmul.f32.gmra.mxu0 %v129
    %v1050 = vpop.f32.mrf.mxu0
    %v1051 = vadd.f32 %v1031, %v1050
    %1052 = vdwg.mxu0
    %1053 = vmatpush.msra.mxu0 %v326
    %1054 = vmatpush.msra.mxu0 %v322
    %1055 = vmatpush.msra.mxu0 %v318
    %1056 = vmatpush.msra.mxu0 %v314
    %1057 = vmatpush.msra.mxu0 %v310
    %1058 = vmatpush.msra.mxu0 %v306
    %1059 = vmatpush.msra.mxu0 %v302
    %1060 = vmatpush.msra.mxu0 %v298
    %1061 = vmatpush.msra.mxu0 %v294
    %1062 = vmatpush.msra.mxu0 %v290
    %1063 = vmatpush.msra.mxu0 %v286
    %1064 = vmatpush.msra.mxu0 %v282
    %1065 = vmatpush.msra.mxu0 %v278
    %1066 = vmatpush.msra.mxu0 %v274
    %1067 = vmatpush.msra.mxu0 %v270
    %1068 = vmatpush.msra.mxu0 %v266
    %1069 = vmatmul.f32.gmra.mxu0 %v130
    %v1070 = vpop.f32.mrf.mxu0
    %v1071 = vadd.f32 %v1051, %v1070
    %1072 = vdwg.mxu0
    %1073 = vmatpush.msra.mxu0 %v390
    %1074 = vmatpush.msra.mxu0 %v386
    %1075 = vmatpush.msra.mxu0 %v382
    %1076 = vmatpush.msra.mxu0 %v378
    %1077 = vmatpush.msra.mxu0 %v374
    %1078 = vmatpush.msra.mxu0 %v370
    %1079 = vmatpush.msra.mxu0 %v366
    %1080 = vmatpush.msra.mxu0 %v362
    %1081 = vmatpush.msra.mxu0 %v358
    %1082 = vmatpush.msra.mxu0 %v354
    %1083 = vmatpush.msra.mxu0 %v350
    %1084 = vmatpush.msra.mxu0 %v346
    %1085 = vmatpush.msra.mxu0 %v342
    %1086 = vmatpush.msra.mxu0 %v338
    %1087 = vmatpush.msra.mxu0 %v334
    %1088 = vmatpush.msra.mxu0 %v330
    %1089 = vmatmul.f32.gmra.mxu0 %v131
    %v1090 = vpop.f32.mrf.mxu0
    %v1091 = vadd.f32 %v1071, %v1090
    %1092 = vdwg.mxu0
    %1093 = vmatpush.msra.mxu0 %v454
    %1094 = vmatpush.msra.mxu0 %v450
    %1095 = vmatpush.msra.mxu0 %v446
    %1096 = vmatpush.msra.mxu0 %v442
    %1097 = vmatpush.msra.mxu0 %v438
    %1098 = vmatpush.msra.mxu0 %v434
    %1099 = vmatpush.msra.mxu0 %v430
    %1100 = vmatpush.msra.mxu0 %v426
    %1101 = vmatpush.msra.mxu0 %v422
    %1102 = vmatpush.msra.mxu0 %v418
    %1103 = vmatpush.msra.mxu0 %v414
    %1104 = vmatpush.msra.mxu0 %v410
    %1105 = vmatpush.msra.mxu0 %v406
    %1106 = vmatpush.msra.mxu0 %v402
    %1107 = vmatpush.msra.mxu0 %v398
    %1108 = vmatpush.msra.mxu0 %v394
    %1109 = vmatmul.f32.gmra.mxu0 %v132
    %v1110 = vpop.f32.mrf.mxu0
    %v1111 = vadd.f32 %v1091, %v1110
    %1112 = vdwg.mxu0
    %1113 = vmatpush.msra.mxu0 %v518
    %1114 = vmatpush.msra.mxu0 %v514
    %1115 = vmatpush.msra.mxu0 %v510
    %1116 = vmatpush.msra.mxu0 %v506
    %1117 = vmatpush.msra.mxu0 %v502
    %1118 = vmatpush.msra.mxu0 %v498
    %1119 = vmatpush.msra.mxu0 %v494
    %1120 = vmatpush.msra.mxu0 %v490
    %1121 = vmatpush.msra.mxu0 %v486
    %1122 = vmatpush.msra.mxu0 %v482
    %1123 = vmatpush.msra.mxu0 %v478
    %1124 = vmatpush.msra.mxu0 %v474
    %1125 = vmatpush.msra.mxu0 %v470
    %1126 = vmatpush.msra.mxu0 %v466
    %1127 = vmatpush.msra.mxu0 %v462
    %1128 = vmatpush.msra.mxu0 %v458
    %1129 = vmatmul.f32.gmra.mxu0 %v133
    %v1130 = vpop.f32.mrf.mxu0
    %v1131 = vadd.f32 %v1111, %v1130
    %1132 = vdwg.mxu0
    %1133 = vmatpush.msra.mxu0 %v582
    %1134 = vmatpush.msra.mxu0 %v578
    %1135 = vmatpush.msra.mxu0 %v574
    %1136 = vmatpush.msra.mxu0 %v570
    %1137 = vmatpush.msra.mxu0 %v566
    %1138 = vmatpush.msra.mxu0 %v562
    %1139 = vmatpush.msra.mxu0 %v558
    %1140 = vmatpush.msra.mxu0 %v554
    %1141 = vmatpush.msra.mxu0 %v550
    %1142 = vmatpush.msra.mxu0 %v546
    %1143 = vmatpush.msra.mxu0 %v542
    %1144 = vmatpush.msra.mxu0 %v538
    %1145 = vmatpush.msra.mxu0 %v534
    %1146 = vmatpush.msra.mxu0 %v530
    %1147 = vmatpush.msra.mxu0 %v526
    %1148 = vmatpush.msra.mxu0 %v522
    %1149 = vmatmul.f32.gmra.mxu0 %v134
    %v1150 = vpop.f32.mrf.mxu0
    %v1151 = vadd.f32 %v1131, %v1150
    %1152 = vdwg.mxu0
    %v1153 = vmax.f32 %v731, 0.0
    %v1154 = vmax.f32 %v871, 0.0
    %v1155 = vmax.f32 %v1011, 0.0
    %v1156 = vmax.f32 %v1151, 0.0
    %v1157 = vld [vmem:[#allocation8] sm:$0xff]
    %v1158 = vld [vmem:[#allocation8 + $0x8] sm:$0xff]
    %v1159 = vld [vmem:[#allocation8 + $0x10] sm:$0xff]
    %v1160 = vld [vmem:[#allocation8 + $0x18] sm:$0xff]
    %v1161 = vld [vmem:[#allocation8 + $0x20] sm:$0xff]
    %v1162 = vld [vmem:[#allocation8 + $0x28] sm:$0xff]
    %v1163 = vld [vmem:[#allocation8 + $0x30] sm:$0xff]
    %v1164 = vld [vmem:[#allocation8 + $0x38] sm:$0xff]
    %v1165 = vld [vmem:[#allocation8 + $0x40] sm:$0xff]
    %v1166 = vld [vmem:[#allocation8 + $0x48] sm:$0xff]
    %v1167 = vld [vmem:[#allocation8 + $0x50] sm:$0xff]
    %v1168 = vld [vmem:[#allocation8 + $0x58] sm:$0xff]
    %v1169 = vld [vmem:[#allocation8 + $0x60] sm:$0xff]
    %v1170 = vld [vmem:[#allocation8 + $0x68] sm:$0xff]
    %v1171 = vld [vmem:[#allocation8 + $0x70] sm:$0xff]
    %v1172 = vld [vmem:[#allocation8 + $0x78] sm:$0xff]
    %v1173 = vld [vmem:[#allocation8 + $0x80] sm:$0xff]
    %v1174 = vld [vmem:[#allocation8 + $0x88] sm:$0xff]
    %v1175 = vld [vmem:[#allocation8 + $0x90] sm:$0xff]
    %v1176 = vld [vmem:[#allocation8 + $0x98] sm:$0xff]
    %v1177 = vld [vmem:[#allocation8 + $0xa0] sm:$0xff]
    %v1178 = vld [vmem:[#allocation8 + $0xa8] sm:$0xff]
    %v1179 = vld [vmem:[#allocation8 + $0xb0] sm:$0xff]
    %v1180 = vld [vmem:[#allocation8 + $0xb8] sm:$0xff]
    %v1181 = vld [vmem:[#allocation8 + $0xc0] sm:$0xff]
    %v1182 = vld [vmem:[#allocation8 + $0xc8] sm:$0xff]
    %v1183 = vld [vmem:[#allocation8 + $0xd0] sm:$0xff]
    %v1184 = vld [vmem:[#allocation8 + $0xd8] sm:$0xff]
    %v1185 = vld [vmem:[#allocation8 + $0xe0] sm:$0xff]
    %v1186 = vld [vmem:[#allocation8 + $0xe8] sm:$0xff]
    %v1187 = vld [vmem:[#allocation8 + $0xf0] sm:$0xff]
    %v1188 = vld [vmem:[#allocation8 + $0xf8] sm:$0xff]
    %v1189 = vld [vmem:[#allocation8 + $0x100] sm:$0xff]
    %v1190 = vld [vmem:[#allocation8 + $0x108] sm:$0xff]
    %v1191 = vld [vmem:[#allocation8 + $0x110] sm:$0xff]
    %v1192 = vld [vmem:[#allocation8 + $0x118] sm:$0xff]
    %v1193 = vld [vmem:[#allocation8 + $0x120] sm:$0xff]
    %v1194 = vld [vmem:[#allocation8 + $0x128] sm:$0xff]
    %v1195 = vld [vmem:[#allocation8 + $0x130] sm:$0xff]
    %v1196 = vld [vmem:[#allocation8 + $0x138] sm:$0xff]
    %v1197 = vld [vmem:[#allocation8 + $0x140] sm:$0xff]
    %v1198 = vld [vmem:[#allocation8 + $0x148] sm:$0xff]
    %v1199 = vld [vmem:[#allocation8 + $0x150] sm:$0xff]
    %v1200 = vld [vmem:[#allocation8 + $0x158] sm:$0xff]
    %v1201 = vld [vmem:[#allocation8 + $0x160] sm:$0xff]
    %v1202 = vld [vmem:[#allocation8 + $0x168] sm:$0xff]
    %v1203 = vld [vmem:[#allocation8 + $0x170] sm:$0xff]
    %v1204 = vld [vmem:[#allocation8 + $0x178] sm:$0xff]
    %v1205 = vld [vmem:[#allocation8 + $0x180] sm:$0xff]
    %v1206 = vld [vmem:[#allocation8 + $0x188] sm:$0xff]
    %v1207 = vld [vmem:[#allocation8 + $0x190] sm:$0xff]
    %v1208 = vld [vmem:[#allocation8 + $0x198] sm:$0xff]
    %v1209 = vld [vmem:[#allocation8 + $0x1a0] sm:$0xff]
    %v1210 = vld [vmem:[#allocation8 + $0x1a8] sm:$0xff]
    %v1211 = vld [vmem:[#allocation8 + $0x1b0] sm:$0xff]
    %v1212 = vld [vmem:[#allocation8 + $0x1b8] sm:$0xff]
    %v1213 = vld [vmem:[#allocation8 + $0x1c0] sm:$0xff]
    %v1214 = vld [vmem:[#allocation8 + $0x1c8] sm:$0xff]
    %v1215 = vld [vmem:[#allocation8 + $0x1d0] sm:$0xff]
    %v1216 = vld [vmem:[#allocation8 + $0x1d8] sm:$0xff]
    %v1217 = vld [vmem:[#allocation8 + $0x1e0] sm:$0xff]
    %v1218 = vld [vmem:[#allocation8 + $0x1e8] sm:$0xff]
    %v1219 = vld [vmem:[#allocation8 + $0x1f0] sm:$0xff]
    %v1220 = vld [vmem:[#allocation8 + $0x1f8] sm:$0xff]
    %v1221 = vld [vmem:[#allocation8 + $0x200] sm:$0xff]
    %v1222 = vld [vmem:[#allocation8 + $0x208] sm:$0xff]
    %v1223 = vld [vmem:[#allocation8 + $0x210] sm:$0xff]
    %v1224 = vld [vmem:[#allocation8 + $0x218] sm:$0xff]
    %v1225 = vld [vmem:[#allocation8 + $0x220] sm:$0xff]
    %v1226 = vld [vmem:[#allocation8 + $0x228] sm:$0xff]
    %v1227 = vld [vmem:[#allocation8 + $0x230] sm:$0xff]
    %v1228 = vld [vmem:[#allocation8 + $0x238] sm:$0xff]
    %v1229 = vld [vmem:[#allocation8 + $0x240] sm:$0xff]
    %v1230 = vld [vmem:[#allocation8 + $0x248] sm:$0xff]
    %v1231 = vld [vmem:[#allocation8 + $0x250] sm:$0xff]
    %v1232 = vld [vmem:[#allocation8 + $0x258] sm:$0xff]
    %v1233 = vld [vmem:[#allocation8 + $0x260] sm:$0xff]
    %v1234 = vld [vmem:[#allocation8 + $0x268] sm:$0xff]
    %v1235 = vld [vmem:[#allocation8 + $0x270] sm:$0xff]
    %v1236 = vld [vmem:[#allocation8 + $0x278] sm:$0xff]
    %v1237 = vld [vmem:[#allocation8 + $0x280] sm:$0xff]
    %v1238 = vld [vmem:[#allocation8 + $0x288] sm:$0xff]
    %v1239 = vld [vmem:[#allocation8 + $0x290] sm:$0xff]
    %v1240 = vld [vmem:[#allocation8 + $0x298] sm:$0xff]
    %v1241 = vld [vmem:[#allocation8 + $0x2a0] sm:$0xff]
    %v1242 = vld [vmem:[#allocation8 + $0x2a8] sm:$0xff]
    %v1243 = vld [vmem:[#allocation8 + $0x2b0] sm:$0xff]
    %v1244 = vld [vmem:[#allocation8 + $0x2b8] sm:$0xff]
    %v1245 = vld [vmem:[#allocation8 + $0x2c0] sm:$0xff]
    %v1246 = vld [vmem:[#allocation8 + $0x2c8] sm:$0xff]
    %v1247 = vld [vmem:[#allocation8 + $0x2d0] sm:$0xff]
    %v1248 = vld [vmem:[#allocation8 + $0x2d8] sm:$0xff]
    %v1249 = vld [vmem:[#allocation8 + $0x2e0] sm:$0xff]
    %v1250 = vld [vmem:[#allocation8 + $0x2e8] sm:$0xff]
    %v1251 = vld [vmem:[#allocation8 + $0x2f0] sm:$0xff]
    %v1252 = vld [vmem:[#allocation8 + $0x2f8] sm:$0xff]
    %v1253 = vld [vmem:[#allocation8 + $0x300] sm:$0xff]
    %v1254 = vld [vmem:[#allocation8 + $0x308] sm:$0xff]
    %v1255 = vld [vmem:[#allocation8 + $0x310] sm:$0xff]
    %v1256 = vld [vmem:[#allocation8 + $0x318] sm:$0xff]
    %v1257 = vld [vmem:[#allocation8 + $0x320] sm:$0xff]
    %v1258 = vld [vmem:[#allocation8 + $0x328] sm:$0xff]
    %v1259 = vld [vmem:[#allocation8 + $0x330] sm:$0xff]
    %v1260 = vld [vmem:[#allocation8 + $0x338] sm:$0xff]
    %v1261 = vld [vmem:[#allocation8 + $0x340] sm:$0xff]
    %v1262 = vld [vmem:[#allocation8 + $0x348] sm:$0xff]
    %v1263 = vld [vmem:[#allocation8 + $0x350] sm:$0xff]
    %v1264 = vld [vmem:[#allocation8 + $0x358] sm:$0xff]
    %v1265 = vld [vmem:[#allocation8 + $0x360] sm:$0xff]
    %v1266 = vld [vmem:[#allocation8 + $0x368] sm:$0xff]
    %v1267 = vld [vmem:[#allocation8 + $0x370] sm:$0xff]
    %v1268 = vld [vmem:[#allocation8 + $0x378] sm:$0xff]
    %v1269 = vld [vmem:[#allocation8 + $0x380] sm:$0xff]
    %v1270 = vld [vmem:[#allocation8 + $0x388] sm:$0xff]
    %v1271 = vld [vmem:[#allocation8 + $0x390] sm:$0xff]
    %v1272 = vld [vmem:[#allocation8 + $0x398] sm:$0xff]
    %v1273 = vld [vmem:[#allocation8 + $0x3a0] sm:$0xff]
    %v1274 = vld [vmem:[#allocation8 + $0x3a8] sm:$0xff]
    %v1275 = vld [vmem:[#allocation8 + $0x3b0] sm:$0xff]
    %v1276 = vld [vmem:[#allocation8 + $0x3b8] sm:$0xff]
    %v1277 = vld [vmem:[#allocation8 + $0x3c0] sm:$0xff]
    %v1278 = vld [vmem:[#allocation8 + $0x3c8] sm:$0xff]
    %v1279 = vld [vmem:[#allocation8 + $0x3d0] sm:$0xff]
    %v1280 = vld [vmem:[#allocation8 + $0x3d8] sm:$0xff]
    %v1281 = vld [vmem:[#allocation8 + $0x3e0] sm:$0xff]
    %v1282 = vld [vmem:[#allocation8 + $0x3e8] sm:$0xff]
    %v1283 = vld [vmem:[#allocation8 + $0x3f0] sm:$0xff]
    %v1284 = vld [vmem:[#allocation8 + $0x3f8] sm:$0xff]
    %v1285 = vld [vmem:[#allocation8 + $0x400] sm:$0xff]
    %v1286 = vld [vmem:[#allocation8 + $0x408] sm:$0xff]
    %v1287 = vld [vmem:[#allocation8 + $0x410] sm:$0xff]
    %v1288 = vld [vmem:[#allocation8 + $0x418] sm:$0xff]
    %v1289 = vld [vmem:[#allocation8 + $0x420] sm:$0xff]
    %v1290 = vld [vmem:[#allocation8 + $0x428] sm:$0xff]
    %v1291 = vld [vmem:[#allocation8 + $0x430] sm:$0xff]
    %v1292 = vld [vmem:[#allocation8 + $0x438] sm:$0xff]
    %v1293 = vld [vmem:[#allocation8 + $0x440] sm:$0xff]
    %v1294 = vld [vmem:[#allocation8 + $0x448] sm:$0xff]
    %v1295 = vld [vmem:[#allocation8 + $0x450] sm:$0xff]
    %v1296 = vld [vmem:[#allocation8 + $0x458] sm:$0xff]
    %v1297 = vld [vmem:[#allocation8 + $0x460] sm:$0xff]
    %v1298 = vld [vmem:[#allocation8 + $0x468] sm:$0xff]
    %v1299 = vld [vmem:[#allocation8 + $0x470] sm:$0xff]
    %v1300 = vld [vmem:[#allocation8 + $0x478] sm:$0xff]
    %v1301 = vld [vmem:[#allocation8 + $0x480] sm:$0xff]
    %v1302 = vld [vmem:[#allocation8 + $0x488] sm:$0xff]
    %v1303 = vld [vmem:[#allocation8 + $0x490] sm:$0xff]
    %v1304 = vld [vmem:[#allocation8 + $0x498] sm:$0xff]
    %v1305 = vld [vmem:[#allocation8 + $0x4a0] sm:$0xff]
    %v1306 = vld [vmem:[#allocation8 + $0x4a8] sm:$0xff]
    %v1307 = vld [vmem:[#allocation8 + $0x4b0] sm:$0xff]
    %v1308 = vld [vmem:[#allocation8 + $0x4b8] sm:$0xff]
    %v1309 = vld [vmem:[#allocation8 + $0x4c0] sm:$0xff]
    %v1310 = vld [vmem:[#allocation8 + $0x4c8] sm:$0xff]
    %v1311 = vld [vmem:[#allocation8 + $0x4d0] sm:$0xff]
    %v1312 = vld [vmem:[#allocation8 + $0x4d8] sm:$0xff]
    %v1313 = vld [vmem:[#allocation8 + $0x4e0] sm:$0xff]
    %v1314 = vld [vmem:[#allocation8 + $0x4e8] sm:$0xff]
    %v1315 = vld [vmem:[#allocation8 + $0x4f0] sm:$0xff]
    %v1316 = vld [vmem:[#allocation8 + $0x4f8] sm:$0xff]
    %v1317 = vld [vmem:[#allocation8 + $0x500] sm:$0xff]
    %v1318 = vld [vmem:[#allocation8 + $0x508] sm:$0xff]
    %v1319 = vld [vmem:[#allocation8 + $0x510] sm:$0xff]
    %v1320 = vld [vmem:[#allocation8 + $0x518] sm:$0xff]
    %v1321 = vld [vmem:[#allocation8 + $0x520] sm:$0xff]
    %v1322 = vld [vmem:[#allocation8 + $0x528] sm:$0xff]
    %v1323 = vld [vmem:[#allocation8 + $0x530] sm:$0xff]
    %v1324 = vld [vmem:[#allocation8 + $0x538] sm:$0xff]
    %v1325 = vld [vmem:[#allocation8 + $0x540] sm:$0xff]
    %v1326 = vld [vmem:[#allocation8 + $0x548] sm:$0xff]
    %v1327 = vld [vmem:[#allocation8 + $0x550] sm:$0xff]
    %v1328 = vld [vmem:[#allocation8 + $0x558] sm:$0xff]
    %v1329 = vld [vmem:[#allocation8 + $0x560] sm:$0xff]
    %v1330 = vld [vmem:[#allocation8 + $0x568] sm:$0xff]
    %v1331 = vld [vmem:[#allocation8 + $0x570] sm:$0xff]
    %v1332 = vld [vmem:[#allocation8 + $0x578] sm:$0xff]
    %v1333 = vld [vmem:[#allocation8 + $0x580] sm:$0xff]
    %v1334 = vld [vmem:[#allocation8 + $0x588] sm:$0xff]
    %v1335 = vld [vmem:[#allocation8 + $0x590] sm:$0xff]
    %v1336 = vld [vmem:[#allocation8 + $0x598] sm:$0xff]
    %v1337 = vld [vmem:[#allocation8 + $0x5a0] sm:$0xff]
    %v1338 = vld [vmem:[#allocation8 + $0x5a8] sm:$0xff]
    %v1339 = vld [vmem:[#allocation8 + $0x5b0] sm:$0xff]
    %v1340 = vld [vmem:[#allocation8 + $0x5b8] sm:$0xff]
    %v1341 = vld [vmem:[#allocation8 + $0x5c0] sm:$0xff]
    %v1342 = vld [vmem:[#allocation8 + $0x5c8] sm:$0xff]
    %v1343 = vld [vmem:[#allocation8 + $0x5d0] sm:$0xff]
    %v1344 = vld [vmem:[#allocation8 + $0x5d8] sm:$0xff]
    %v1345 = vld [vmem:[#allocation8 + $0x5e0] sm:$0xff]
    %v1346 = vld [vmem:[#allocation8 + $0x5e8] sm:$0xff]
    %v1347 = vld [vmem:[#allocation8 + $0x5f0] sm:$0xff]
    %v1348 = vld [vmem:[#allocation8 + $0x5f8] sm:$0xff]
    %v1349 = vld [vmem:[#allocation8 + $0x600] sm:$0xff]
    %v1350 = vld [vmem:[#allocation8 + $0x608] sm:$0xff]
    %v1351 = vld [vmem:[#allocation8 + $0x610] sm:$0xff]
    %v1352 = vld [vmem:[#allocation8 + $0x618] sm:$0xff]
    %v1353 = vld [vmem:[#allocation8 + $0x620] sm:$0xff]
    %v1354 = vld [vmem:[#allocation8 + $0x628] sm:$0xff]
    %v1355 = vld [vmem:[#allocation8 + $0x630] sm:$0xff]
    %v1356 = vld [vmem:[#allocation8 + $0x638] sm:$0xff]
    %v1357 = vld [vmem:[#allocation8 + $0x640] sm:$0xff]
    %v1358 = vld [vmem:[#allocation8 + $0x648] sm:$0xff]
    %v1359 = vld [vmem:[#allocation8 + $0x650] sm:$0xff]
    %v1360 = vld [vmem:[#allocation8 + $0x658] sm:$0xff]
    %v1361 = vld [vmem:[#allocation8 + $0x660] sm:$0xff]
    %v1362 = vld [vmem:[#allocation8 + $0x668] sm:$0xff]
    %v1363 = vld [vmem:[#allocation8 + $0x670] sm:$0xff]
    %v1364 = vld [vmem:[#allocation8 + $0x678] sm:$0xff]
    %v1365 = vld [vmem:[#allocation8 + $0x680] sm:$0xff]
    %v1366 = vld [vmem:[#allocation8 + $0x688] sm:$0xff]
    %v1367 = vld [vmem:[#allocation8 + $0x690] sm:$0xff]
    %v1368 = vld [vmem:[#allocation8 + $0x698] sm:$0xff]
    %v1369 = vld [vmem:[#allocation8 + $0x6a0] sm:$0xff]
    %v1370 = vld [vmem:[#allocation8 + $0x6a8] sm:$0xff]
    %v1371 = vld [vmem:[#allocation8 + $0x6b0] sm:$0xff]
    %v1372 = vld [vmem:[#allocation8 + $0x6b8] sm:$0xff]
    %v1373 = vld [vmem:[#allocation8 + $0x6c0] sm:$0xff]
    %v1374 = vld [vmem:[#allocation8 + $0x6c8] sm:$0xff]
    %v1375 = vld [vmem:[#allocation8 + $0x6d0] sm:$0xff]
    %v1376 = vld [vmem:[#allocation8 + $0x6d8] sm:$0xff]
    %v1377 = vld [vmem:[#allocation8 + $0x6e0] sm:$0xff]
    %v1378 = vld [vmem:[#allocation8 + $0x6e8] sm:$0xff]
    %v1379 = vld [vmem:[#allocation8 + $0x6f0] sm:$0xff]
    %v1380 = vld [vmem:[#allocation8 + $0x6f8] sm:$0xff]
    %v1381 = vld [vmem:[#allocation8 + $0x700] sm:$0xff]
    %v1382 = vld [vmem:[#allocation8 + $0x708] sm:$0xff]
    %v1383 = vld [vmem:[#allocation8 + $0x710] sm:$0xff]
    %v1384 = vld [vmem:[#allocation8 + $0x718] sm:$0xff]
    %v1385 = vld [vmem:[#allocation8 + $0x720] sm:$0xff]
    %v1386 = vld [vmem:[#allocation8 + $0x728] sm:$0xff]
    %v1387 = vld [vmem:[#allocation8 + $0x730] sm:$0xff]
    %v1388 = vld [vmem:[#allocation8 + $0x738] sm:$0xff]
    %v1389 = vld [vmem:[#allocation8 + $0x740] sm:$0xff]
    %v1390 = vld [vmem:[#allocation8 + $0x748] sm:$0xff]
    %v1391 = vld [vmem:[#allocation8 + $0x750] sm:$0xff]
    %v1392 = vld [vmem:[#allocation8 + $0x758] sm:$0xff]
    %v1393 = vld [vmem:[#allocation8 + $0x760] sm:$0xff]
    %v1394 = vld [vmem:[#allocation8 + $0x768] sm:$0xff]
    %v1395 = vld [vmem:[#allocation8 + $0x770] sm:$0xff]
    %v1396 = vld [vmem:[#allocation8 + $0x778] sm:$0xff]
    %v1397 = vld [vmem:[#allocation8 + $0x780] sm:$0xff]
    %v1398 = vld [vmem:[#allocation8 + $0x788] sm:$0xff]
    %v1399 = vld [vmem:[#allocation8 + $0x790] sm:$0xff]
    %v1400 = vld [vmem:[#allocation8 + $0x798] sm:$0xff]
    %v1401 = vld [vmem:[#allocation8 + $0x7a0] sm:$0xff]
    %v1402 = vld [vmem:[#allocation8 + $0x7a8] sm:$0xff]
    %v1403 = vld [vmem:[#allocation8 + $0x7b0] sm:$0xff]
    %v1404 = vld [vmem:[#allocation8 + $0x7b8] sm:$0xff]
    %v1405 = vld [vmem:[#allocation8 + $0x7c0] sm:$0xff]
    %v1406 = vld [vmem:[#allocation8 + $0x7c8] sm:$0xff]
    %v1407 = vld [vmem:[#allocation8 + $0x7d0] sm:$0xff]
    %v1408 = vld [vmem:[#allocation8 + $0x7d8] sm:$0xff]
    %v1409 = vld [vmem:[#allocation8 + $0x7e0] sm:$0xff]
    %v1410 = vld [vmem:[#allocation8 + $0x7e8] sm:$0xff]
    %v1411 = vld [vmem:[#allocation8 + $0x7f0] sm:$0xff]
    %v1412 = vld [vmem:[#allocation8 + $0x7f8] sm:$0xff]
    %v1413 = vld [vmem:[#allocation10] sm:$0xf]
    %v1415 = vperm.slane %v1413, 0
    %v1416 = vperm.slane %v1413, 1
    %v1417 = vperm.slane %v1413, 2
    %v1418 = vperm.slane %v1413, 3
    %1423 = vmatpush.msra.mxu0 %v1217
    %1424 = vmatpush.msra.mxu0 %v1213
    %1425 = vmatpush.msra.mxu0 %v1209
    %1426 = vmatpush.msra.mxu0 %v1205
    %1427 = vmatpush.msra.mxu0 %v1201
    %1428 = vmatpush.msra.mxu0 %v1197
    %1429 = vmatpush.msra.mxu0 %v1193
    %1430 = vmatpush.msra.mxu0 %v1189
    %1431 = vmatpush.msra.mxu0 %v1185
    %1432 = vmatpush.msra.mxu0 %v1181
    %1433 = vmatpush.msra.mxu0 %v1177
    %1434 = vmatpush.msra.mxu0 %v1173
    %1435 = vmatpush.msra.mxu0 %v1169
    %1436 = vmatpush.msra.mxu0 %v1165
    %1437 = vmatpush.msra.mxu0 %v1161
    %1438 = vmatpush.msra.mxu0 %v1157
    %1439 = vmatmul.f32.gmra.mxu0 %v1153
    %v1440 = vpop.f32.mrf.mxu0
    %v1441 = vadd.f32 %v1415, %v1440
    %1442 = vdwg.mxu0
    %1443 = vmatpush.msra.mxu0 %v1281
    %1444 = vmatpush.msra.mxu0 %v1277
    %1445 = vmatpush.msra.mxu0 %v1273
    %1446 = vmatpush.msra.mxu0 %v1269
    %1447 = vmatpush.msra.mxu0 %v1265
    %1448 = vmatpush.msra.mxu0 %v1261
    %1449 = vmatpush.msra.mxu0 %v1257
    %1450 = vmatpush.msra.mxu0 %v1253
    %1451 = vmatpush.msra.mxu0 %v1249
    %1452 = vmatpush.msra.mxu0 %v1245
    %1453 = vmatpush.msra.mxu0 %v1241
    %1454 = vmatpush.msra.mxu0 %v1237
    %1455 = vmatpush.msra.mxu0 %v1233
    %1456 = vmatpush.msra.mxu0 %v1229
    %1457 = vmatpush.msra.mxu0 %v1225
    %1458 = vmatpush.msra.mxu0 %v1221
    %1459 = vmatmul.f32.gmra.mxu0 %v1154
    %v1460 = vpop.f32.mrf.mxu0
    %v1461 = vadd.f32 %v1441, %v1460
    %1462 = vdwg.mxu0
    %1463 = vmatpush.msra.mxu0 %v1345
    %1464 = vmatpush.msra.mxu0 %v1341
    %1465 = vmatpush.msra.mxu0 %v1337
    %1466 = vmatpush.msra.mxu0 %v1333
    %1467 = vmatpush.msra.mxu0 %v1329
    %1468 = vmatpush.msra.mxu0 %v1325
    %1469 = vmatpush.msra.mxu0 %v1321
    %1470 = vmatpush.msra.mxu0 %v1317
    %1471 = vmatpush.msra.mxu0 %v1313
    %1472 = vmatpush.msra.mxu0 %v1309
    %1473 = vmatpush.msra.mxu0 %v1305
    %1474 = vmatpush.msra.mxu0 %v1301
    %1475 = vmatpush.msra.mxu0 %v1297
    %1476 = vmatpush.msra.mxu0 %v1293
    %1477 = vmatpush.msra.mxu0 %v1289
    %1478 = vmatpush.msra.mxu0 %v1285
    %1479 = vmatmul.f32.gmra.mxu0 %v1155
    %v1480 = vpop.f32.mrf.mxu0
    %v1481 = vadd.f32 %v1461, %v1480
    %1482 = vdwg.mxu0
    %1483 = vmatpush.msra.mxu0 %v1409
    %1484 = vmatpush.msra.mxu0 %v1405
    %1485 = vmatpush.msra.mxu0 %v1401
    %1486 = vmatpush.msra.mxu0 %v1397
    %1487 = vmatpush.msra.mxu0 %v1393
    %1488 = vmatpush.msra.mxu0 %v1389
    %1489 = vmatpush.msra.mxu0 %v1385
    %1490 = vmatpush.msra.mxu0 %v1381
    %1491 = vmatpush.msra.mxu0 %v1377
    %1492 = vmatpush.msra.mxu0 %v1373
    %1493 = vmatpush.msra.mxu0 %v1369
    %1494 = vmatpush.msra.mxu0 %v1365
    %1495 = vmatpush.msra.mxu0 %v1361
    %1496 = vmatpush.msra.mxu0 %v1357
    %1497 = vmatpush.msra.mxu0 %v1353
    %1498 = vmatpush.msra.mxu0 %v1349
    %1499 = vmatmul.f32.gmra.mxu0 %v1156
    %v1500 = vpop.f32.mrf.mxu0
    %v1501 = vadd.f32 %v1481, %v1500
    %1502 = vdwg.mxu0
    %1503 = vmatpush.msra.mxu0 %v1218
    %1504 = vmatpush.msra.mxu0 %v1214
    %1505 = vmatpush.msra.mxu0 %v1210
    %1506 = vmatpush.msra.mxu0 %v1206
    %1507 = vmatpush.msra.mxu0 %v1202
    %1508 = vmatpush.msra.mxu0 %v1198
    %1509 = vmatpush.msra.mxu0 %v1194
    %1510 = vmatpush.msra.mxu0 %v1190
    %1511 = vmatpush.msra.mxu0 %v1186
    %1512 = vmatpush.msra.mxu0 %v1182
    %1513 = vmatpush.msra.mxu0 %v1178
    %1514 = vmatpush.msra.mxu0 %v1174
    %1515 = vmatpush.msra.mxu0 %v1170
    %1516 = vmatpush.msra.mxu0 %v1166
    %1517 = vmatpush.msra.mxu0 %v1162
    %1518 = vmatpush.msra.mxu0 %v1158
    %1519 = vmatmul.f32.gmra.mxu0 %v1153
    %v1520 = vpop.f32.mrf.mxu0
    %v1521 = vadd.f32 %v1416, %v1520
    %1522 = vdwg.mxu0
    %1523 = vmatpush.msra.mxu0 %v1282
    %1524 = vmatpush.msra.mxu0 %v1278
    %1525 = vmatpush.msra.mxu0 %v1274
    %1526 = vmatpush.msra.mxu0 %v1270
    %1527 = vmatpush.msra.mxu0 %v1266
    %1528 = vmatpush.msra.mxu0 %v1262
    %1529 = vmatpush.msra.mxu0 %v1258
    %1530 = vmatpush.msra.mxu0 %v1254
    %1531 = vmatpush.msra.mxu0 %v1250
    %1532 = vmatpush.msra.mxu0 %v1246
    %1533 = vmatpush.msra.mxu0 %v1242
    %1534 = vmatpush.msra.mxu0 %v1238
    %1535 = vmatpush.msra.mxu0 %v1234
    %1536 = vmatpush.msra.mxu0 %v1230
    %1537 = vmatpush.msra.mxu0 %v1226
    %1538 = vmatpush.msra.mxu0 %v1222
    %1539 = vmatmul.f32.gmra.mxu0 %v1154
    %v1540 = vpop.f32.mrf.mxu0
    %v1541 = vadd.f32 %v1521, %v1540
    %1542 = vdwg.mxu0
    %1543 = vmatpush.msra.mxu0 %v1346
    %1544 = vmatpush.msra.mxu0 %v1342
    %1545 = vmatpush.msra.mxu0 %v1338
    %1546 = vmatpush.msra.mxu0 %v1334
    %1547 = vmatpush.msra.mxu0 %v1330
    %1548 = vmatpush.msra.mxu0 %v1326
    %1549 = vmatpush.msra.mxu0 %v1322
    %1550 = vmatpush.msra.mxu0 %v1318
    %1551 = vmatpush.msra.mxu0 %v1314
    %1552 = vmatpush.msra.mxu0 %v1310
    %1553 = vmatpush.msra.mxu0 %v1306
    %1554 = vmatpush.msra.mxu0 %v1302
    %1555 = vmatpush.msra.mxu0 %v1298
    %1556 = vmatpush.msra.mxu0 %v1294
    %1557 = vmatpush.msra.mxu0 %v1290
    %1558 = vmatpush.msra.mxu0 %v1286
    %1559 = vmatmul.f32.gmra.mxu0 %v1155
    %v1560 = vpop.f32.mrf.mxu0
    %v1561 = vadd.f32 %v1541, %v1560
    %1562 = vdwg.mxu0
    %1563 = vmatpush.msra.mxu0 %v1410
    %1564 = vmatpush.msra.mxu0 %v1406
    %1565 = vmatpush.msra.mxu0 %v1402
    %1566 = vmatpush.msra.mxu0 %v1398
    %1567 = vmatpush.msra.mxu0 %v1394
    %1568 = vmatpush.msra.mxu0 %v1390
    %1569 = vmatpush.msra.mxu0 %v1386
    %1570 = vmatpush.msra.mxu0 %v1382
    %1571 = vmatpush.msra.mxu0 %v1378
    %1572 = vmatpush.msra.mxu0 %v1374
    %1573 = vmatpush.msra.mxu0 %v1370
    %1574 = vmatpush.msra.mxu0 %v1366
    %1575 = vmatpush.msra.mxu0 %v1362
    %1576 = vmatpush.msra.mxu0 %v1358
    %1577 = vmatpush.msra.mxu0 %v1354
    %1578 = vmatpush.msra.mxu0 %v1350
    %1579 = vmatmul.f32.gmra.mxu0 %v1156
    %v1580 = vpop.f32.mrf.mxu0
    %v1581 = vadd.f32 %v1561, %v1580
    %1582 = vdwg.mxu0
    %1583 = vmatpush.msra.mxu0 %v1219
    %1584 = vmatpush.msra.mxu0 %v1215
    %1585 = vmatpush.msra.mxu0 %v1211
    %1586 = vmatpush.msra.mxu0 %v1207
    %1587 = vmatpush.msra.mxu0 %v1203
    %1588 = vmatpush.msra.mxu0 %v1199
    %1589 = vmatpush.msra.mxu0 %v1195
    %1590 = vmatpush.msra.mxu0 %v1191
    %1591 = vmatpush.msra.mxu0 %v1187
    %1592 = vmatpush.msra.mxu0 %v1183
    %1593 = vmatpush.msra.mxu0 %v1179
    %1594 = vmatpush.msra.mxu0 %v1175
    %1595 = vmatpush.msra.mxu0 %v1171
    %1596 = vmatpush.msra.mxu0 %v1167
    %1597 = vmatpush.msra.mxu0 %v1163
    %1598 = vmatpush.msra.mxu0 %v1159
    %1599 = vmatmul.f32.gmra.mxu0 %v1153
    %v1600 = vpop.f32.mrf.mxu0
    %v1601 = vadd.f32 %v1417, %v1600
    %1602 = vdwg.mxu0
    %1603 = vmatpush.msra.mxu0 %v1283
    %1604 = vmatpush.msra.mxu0 %v1279
    %1605 = vmatpush.msra.mxu0 %v1275
    %1606 = vmatpush.msra.mxu0 %v1271
    %1607 = vmatpush.msra.mxu0 %v1267
    %1608 = vmatpush.msra.mxu0 %v1263
    %1609 = vmatpush.msra.mxu0 %v1259
    %1610 = vmatpush.msra.mxu0 %v1255
    %1611 = vmatpush.msra.mxu0 %v1251
    %1612 = vmatpush.msra.mxu0 %v1247
    %1613 = vmatpush.msra.mxu0 %v1243
    %1614 = vmatpush.msra.mxu0 %v1239
    %1615 = vmatpush.msra.mxu0 %v1235
    %1616 = vmatpush.msra.mxu0 %v1231
    %1617 = vmatpush.msra.mxu0 %v1227
    %1618 = vmatpush.msra.mxu0 %v1223
    %1619 = vmatmul.f32.gmra.mxu0 %v1154
    %v1620 = vpop.f32.mrf.mxu0
    %v1621 = vadd.f32 %v1601, %v1620
    %1622 = vdwg.mxu0
    %1623 = vmatpush.msra.mxu0 %v1347
    %1624 = vmatpush.msra.mxu0 %v1343
    %1625 = vmatpush.msra.mxu0 %v1339
    %1626 = vmatpush.msra.mxu0 %v1335
    %1627 = vmatpush.msra.mxu0 %v1331
    %1628 = vmatpush.msra.mxu0 %v1327
    %1629 = vmatpush.msra.mxu0 %v1323
    %1630 = vmatpush.msra.mxu0 %v1319
    %1631 = vmatpush.msra.mxu0 %v1315
    %1632 = vmatpush.msra.mxu0 %v1311
    %1633 = vmatpush.msra.mxu0 %v1307
    %1634 = vmatpush.msra.mxu0 %v1303
    %1635 = vmatpush.msra.mxu0 %v1299
    %1636 = vmatpush.msra.mxu0 %v1295
    %1637 = vmatpush.msra.mxu0 %v1291
    %1638 = vmatpush.msra.mxu0 %v1287
    %1639 = vmatmul.f32.gmra.mxu0 %v1155
    %v1640 = vpop.f32.mrf.mxu0
    %v1641 = vadd.f32 %v1621, %v1640
    %1642 = vdwg.mxu0
    %1643 = vmatpush.msra.mxu0 %v1411
    %1644 = vmatpush.msra.mxu0 %v1407
    %1645 = vmatpush.msra.mxu0 %v1403
    %1646 = vmatpush.msra.mxu0 %v1399
    %1647 = vmatpush.msra.mxu0 %v1395
    %1648 = vmatpush.msra.mxu0 %v1391
    %1649 = vmatpush.msra.mxu0 %v1387
    %1650 = vmatpush.msra.mxu0 %v1383
    %1651 = vmatpush.msra.mxu0 %v1379
    %1652 = vmatpush.msra.mxu0 %v1375
    %1653 = vmatpush.msra.mxu0 %v1371
    %1654 = vmatpush.msra.mxu0 %v1367
    %1655 = vmatpush.msra.mxu0 %v1363
    %1656 = vmatpush.msra.mxu0 %v1359
    %1657 = vmatpush.msra.mxu0 %v1355
    %1658 = vmatpush.msra.mxu0 %v1351
    %1659 = vmatmul.f32.gmra.mxu0 %v1156
    %v1660 = vpop.f32.mrf.mxu0
    %v1661 = vadd.f32 %v1641, %v1660
    %1662 = vdwg.mxu0
    %1663 = vmatpush.msra.mxu0 %v1220
    %1664 = vmatpush.msra.mxu0 %v1216
    %1665 = vmatpush.msra.mxu0 %v1212
    %1666 = vmatpush.msra.mxu0 %v1208
    %1667 = vmatpush.msra.mxu0 %v1204
    %1668 = vmatpush.msra.mxu0 %v1200
    %1669 = vmatpush.msra.mxu0 %v1196
    %1670 = vmatpush.msra.mxu0 %v1192
    %1671 = vmatpush.msra.mxu0 %v1188
    %1672 = vmatpush.msra.mxu0 %v1184
    %1673 = vmatpush.msra.mxu0 %v1180
    %1674 = vmatpush.msra.mxu0 %v1176
    %1675 = vmatpush.msra.mxu0 %v1172
    %1676 = vmatpush.msra.mxu0 %v1168
    %1677 = vmatpush.msra.mxu0 %v1164
    %1678 = vmatpush.msra.mxu0 %v1160
    %1679 = vmatmul.f32.gmra.mxu0 %v1153
    %v1680 = vpop.f32.mrf.mxu0
    %v1681 = vadd.f32 %v1418, %v1680
    %1682 = vdwg.mxu0
    %1683 = vmatpush.msra.mxu0 %v1284
    %1684 = vmatpush.msra.mxu0 %v1280
    %1685 = vmatpush.msra.mxu0 %v1276
    %1686 = vmatpush.msra.mxu0 %v1272
    %1687 = vmatpush.msra.mxu0 %v1268
    %1688 = vmatpush.msra.mxu0 %v1264
    %1689 = vmatpush.msra.mxu0 %v1260
    %1690 = vmatpush.msra.mxu0 %v1256
    %1691 = vmatpush.msra.mxu0 %v1252
    %1692 = vmatpush.msra.mxu0 %v1248
    %1693 = vmatpush.msra.mxu0 %v1244
    %1694 = vmatpush.msra.mxu0 %v1240
    %1695 = vmatpush.msra.mxu0 %v1236
    %1696 = vmatpush.msra.mxu0 %v1232
    %1697 = vmatpush.msra.mxu0 %v1228
    %1698 = vmatpush.msra.mxu0 %v1224
    %1699 = vmatmul.f32.gmra.mxu0 %v1154
    %v1700 = vpop.f32.mrf.mxu0
    %v1701 = vadd.f32 %v1681, %v1700
    %1702 = vdwg.mxu0
    %1703 = vmatpush.msra.mxu0 %v1348
    %1704 = vmatpush.msra.mxu0 %v1344
    %1705 = vmatpush.msra.mxu0 %v1340
    %1706 = vmatpush.msra.mxu0 %v1336
    %1707 = vmatpush.msra.mxu0 %v1332
    %1708 = vmatpush.msra.mxu0 %v1328
    %1709 = vmatpush.msra.mxu0 %v1324
    %1710 = vmatpush.msra.mxu0 %v1320
    %1711 = vmatpush.msra.mxu0 %v1316
    %1712 = vmatpush.msra.mxu0 %v1312
    %1713 = vmatpush.msra.mxu0 %v1308
    %1714 = vmatpush.msra.mxu0 %v1304
    %1715 = vmatpush.msra.mxu0 %v1300
    %1716 = vmatpush.msra.mxu0 %v1296
    %1717 = vmatpush.msra.mxu0 %v1292
    %1718 = vmatpush.msra.mxu0 %v1288
    %1719 = vmatmul.f32.gmra.mxu0 %v1155
    %v1720 = vpop.f32.mrf.mxu0
    %v1721 = vadd.f32 %v1701, %v1720
    %1722 = vdwg.mxu0
    %1723 = vmatpush.msra.mxu0 %v1412
    %1724 = vmatpush.msra.mxu0 %v1408
    %1725 = vmatpush.msra.mxu0 %v1404
    %1726 = vmatpush.msra.mxu0 %v1400
    %1727 = vmatpush.msra.mxu0 %v1396
    %1728 = vmatpush.msra.mxu0 %v1392
    %1729 = vmatpush.msra.mxu0 %v1388
    %1730 = vmatpush.msra.mxu0 %v1384
    %1731 = vmatpush.msra.mxu0 %v1380
    %1732 = vmatpush.msra.mxu0 %v1376
    %1733 = vmatpush.msra.mxu0 %v1372
    %1734 = vmatpush.msra.mxu0 %v1368
    %1735 = vmatpush.msra.mxu0 %v1364
    %1736 = vmatpush.msra.mxu0 %v1360
    %1737 = vmatpush.msra.mxu0 %v1356
    %1738 = vmatpush.msra.mxu0 %v1352
    %1739 = vmatmul.f32.gmra.mxu0 %v1156
    %v1740 = vpop.f32.mrf.mxu0
    %v1741 = vadd.f32 %v1721, %v1740
    %1742 = vdwg.mxu0
    %v1743 = vmax.f32 %v1501, 0.0
    %v1744 = vmax.f32 %v1581, 0.0
    %v1745 = vmax.f32 %v1661, 0.0
    %v1746 = vmax.f32 %v1741, 0.0
    %v1747 = vld [vmem:[#allocation11] sm:$0xff]
    %v1748 = vld [vmem:[#allocation11 + $0x8] sm:$0xff]
    %v1749 = vld [vmem:[#allocation11 + $0x10] sm:$0xff]
    %v1750 = vld [vmem:[#allocation11 + $0x18] sm:$0xff]
    %v1751 = vld [vmem:[#allocation11 + $0x20] sm:$0xff]
    %v1752 = vld [vmem:[#allocation11 + $0x28] sm:$0xff]
    %v1753 = vld [vmem:[#allocation11 + $0x30] sm:$0xff]
    %v1754 = vld [vmem:[#allocation11 + $0x38] sm:$0xff]
    %v1755 = vld [vmem:[#allocation11 + $0x40] sm:$0xff]
    %v1756 = vld [vmem:[#allocation11 + $0x48] sm:$0xff]
    %v1757 = vld [vmem:[#allocation11 + $0x50] sm:$0xff]
    %v1758 = vld [vmem:[#allocation11 + $0x58] sm:$0xff]
    %v1759 = vld [vmem:[#allocation11 + $0x60] sm:$0xff]
    %v1760 = vld [vmem:[#allocation11 + $0x68] sm:$0xff]
    %v1761 = vld [vmem:[#allocation11 + $0x70] sm:$0xff]
    %v1762 = vld [vmem:[#allocation11 + $0x78] sm:$0xff]
    %v1763 = vld [vmem:[#allocation11 + $0x80] sm:$0xff]
    %v1764 = vld [vmem:[#allocation11 + $0x88] sm:$0xff]
    %v1765 = vld [vmem:[#allocation11 + $0x90] sm:$0xff]
    %v1766 = vld [vmem:[#allocation11 + $0x98] sm:$0xff]
    %v1767 = vld [vmem:[#allocation11 + $0xa0] sm:$0xff]
    %v1768 = vld [vmem:[#allocation11 + $0xa8] sm:$0xff]
    %v1769 = vld [vmem:[#allocation11 + $0xb0] sm:$0xff]
    %v1770 = vld [vmem:[#allocation11 + $0xb8] sm:$0xff]
    %v1771 = vld [vmem:[#allocation11 + $0xc0] sm:$0xff]
    %v1772 = vld [vmem:[#allocation11 + $0xc8] sm:$0xff]
    %v1773 = vld [vmem:[#allocation11 + $0xd0] sm:$0xff]
    %v1774 = vld [vmem:[#allocation11 + $0xd8] sm:$0xff]
    %v1775 = vld [vmem:[#allocation11 + $0xe0] sm:$0xff]
    %v1776 = vld [vmem:[#allocation11 + $0xe8] sm:$0xff]
    %v1777 = vld [vmem:[#allocation11 + $0xf0] sm:$0xff]
    %v1778 = vld [vmem:[#allocation11 + $0xf8] sm:$0xff]
    %v1779 = vld [vmem:[#allocation11 + $0x100] sm:$0xff]
    %v1780 = vld [vmem:[#allocation11 + $0x108] sm:$0xff]
    %v1781 = vld [vmem:[#allocation11 + $0x110] sm:$0xff]
    %v1782 = vld [vmem:[#allocation11 + $0x118] sm:$0xff]
    %v1783 = vld [vmem:[#allocation11 + $0x120] sm:$0xff]
    %v1784 = vld [vmem:[#allocation11 + $0x128] sm:$0xff]
    %v1785 = vld [vmem:[#allocation11 + $0x130] sm:$0xff]
    %v1786 = vld [vmem:[#allocation11 + $0x138] sm:$0xff]
    %v1787 = vld [vmem:[#allocation11 + $0x140] sm:$0xff]
    %v1788 = vld [vmem:[#allocation11 + $0x148] sm:$0xff]
    %v1789 = vld [vmem:[#allocation11 + $0x150] sm:$0xff]
    %v1790 = vld [vmem:[#allocation11 + $0x158] sm:$0xff]
    %v1791 = vld [vmem:[#allocation11 + $0x160] sm:$0xff]
    %v1792 = vld [vmem:[#allocation11 + $0x168] sm:$0xff]
    %v1793 = vld [vmem:[#allocation11 + $0x170] sm:$0xff]
    %v1794 = vld [vmem:[#allocation11 + $0x178] sm:$0xff]
    %v1795 = vld [vmem:[#allocation11 + $0x180] sm:$0xff]
    %v1796 = vld [vmem:[#allocation11 + $0x188] sm:$0xff]
    %v1797 = vld [vmem:[#allocation11 + $0x190] sm:$0xff]
    %v1798 = vld [vmem:[#allocation11 + $0x198] sm:$0xff]
    %v1799 = vld [vmem:[#allocation11 + $0x1a0] sm:$0xff]
    %v1800 = vld [vmem:[#allocation11 + $0x1a8] sm:$0xff]
    %v1801 = vld [vmem:[#allocation11 + $0x1b0] sm:$0xff]
    %v1802 = vld [vmem:[#allocation11 + $0x1b8] sm:$0xff]
    %v1803 = vld [vmem:[#allocation11 + $0x1c0] sm:$0xff]
    %v1804 = vld [vmem:[#allocation11 + $0x1c8] sm:$0xff]
    %v1805 = vld [vmem:[#allocation11 + $0x1d0] sm:$0xff]
    %v1806 = vld [vmem:[#allocation11 + $0x1d8] sm:$0xff]
    %v1807 = vld [vmem:[#allocation11 + $0x1e0] sm:$0xff]
    %v1808 = vld [vmem:[#allocation11 + $0x1e8] sm:$0xff]
    %v1809 = vld [vmem:[#allocation11 + $0x1f0] sm:$0xff]
    %v1810 = vld [vmem:[#allocation11 + $0x1f8] sm:$0xff]
    %v1811 = vld [vmem:[#allocation13] sm:$0x1]
    %v1813 = vperm.slane %v1811, 0
    %1815 = vmatpush.msra.mxu0 %v1762
    %1816 = vmatpush.msra.mxu0 %v1761
    %1817 = vmatpush.msra.mxu0 %v1760
    %1818 = vmatpush.msra.mxu0 %v1759
    %1819 = vmatpush.msra.mxu0 %v1758
    %1820 = vmatpush.msra.mxu0 %v1757
    %1821 = vmatpush.msra.mxu0 %v1756
    %1822 = vmatpush.msra.mxu0 %v1755
    %1823 = vmatpush.msra.mxu0 %v1754
    %1824 = vmatpush.msra.mxu0 %v1753
    %1825 = vmatpush.msra.mxu0 %v1752
    %1826 = vmatpush.msra.mxu0 %v1751
    %1827 = vmatpush.msra.mxu0 %v1750
    %1828 = vmatpush.msra.mxu0 %v1749
    %1829 = vmatpush.msra.mxu0 %v1748
    %1830 = vmatpush.msra.mxu0 %v1747
    %1831 = vmatmul.f32.gmra.mxu0 %v1743
    %v1832 = vpop.f32.mrf.mxu0
    %v1833 = vadd.f32 %v1813, %v1832
    %1834 = vdwg.mxu0
    %1835 = vmatpush.msra.mxu0 %v1778
    %1836 = vmatpush.msra.mxu0 %v1777
    %1837 = vmatpush.msra.mxu0 %v1776
    %1838 = vmatpush.msra.mxu0 %v1775
    %1839 = vmatpush.msra.mxu0 %v1774
    %1840 = vmatpush.msra.mxu0 %v1773
    %1841 = vmatpush.msra.mxu0 %v1772
    %1842 = vmatpush.msra.mxu0 %v1771
    %1843 = vmatpush.msra.mxu0 %v1770
    %1844 = vmatpush.msra.mxu0 %v1769
    %1845 = vmatpush.msra.mxu0 %v1768
    %1846 = vmatpush.msra.mxu0 %v1767
    %1847 = vmatpush.msra.mxu0 %v1766
    %1848 = vmatpush.msra.mxu0 %v1765
    %1849 = vmatpush.msra.mxu0 %v1764
    %1850 = vmatpush.msra.mxu0 %v1763
    %1851 = vmatmul.f32.gmra.mxu0 %v1744
    %v1852 = vpop.f32.mrf.mxu0
    %v1853 = vadd.f32 %v1833, %v1852
    %1854 = vdwg.mxu0
    %1855 = vmatpush.msra.mxu0 %v1794
    %1856 = vmatpush.msra.mxu0 %v1793
    %1857 = vmatpush.msra.mxu0 %v1792
    %1858 = vmatpush.msra.mxu0 %v1791
    %1859 = vmatpush.msra.mxu0 %v1790
    %1860 = vmatpush.msra.mxu0 %v1789
    %1861 = vmatpush.msra.mxu0 %v1788
    %1862 = vmatpush.msra.mxu0 %v1787
    %1863 = vmatpush.msra.mxu0 %v1786
    %1864 = vmatpush.msra.mxu0 %v1785
    %1865 = vmatpush.msra.mxu0 %v1784
    %1866 = vmatpush.msra.mxu0 %v1783
    %1867 = vmatpush.msra.mxu0 %v1782
    %1868 = vmatpush.msra.mxu0 %v1781
    %1869 = vmatpush.msra.mxu0 %v1780
    %1870 = vmatpush.msra.mxu0 %v1779
    %1871 = vmatmul.f32.gmra.mxu0 %v1745
    %v1872 = vpop.f32.mrf.mxu0
    %v1873 = vadd.f32 %v1853, %v1872
    %1874 = vdwg.mxu0
    %1875 = vmatpush.msra.mxu0 %v1810
    %1876 = vmatpush.msra.mxu0 %v1809
    %1877 = vmatpush.msra.mxu0 %v1808
    %1878 = vmatpush.msra.mxu0 %v1807
    %1879 = vmatpush.msra.mxu0 %v1806
    %1880 = vmatpush.msra.mxu0 %v1805
    %1881 = vmatpush.msra.mxu0 %v1804
    %1882 = vmatpush.msra.mxu0 %v1803
    %1883 = vmatpush.msra.mxu0 %v1802
    %1884 = vmatpush.msra.mxu0 %v1801
    %1885 = vmatpush.msra.mxu0 %v1800
    %1886 = vmatpush.msra.mxu0 %v1799
    %1887 = vmatpush.msra.mxu0 %v1798
    %1888 = vmatpush.msra.mxu0 %v1797
    %1889 = vmatpush.msra.mxu0 %v1796
    %1890 = vmatpush.msra.mxu0 %v1795
    %1891 = vmatmul.f32.gmra.mxu0 %v1746
    %v1892 = vpop.f32.mrf.mxu0
    %v1893 = vadd.f32 %v1873, %v1892
    %1894 = vdwg.mxu0
    %1895 = vst [vmem:[#allocation14] sm:$0xff] %v1893
    // Predicated region
    $region58: #{tpu_custom_call.1} parent=1 // pred_check
      _
    $region59: #{tpu_custom_call.1} parent=1 // pred_check_branch
      %1897 = sbr.rel (0) target = $region61
    $region60: #{tpu_custom_call.1} parent=1 // pred_region
      %1899 = vsyncadd [#allocation4], 0
      %s1901 = sshll.u32 [#allocation14], 4
      %s1902 = int_to_ptr.vmem [resolvable:$true] %s1901
      %s1903 = sshll.u32 %s7, 4
      %s1904 = int_to_ptr.hbm [resolvable:$true] %s1903
      %1906 = dma.vmem_to_hbm [thread:$0]  %s1902, 128, %s1904, [#allocation4]
    $region61: #{tpu_custom_call.1} parent=1 // pred_fallthru
      _
    // Predicated region
    $region62: #{tpu_custom_call.1} parent=1 // pred_check
      _
    $region63: #{tpu_custom_call.1} parent=1 // pred_check_branch
      %1908 = sbr.rel (0) target = $region65
    $region64: #{tpu_custom_call.1} parent=1 // pred_region
      %1910 = dma.done [#allocation4], 128
    $region65: #{tpu_custom_call.1} parent=1 // pred_fallthru
      _
    %1911 = vsyncpa [#allocation3], 1
    %1912 = vsyncpa [#allocation6], 1
    %1913 = vsyncpa [#allocation9], 1
    %1914 = vsyncpa [#allocation12], 1
    %1915 = vsyncpa [#allocation4], 1

</llo_original>
